<compile_context>
chip_gen: v5e
topology: v5e:2x2
jax: 0.10.0
libtpu: 0.0.40
codegen_flags: <defaults>
</compile_context>

<pallas_src>
import math

import jax
import jax.numpy as jnp
from jax import lax
from jax.experimental import pallas as pl
from jax.experimental.pallas import tpu as pltpu

# --- model hyper-parameters (gpt-nano-like, small shapes) -------------------
N_LAYER = 1
N_HEAD = 2          # config.h
N_EMBD = 32         # config.n_embd (== vocab_size, since forward does idx + pos_emb)
BLOCK_SIZE = 8      # config.block_size (== T)
MOD2_DIM = 16       # config.mod2_dim (kept small)
LOSS1 = 50.0        # config.loss1
LN_EPS = 1e-5       # PyTorch LayerNorm default eps

HEAD_DIM = N_EMBD // N_HEAD
OUT_W = 64          # merged output slab width: [emb(32) | logits(16) | sse(1) | pad]


def _layernorm(x, g, b):
    # var = E[x^2] - mu^2 : two independent reductions from x (shorter dep chain)
    n = x.shape[-1]
    inv_n = 1.0 / n
    mu = jnp.sum(x, axis=-1, keepdims=True) * inv_n
    ex2 = jnp.sum(x * x, axis=-1, keepdims=True) * inv_n
    var = ex2 - mu * mu
    return (x - mu) * lax.rsqrt(var + LN_EPS) * g + b


def gpt_kernel(x_ref, pos_ref, mask_ref,
               ln1g_ref, ln1b_ref,
               wqkv_ref, bqkv_ref,
               wproj_ref, projb_ref,
               ln2g_ref, ln2b_ref,
               fcw_ref, fcb_ref, mpw_ref, mpb_ref,
               lnfg_ref, lnfb_ref,
               hw_ref, hb_ref, y_ref,
               out_ref):
    Bt, T, C = x_ref.shape
    H = N_HEAD
    hd = C // H
    BT = Bt * T
    M = y_ref.shape[-1]
    f32 = jnp.float32

    # x = dropout(idx + pos_emb); dropout == identity (eval semantics).
    # Activations stay flat (BT, C) for all row-wise ops.
    x = (x_ref[...] + pos_ref[...][None, :, :]).reshape(BT, C)

    # ---------------- transformer block (n_layer == 1) ----------------
    x = jnp.maximum(x, 0.0)                          # relu before the block

    # --- causal self-attention branch ---
    h1 = _layernorm(x, ln1g_ref[...], ln1b_ref[...])

    # fused qkv projection: one dot, one bias add, one relu
    qkv = jnp.maximum(
        jnp.dot(h1, wqkv_ref[...], preferred_element_type=f32) + bqkv_ref[...],
        0.0)                                         # (BT, 3C) = [q | k | v]

    scale = 1.0 / math.sqrt(hd)
    mask = mask_ref[...]                             # (BT, BT) block-diag causal,
                                                     # loaded ONCE before the loop

    yatt = projb_ref[...]                            # (1, C); broadcasts on first add
    for h in range(H):                               # static unroll (H == 2)
        q_h = qkv[:, h * hd:(h + 1) * hd]            # (BT, hd) static lane slices
        k_h = qkv[:, C + h * hd:C + (h + 1) * hd]
        v_h = qkv[:, 2 * C + h * hd:2 * C + (h + 1) * hd]

        # full-width block-diagonal attention: one (BT,BT) matmul per head
        s_h = lax.dot_general(q_h, k_h, (((1,), (1,)), ((), ())),
                              preferred_element_type=f32) * scale   # (BT, BT)
        # masked_fill(-inf) then relu  ==  relu(s) * block-diag causal mask
        a_h = jnp.maximum(s_h, 0.0) * mask
        y_h = jnp.dot(a_h, v_h, preferred_element_type=f32)         # (BT, hd)
        # c_proj(concat_h y_h) == sum_h y_h @ Wp[h]   (bias added once, above)
        yatt = yatt + jnp.dot(y_h, wproj_ref[h], preferred_element_type=f32)
    x = x + yatt                                     # residual

    # --- MLP branch ---
    h2 = _layernorm(x, ln2g_ref[...], ln2b_ref[...])
    ff = jnp.maximum(
        jnp.dot(h2, fcw_ref[...], preferred_element_type=f32) + fcb_ref[...], 0.0)
    x = x + jnp.dot(ff, mpw_ref[...], preferred_element_type=f32) + mpb_ref[...]

    # ------------------------------ head ------------------------------
    x = jnp.maximum(x, 0.0)
    x = _layernorm(x, lnfg_ref[...], lnfb_ref[...])
    x = jnp.maximum(x, 0.0)
    emb = jnp.mean(x.reshape(Bt, T, C), axis=1)      # (Bt, C)

    logits = jnp.dot(emb, hw_ref[...], preferred_element_type=f32) + hb_ref[...]
    mod_logits = jnp.maximum(logits, 0.0)

    # per-sequence sum of squared errors; final mean/sqrt/scale in the wrapper
    d = mod_logits - y_ref[...]
    sse = jnp.sum(d * d, axis=-1, keepdims=True)     # (Bt, 1)

    # single merged output slab: [emb | logits | sse | (uninitialized pad)]
    out_ref[:, 0:C] = emb
    out_ref[:, C:C + M] = mod_logits
    out_ref[:, C + M:C + M + 1] = sse


def init_params(key):
    """Deterministic init mirroring GPT._init_weights shapes (PyTorch layout)."""
    def normal(k, shape, std):
        return std * jax.random.normal(k, shape, dtype=jnp.float32)

    ks = jax.random.split(key, 6)
    C, M, BS = N_EMBD, MOD2_DIM, BLOCK_SIZE
    cproj_std = 0.02 / math.sqrt(2 * N_LAYER)
    return dict(
        wpe=normal(ks[0], (BS, C), 0.02),
        ln1_g=jnp.ones((C,), jnp.float32), ln1_b=jnp.zeros((C,), jnp.float32),
        attn_w=normal(ks[1], (3 * C, C), 0.02),
        attn_b=jnp.zeros((3 * C,), jnp.float32),
        attn_proj_w=normal(ks[2], (C, C), cproj_std),
        attn_proj_b=jnp.zeros((C,), jnp.float32),
        ln2_g=jnp.ones((C,), jnp.float32), ln2_b=jnp.zeros((C,), jnp.float32),
        fc_w=normal(ks[3], (2 * C, C), 0.02),
        fc_b=jnp.zeros((2 * C,), jnp.float32),
        mlp_proj_w=normal(ks[4], (C, 2 * C), cproj_std),
        mlp_proj_b=jnp.zeros((C,), jnp.float32),
        lnf_g=jnp.ones((C,), jnp.float32), lnf_b=jnp.zeros((C,), jnp.float32),
        head_w=normal(ks[5], (M, C), 0.02),
        head_b=jnp.zeros((M,), jnp.float32),
    )


def _num_tensorcores_per_chip():
    """2 only on v7x (2 TCs/chip); v5e/v6e have 1. Defensive: default to 1."""
    try:
        kind = jax.devices()[0].device_kind.lower()
        if "v7" in kind or "7x" in kind:
            return 2
    except Exception:
        pass
    return 1


def gpt_forward(X, Y, p, *, b_tile=None):
    """Returns (emb_mod, loss, mod1_logits2) like GPT.forward."""
    B, T, C = X.shape
    M = MOD2_DIM
    H, hd = N_HEAD, C // N_HEAD

    # Single grid step (all 256 rows) on 1-TC chips (v5e/v6e); split 2-way only
    # on v7x.  Cap rows-per-tile at 256 so the block-diag mask stays small.
    if b_tile is None:
        n_cores = _num_tensorcores_per_chip()
        rows_cap = max(1, 256 // T)
        b_tile = max(1, min(B, rows_cap, pl.cdiv(B, n_cores)))
    while B % b_tile:
        b_tile -= 1
    n_tiles = B // b_tile
    BT_t = b_tile * T

    pos_emb = p['wpe'][:T]                               # (T, C)
    # block-diagonal causal mask over the flat (BT_t, BT_t) score matrix
    mask = jnp.kron(jnp.eye(b_tile, dtype=jnp.float32),
                    jnp.tril(jnp.ones((T, T), jnp.float32)))
    r = lambda a: a.reshape(1, -1)                       # 1-D params -> (1, n)

    # Fused qkv weight: x @ W_qkv gives columns [q(C) | k(C) | v(C)];
    # head h of q is columns h*hd:(h+1)*hd, etc. (matches PyTorch split/view).
    wqkv = p['attn_w'].T                                 # (C, 3C)
    bqkv = r(p['attn_b'])                                # (1, 3C)
    wproj = p['attn_proj_w'].T.reshape(H, hd, C)         # (H, hd, C)

    inputs = [
        X.astype(jnp.float32), pos_emb, mask,
        r(p['ln1_g']), r(p['ln1_b']),
        wqkv, bqkv,
        wproj, r(p['attn_proj_b']),
        r(p['ln2_g']), r(p['ln2_b']),
        p['fc_w'].T, r(p['fc_b']),
        p['mlp_proj_w'].T, r(p['mlp_proj_b']),
        r(p['lnf_g']), r(p['lnf_b']),
        p['head_w'].T, r(p['head_b']),
        Y.astype(jnp.float32),
    ]

    def const_spec(a):
        nd = a.ndim
        return pl.BlockSpec(a.shape, lambda i, _nd=nd: (0,) * _nd)

    in_specs = (
        [pl.BlockSpec((b_tile, T, C), lambda i: (i, 0, 0))]       # X tile
        + [const_spec(a) for a in inputs[1:-1]]                   # params / mask
        + [pl.BlockSpec((b_tile, M), lambda i: (i, 0))]           # Y tile
    )
    out_specs = pl.BlockSpec((b_tile, OUT_W), lambda i: (i, 0))   # merged slab
    out_shape = jax.ShapeDtypeStruct((B, OUT_W), jnp.float32)

    # Advisory cost estimate so XLA schedules the custom call sensibly.
    flops_per_tile = (
        2 * BT_t * C * (3 * C)                 # fused qkv projection
        + H * 4 * BT_t * BT_t * hd             # S_h and Y_h per head
        + 2 * BT_t * C * C                     # c_proj (sum_h form)
        + 2 * 2 * BT_t * C * (2 * C)           # mlp fc + proj
        + 2 * b_tile * C * M)                  # lm_head
    flops = int(n_tiles * flops_per_tile)
    bytes_accessed = int(sum(a.size * a.dtype.itemsize for a in inputs)
                         + B * OUT_W * 4)
    cost = pl.CostEstimate(flops=flops, transcendentals=3 * B * T,
                           bytes_accessed=bytes_accessed)

    slab = pl.pallas_call(
        gpt_kernel,
        out_shape=out_shape,
        grid_spec=pltpu.PrefetchScalarGridSpec(
            num_scalar_prefetch=0,
            grid=(n_tiles,),
            in_specs=in_specs,
            out_specs=out_specs,
        ),
        compiler_params=pltpu.CompilerParams(
            dimension_semantics=("parallel",),
        ),
        cost_estimate=cost,
    )(*inputs)

    emb = slab[:, 0:C]
    logits = slab[:, C:C + M]
    sse = slab[:, C + M:C + M + 1]

    # Finish the global reduction (sum over <=B scalars) outside the kernel so
    # the batch grid axis can stay fully parallel across TensorCores.
    loss = LOSS1 * jnp.sqrt(jnp.sum(sse) / (B * M))
    return emb, loss, logits


if __name__ == "__main__":
    key = jax.random.PRNGKey(0)
    kx, ky, kp = jax.random.split(key, 3)

    B, T = 32, BLOCK_SIZE          # B*T = 256 activation rows
    X = jax.random.normal(kx, (B, T, N_EMBD), dtype=jnp.float32)   # "mod1"
    Y = jax.random.normal(ky, (B, MOD2_DIM), dtype=jnp.float32)    # "mod2" targets

    params = init_params(kp)
    emb_mod, loss, mod1_logits2 = gpt_forward(X, Y, params)
    jax.block_until_ready((emb_mod, loss, mod1_logits2))

    assert emb_mod.shape == (B, N_EMBD)
    assert mod1_logits2.shape == (B, MOD2_DIM)
    assert loss.shape == ()
    assert bool(jnp.isfinite(loss))
    print("KERNEL_OK")
</pallas_src>

<mosaic_0001>
module attributes {stable_mosaic.version = 11 : i64} {
  func.func @gpt_kernel(%arg0: i32, %arg1: memref<32x8x32xf32, #tpu.memory_space<vmem>>, %arg2: memref<8x32xf32, #tpu.memory_space<vmem>>, %arg3: memref<256x256xf32, #tpu.memory_space<vmem>>, %arg4: memref<1x32xf32, #tpu.memory_space<vmem>>, %arg5: memref<1x32xf32, #tpu.memory_space<vmem>>, %arg6: memref<32x96xf32, #tpu.memory_space<vmem>>, %arg7: memref<1x96xf32, #tpu.memory_space<vmem>>, %arg8: memref<2x16x32xf32, #tpu.memory_space<vmem>>, %arg9: memref<1x32xf32, #tpu.memory_space<vmem>>, %arg10: memref<1x32xf32, #tpu.memory_space<vmem>>, %arg11: memref<1x32xf32, #tpu.memory_space<vmem>>, %arg12: memref<32x64xf32, #tpu.memory_space<vmem>>, %arg13: memref<1x64xf32, #tpu.memory_space<vmem>>, %arg14: memref<64x32xf32, #tpu.memory_space<vmem>>, %arg15: memref<1x32xf32, #tpu.memory_space<vmem>>, %arg16: memref<1x32xf32, #tpu.memory_space<vmem>>, %arg17: memref<1x32xf32, #tpu.memory_space<vmem>>, %arg18: memref<32x16xf32, #tpu.memory_space<vmem>>, %arg19: memref<1x16xf32, #tpu.memory_space<vmem>>, %arg20: memref<32x16xf32, #tpu.memory_space<vmem>>, %arg21: memref<32x64xf32, #tpu.memory_space<vmem>>) attributes {dimension_semantics = [#tpu.dimension_semantics<parallel>], iteration_bounds = array<i64: 1>, scalar_prefetch = 0 : i64, scratch_operands = 0 : i64, tpu.core_type = #tpu.core_type<tc>, window_params = [{transform_indices = @transform_0, window_bounds = array<i64: 32, 8, 32>}, {pipeline_mode = #tpu.pipeline_mode<synchronous>, transform_indices = @transform_1, window_bounds = array<i64: 8, 32>}, {pipeline_mode = #tpu.pipeline_mode<synchronous>, transform_indices = @transform_2, window_bounds = array<i64: 256, 256>}, {pipeline_mode = #tpu.pipeline_mode<synchronous>, transform_indices = @transform_3, window_bounds = array<i64: 1, 32>}, {pipeline_mode = #tpu.pipeline_mode<synchronous>, transform_indices = @transform_4, window_bounds = array<i64: 1, 32>}, {pipeline_mode = #tpu.pipeline_mode<synchronous>, transform_indices = @transform_5, window_bounds = array<i64: 32, 96>}, {pipeline_mode = #tpu.pipeline_mode<synchronous>, transform_indices = @transform_6, window_bounds = array<i64: 1, 96>}, {pipeline_mode = #tpu.pipeline_mode<synchronous>, transform_indices = @transform_7, window_bounds = array<i64: 2, 16, 32>}, {pipeline_mode = #tpu.pipeline_mode<synchronous>, transform_indices = @transform_8, window_bounds = array<i64: 1, 32>}, {pipeline_mode = #tpu.pipeline_mode<synchronous>, transform_indices = @transform_9, window_bounds = array<i64: 1, 32>}, {pipeline_mode = #tpu.pipeline_mode<synchronous>, transform_indices = @transform_10, window_bounds = array<i64: 1, 32>}, {pipeline_mode = #tpu.pipeline_mode<synchronous>, transform_indices = @transform_11, window_bounds = array<i64: 32, 64>}, {pipeline_mode = #tpu.pipeline_mode<synchronous>, transform_indices = @transform_12, window_bounds = array<i64: 1, 64>}, {pipeline_mode = #tpu.pipeline_mode<synchronous>, transform_indices = @transform_13, window_bounds = array<i64: 64, 32>}, {pipeline_mode = #tpu.pipeline_mode<synchronous>, transform_indices = @transform_14, window_bounds = array<i64: 1, 32>}, {pipeline_mode = #tpu.pipeline_mode<synchronous>, transform_indices = @transform_15, window_bounds = array<i64: 1, 32>}, {pipeline_mode = #tpu.pipeline_mode<synchronous>, transform_indices = @transform_16, window_bounds = array<i64: 1, 32>}, {pipeline_mode = #tpu.pipeline_mode<synchronous>, transform_indices = @transform_17, window_bounds = array<i64: 32, 16>}, {pipeline_mode = #tpu.pipeline_mode<synchronous>, transform_indices = @transform_18, window_bounds = array<i64: 1, 16>}, {transform_indices = @transform_19, window_bounds = array<i64: 32, 16>}, {transform_indices = @transform_20, window_bounds = array<i64: 32, 64>}]} {
    %c0 = arith.constant 0 : index
    %c0_0 = arith.constant 0 : index
    %c0_1 = arith.constant 0 : index
    %0 = vector.load %arg1[%c0, %c0_0, %c0_1] : memref<32x8x32xf32, #tpu.memory_space<vmem>>, vector<32x8x32xf32>
    %c0_2 = arith.constant 0 : index
    %c0_3 = arith.constant 0 : index
    %1 = vector.load %arg2[%c0_2, %c0_3] : memref<8x32xf32, #tpu.memory_space<vmem>>, vector<8x32xf32>
    %2 = vector.shape_cast %1 : vector<8x32xf32> to vector<1x8x32xf32>
    %3 = vector.broadcast %2 : vector<1x8x32xf32> to vector<32x8x32xf32>
    %4 = arith.addf %0, %3 : vector<32x8x32xf32>
    %5 = vector.shape_cast %4 : vector<32x8x32xf32> to vector<256x32xf32>
    %cst = arith.constant 0.000000e+00 : f32
    %6 = vector.broadcast %cst : f32 to vector<256x32xf32>
    %7 = arith.maximumf %5, %6 : vector<256x32xf32>
    %c0_4 = arith.constant 0 : index
    %c0_5 = arith.constant 0 : index
    %8 = vector.load %arg4[%c0_4, %c0_5] : memref<1x32xf32, #tpu.memory_space<vmem>>, vector<1x32xf32>
    %c0_6 = arith.constant 0 : index
    %c0_7 = arith.constant 0 : index
    %9 = vector.load %arg5[%c0_6, %c0_7] : memref<1x32xf32, #tpu.memory_space<vmem>>, vector<1x32xf32>
    %cst_8 = arith.constant dense<0.000000e+00> : vector<256xf32>
    %10 = vector.multi_reduction <add>, %7, %cst_8 [1] : vector<256x32xf32> to vector<256xf32>
    %11 = vector.shape_cast %10 : vector<256xf32> to vector<256x1xf32>
    %cst_9 = arith.constant 3.125000e-02 : f32
    %12 = vector.broadcast %cst_9 : f32 to vector<256x1xf32>
    %13 = arith.mulf %11, %12 : vector<256x1xf32>
    %14 = arith.mulf %7, %7 : vector<256x32xf32>
    %cst_10 = arith.constant dense<0.000000e+00> : vector<256xf32>
    %15 = vector.multi_reduction <add>, %14, %cst_10 [1] : vector<256x32xf32> to vector<256xf32>
    %16 = vector.shape_cast %15 : vector<256xf32> to vector<256x1xf32>
    %cst_11 = arith.constant 3.125000e-02 : f32
    %17 = vector.broadcast %cst_11 : f32 to vector<256x1xf32>
    %18 = arith.mulf %16, %17 : vector<256x1xf32>
    %19 = arith.mulf %13, %13 : vector<256x1xf32>
    %20 = arith.subf %18, %19 : vector<256x1xf32>
    %21 = vector.broadcast %13 : vector<256x1xf32> to vector<256x32xf32>
    %22 = arith.subf %7, %21 : vector<256x32xf32>
    %cst_12 = arith.constant 9.99999974E-6 : f32
    %23 = vector.broadcast %cst_12 : f32 to vector<256x1xf32>
    %24 = arith.addf %20, %23 : vector<256x1xf32>
    %25 = math.rsqrt %24 : vector<256x1xf32>
    %26 = vector.broadcast %25 : vector<256x1xf32> to vector<256x32xf32>
    %27 = arith.mulf %22, %26 : vector<256x32xf32>
    %28 = vector.broadcast %8 : vector<1x32xf32> to vector<256x32xf32>
    %29 = arith.mulf %27, %28 : vector<256x32xf32>
    %30 = vector.broadcast %9 : vector<1x32xf32> to vector<256x32xf32>
    %31 = arith.addf %29, %30 : vector<256x32xf32>
    %c0_13 = arith.constant 0 : index
    %c0_14 = arith.constant 0 : index
    %32 = vector.load %arg6[%c0_13, %c0_14] : memref<32x96xf32, #tpu.memory_space<vmem>>, vector<32x96xf32>
    %cst_15 = arith.constant dense<0.000000e+00> : vector<256x96xf32>
    %33 = tpu.matmul %31, %32, %cst_15 {dimension_numbers = #tpu.dot_dimension_numbers<[1], [0], [0], [1], [0, 0, 1, 1], [], []>} : vector<256x32xf32>, vector<32x96xf32>, vector<256x96xf32> -> vector<256x96xf32>
    %c0_16 = arith.constant 0 : index
    %c0_17 = arith.constant 0 : index
    %34 = vector.load %arg7[%c0_16, %c0_17] : memref<1x96xf32, #tpu.memory_space<vmem>>, vector<1x96xf32>
    %35 = vector.broadcast %34 : vector<1x96xf32> to vector<256x96xf32>
    %36 = arith.addf %33, %35 : vector<256x96xf32>
    %cst_18 = arith.constant 0.000000e+00 : f32
    %37 = vector.broadcast %cst_18 : f32 to vector<256x96xf32>
    %38 = arith.maximumf %36, %37 : vector<256x96xf32>
    %c0_19 = arith.constant 0 : index
    %c0_20 = arith.constant 0 : index
    %39 = vector.load %arg3[%c0_19, %c0_20] : memref<256x256xf32, #tpu.memory_space<vmem>>, vector<256x256xf32>
    %c0_21 = arith.constant 0 : index
    %c0_22 = arith.constant 0 : index
    %40 = vector.load %arg9[%c0_21, %c0_22] : memref<1x32xf32, #tpu.memory_space<vmem>>, vector<1x32xf32>
    %41 = vector.extract_strided_slice %38 {offsets = [0, 0], sizes = [256, 16], strides = [1, 1]} : vector<256x96xf32> to vector<256x16xf32>
    %42 = vector.extract_strided_slice %38 {offsets = [0, 32], sizes = [256, 16], strides = [1, 1]} : vector<256x96xf32> to vector<256x16xf32>
    %43 = vector.extract_strided_slice %38 {offsets = [0, 64], sizes = [256, 16], strides = [1, 1]} : vector<256x96xf32> to vector<256x16xf32>
    %cst_23 = arith.constant dense<0.000000e+00> : vector<256x256xf32>
    %44 = tpu.matmul %41, %42, %cst_23 {dimension_numbers = #tpu.dot_dimension_numbers<[1], [1], [0], [0], [0, 0, 1, 0], [], []>} : vector<256x16xf32>, vector<256x16xf32>, vector<256x256xf32> -> vector<256x256xf32>
    %cst_24 = arith.constant 2.500000e-01 : f32
    %45 = vector.broadcast %cst_24 : f32 to vector<256x256xf32>
    %46 = arith.mulf %44, %45 : vector<256x256xf32>
    %cst_25 = arith.constant 0.000000e+00 : f32
    %47 = vector.broadcast %cst_25 : f32 to vector<256x256xf32>
    %48 = arith.maximumf %46, %47 : vector<256x256xf32>
    %49 = arith.mulf %48, %39 : vector<256x256xf32>
    %cst_26 = arith.constant dense<0.000000e+00> : vector<256x16xf32>
    %50 = tpu.matmul %49, %43, %cst_26 {dimension_numbers = #tpu.dot_dimension_numbers<[1], [0], [0], [1], [0, 0, 1, 1], [], []>} : vector<256x256xf32>, vector<256x16xf32>, vector<256x16xf32> -> vector<256x16xf32>
    %c0_27 = arith.constant 0 : index
    %c0_28 = arith.constant 0 : index
    %c0_29 = arith.constant 0 : index
    %51 = vector.load %arg8[%c0_27, %c0_28, %c0_29] : memref<2x16x32xf32, #tpu.memory_space<vmem>>, vector<1x16x32xf32>
    %52 = vector.shape_cast %51 : vector<1x16x32xf32> to vector<16x32xf32>
    %cst_30 = arith.constant dense<0.000000e+00> : vector<256x32xf32>
    %53 = tpu.matmul %50, %52, %cst_30 {dimension_numbers = #tpu.dot_dimension_numbers<[1], [0], [0], [1], [0, 0, 1, 1], [], []>} : vector<256x16xf32>, vector<16x32xf32>, vector<256x32xf32> -> vector<256x32xf32>
    %54 = vector.broadcast %40 : vector<1x32xf32> to vector<256x32xf32>
    %55 = arith.addf %54, %53 : vector<256x32xf32>
    %56 = vector.extract_strided_slice %38 {offsets = [0, 16], sizes = [256, 16], strides = [1, 1]} : vector<256x96xf32> to vector<256x16xf32>
    %57 = vector.extract_strided_slice %38 {offsets = [0, 48], sizes = [256, 16], strides = [1, 1]} : vector<256x96xf32> to vector<256x16xf32>
    %58 = vector.extract_strided_slice %38 {offsets = [0, 80], sizes = [256, 16], strides = [1, 1]} : vector<256x96xf32> to vector<256x16xf32>
    %cst_31 = arith.constant dense<0.000000e+00> : vector<256x256xf32>
    %59 = tpu.matmul %56, %57, %cst_31 {dimension_numbers = #tpu.dot_dimension_numbers<[1], [1], [0], [0], [0, 0, 1, 0], [], []>} : vector<256x16xf32>, vector<256x16xf32>, vector<256x256xf32> -> vector<256x256xf32>
    %cst_32 = arith.constant 2.500000e-01 : f32
    %60 = vector.broadcast %cst_32 : f32 to vector<256x256xf32>
    %61 = arith.mulf %59, %60 : vector<256x256xf32>
    %cst_33 = arith.constant 0.000000e+00 : f32
    %62 = vector.broadcast %cst_33 : f32 to vector<256x256xf32>
    %63 = arith.maximumf %61, %62 : vector<256x256xf32>
    %64 = arith.mulf %63, %39 : vector<256x256xf32>
    %cst_34 = arith.constant dense<0.000000e+00> : vector<256x16xf32>
    %65 = tpu.matmul %64, %58, %cst_34 {dimension_numbers = #tpu.dot_dimension_numbers<[1], [0], [0], [1], [0, 0, 1, 1], [], []>} : vector<256x256xf32>, vector<256x16xf32>, vector<256x16xf32> -> vector<256x16xf32>
    %c1 = arith.constant 1 : index
    %c0_35 = arith.constant 0 : index
    %c0_36 = arith.constant 0 : index
    %66 = vector.load %arg8[%c1, %c0_35, %c0_36] : memref<2x16x32xf32, #tpu.memory_space<vmem>>, vector<1x16x32xf32>
    %67 = vector.shape_cast %66 : vector<1x16x32xf32> to vector<16x32xf32>
    %cst_37 = arith.constant dense<0.000000e+00> : vector<256x32xf32>
    %68 = tpu.matmul %65, %67, %cst_37 {dimension_numbers = #tpu.dot_dimension_numbers<[1], [0], [0], [1], [0, 0, 1, 1], [], []>} : vector<256x16xf32>, vector<16x32xf32>, vector<256x32xf32> -> vector<256x32xf32>
    %69 = arith.addf %55, %68 : vector<256x32xf32>
    %70 = arith.addf %7, %69 : vector<256x32xf32>
    %c0_38 = arith.constant 0 : index
    %c0_39 = arith.constant 0 : index
    %71 = vector.load %arg10[%c0_38, %c0_39] : memref<1x32xf32, #tpu.memory_space<vmem>>, vector<1x32xf32>
    %c0_40 = arith.constant 0 : index
    %c0_41 = arith.constant 0 : index
    %72 = vector.load %arg11[%c0_40, %c0_41] : memref<1x32xf32, #tpu.memory_space<vmem>>, vector<1x32xf32>
    %cst_42 = arith.constant dense<0.000000e+00> : vector<256xf32>
    %73 = vector.multi_reduction <add>, %70, %cst_42 [1] : vector<256x32xf32> to vector<256xf32>
    %74 = vector.shape_cast %73 : vector<256xf32> to vector<256x1xf32>
    %cst_43 = arith.constant 3.125000e-02 : f32
    %75 = vector.broadcast %cst_43 : f32 to vector<256x1xf32>
    %76 = arith.mulf %74, %75 : vector<256x1xf32>
    %77 = arith.mulf %70, %70 : vector<256x32xf32>
    %cst_44 = arith.constant dense<0.000000e+00> : vector<256xf32>
    %78 = vector.multi_reduction <add>, %77, %cst_44 [1] : vector<256x32xf32> to vector<256xf32>
    %79 = vector.shape_cast %78 : vector<256xf32> to vector<256x1xf32>
    %cst_45 = arith.constant 3.125000e-02 : f32
    %80 = vector.broadcast %cst_45 : f32 to vector<256x1xf32>
    %81 = arith.mulf %79, %80 : vector<256x1xf32>
    %82 = arith.mulf %76, %76 : vector<256x1xf32>
    %83 = arith.subf %81, %82 : vector<256x1xf32>
    %84 = vector.broadcast %76 : vector<256x1xf32> to vector<256x32xf32>
    %85 = arith.subf %70, %84 : vector<256x32xf32>
    %cst_46 = arith.constant 9.99999974E-6 : f32
    %86 = vector.broadcast %cst_46 : f32 to vector<256x1xf32>
    %87 = arith.addf %83, %86 : vector<256x1xf32>
    %88 = math.rsqrt %87 : vector<256x1xf32>
    %89 = vector.broadcast %88 : vector<256x1xf32> to vector<256x32xf32>
    %90 = arith.mulf %85, %89 : vector<256x32xf32>
    %91 = vector.broadcast %71 : vector<1x32xf32> to vector<256x32xf32>
    %92 = arith.mulf %90, %91 : vector<256x32xf32>
    %93 = vector.broadcast %72 : vector<1x32xf32> to vector<256x32xf32>
    %94 = arith.addf %92, %93 : vector<256x32xf32>
    %c0_47 = arith.constant 0 : index
    %c0_48 = arith.constant 0 : index
    %95 = vector.load %arg12[%c0_47, %c0_48] : memref<32x64xf32, #tpu.memory_space<vmem>>, vector<32x64xf32>
    %cst_49 = arith.constant dense<0.000000e+00> : vector<256x64xf32>
    %96 = tpu.matmul %94, %95, %cst_49 {dimension_numbers = #tpu.dot_dimension_numbers<[1], [0], [0], [1], [0, 0, 1, 1], [], []>} : vector<256x32xf32>, vector<32x64xf32>, vector<256x64xf32> -> vector<256x64xf32>
    %c0_50 = arith.constant 0 : index
    %c0_51 = arith.constant 0 : index
    %97 = vector.load %arg13[%c0_50, %c0_51] : memref<1x64xf32, #tpu.memory_space<vmem>>, vector<1x64xf32>
    %98 = vector.broadcast %97 : vector<1x64xf32> to vector<256x64xf32>
    %99 = arith.addf %96, %98 : vector<256x64xf32>
    %cst_52 = arith.constant 0.000000e+00 : f32
    %100 = vector.broadcast %cst_52 : f32 to vector<256x64xf32>
    %101 = arith.maximumf %99, %100 : vector<256x64xf32>
    %c0_53 = arith.constant 0 : index
    %c0_54 = arith.constant 0 : index
    %102 = vector.load %arg14[%c0_53, %c0_54] : memref<64x32xf32, #tpu.memory_space<vmem>>, vector<64x32xf32>
    %cst_55 = arith.constant dense<0.000000e+00> : vector<256x32xf32>
    %103 = tpu.matmul %101, %102, %cst_55 {dimension_numbers = #tpu.dot_dimension_numbers<[1], [0], [0], [1], [0, 0, 1, 1], [], []>} : vector<256x64xf32>, vector<64x32xf32>, vector<256x32xf32> -> vector<256x32xf32>
    %104 = arith.addf %70, %103 : vector<256x32xf32>
    %c0_56 = arith.constant 0 : index
    %c0_57 = arith.constant 0 : index
    %105 = vector.load %arg15[%c0_56, %c0_57] : memref<1x32xf32, #tpu.memory_space<vmem>>, vector<1x32xf32>
    %106 = vector.broadcast %105 : vector<1x32xf32> to vector<256x32xf32>
    %107 = arith.addf %104, %106 : vector<256x32xf32>
    %cst_58 = arith.constant 0.000000e+00 : f32
    %108 = vector.broadcast %cst_58 : f32 to vector<256x32xf32>
    %109 = arith.maximumf %107, %108 : vector<256x32xf32>
    %c0_59 = arith.constant 0 : index
    %c0_60 = arith.constant 0 : index
    %110 = vector.load %arg16[%c0_59, %c0_60] : memref<1x32xf32, #tpu.memory_space<vmem>>, vector<1x32xf32>
    %c0_61 = arith.constant 0 : index
    %c0_62 = arith.constant 0 : index
    %111 = vector.load %arg17[%c0_61, %c0_62] : memref<1x32xf32, #tpu.memory_space<vmem>>, vector<1x32xf32>
    %cst_63 = arith.constant dense<0.000000e+00> : vector<256xf32>
    %112 = vector.multi_reduction <add>, %109, %cst_63 [1] : vector<256x32xf32> to vector<256xf32>
    %113 = vector.shape_cast %112 : vector<256xf32> to vector<256x1xf32>
    %cst_64 = arith.constant 3.125000e-02 : f32
    %114 = vector.broadcast %cst_64 : f32 to vector<256x1xf32>
    %115 = arith.mulf %113, %114 : vector<256x1xf32>
    %116 = arith.mulf %109, %109 : vector<256x32xf32>
    %cst_65 = arith.constant dense<0.000000e+00> : vector<256xf32>
    %117 = vector.multi_reduction <add>, %116, %cst_65 [1] : vector<256x32xf32> to vector<256xf32>
    %118 = vector.shape_cast %117 : vector<256xf32> to vector<256x1xf32>
    %cst_66 = arith.constant 3.125000e-02 : f32
    %119 = vector.broadcast %cst_66 : f32 to vector<256x1xf32>
    %120 = arith.mulf %118, %119 : vector<256x1xf32>
    %121 = arith.mulf %115, %115 : vector<256x1xf32>
    %122 = arith.subf %120, %121 : vector<256x1xf32>
    %123 = vector.broadcast %115 : vector<256x1xf32> to vector<256x32xf32>
    %124 = arith.subf %109, %123 : vector<256x32xf32>
    %cst_67 = arith.constant 9.99999974E-6 : f32
    %125 = vector.broadcast %cst_67 : f32 to vector<256x1xf32>
    %126 = arith.addf %122, %125 : vector<256x1xf32>
    %127 = math.rsqrt %126 : vector<256x1xf32>
    %128 = vector.broadcast %127 : vector<256x1xf32> to vector<256x32xf32>
    %129 = arith.mulf %124, %128 : vector<256x32xf32>
    %130 = vector.broadcast %110 : vector<1x32xf32> to vector<256x32xf32>
    %131 = arith.mulf %129, %130 : vector<256x32xf32>
    %132 = vector.broadcast %111 : vector<1x32xf32> to vector<256x32xf32>
    %133 = arith.addf %131, %132 : vector<256x32xf32>
    %cst_68 = arith.constant 0.000000e+00 : f32
    %134 = vector.broadcast %cst_68 : f32 to vector<256x32xf32>
    %135 = arith.maximumf %133, %134 : vector<256x32xf32>
    %136 = vector.shape_cast %135 : vector<256x32xf32> to vector<32x8x32xf32>
    %cst_69 = arith.constant dense<0.000000e+00> : vector<32x32xf32>
    %137 = vector.multi_reduction <add>, %136, %cst_69 [1] : vector<32x8x32xf32> to vector<32x32xf32>
    %cst_70 = arith.constant 8.000000e+00 : f32
    %138 = vector.broadcast %cst_70 : f32 to vector<32x32xf32>
    %139 = arith.divf %137, %138 : vector<32x32xf32>
    %c0_71 = arith.constant 0 : index
    %c0_72 = arith.constant 0 : index
    %140 = vector.load %arg18[%c0_71, %c0_72] : memref<32x16xf32, #tpu.memory_space<vmem>>, vector<32x16xf32>
    %cst_73 = arith.constant dense<0.000000e+00> : vector<32x16xf32>
    %141 = tpu.matmul %139, %140, %cst_73 {dimension_numbers = #tpu.dot_dimension_numbers<[1], [0], [0], [1], [0, 0, 1, 1], [], []>} : vector<32x32xf32>, vector<32x16xf32>, vector<32x16xf32> -> vector<32x16xf32>
    %c0_74 = arith.constant 0 : index
    %c0_75 = arith.constant 0 : index
    %142 = vector.load %arg19[%c0_74, %c0_75] : memref<1x16xf32, #tpu.memory_space<vmem>>, vector<1x16xf32>
    %143 = vector.broadcast %142 : vector<1x16xf32> to vector<32x16xf32>
    %144 = arith.addf %141, %143 : vector<32x16xf32>
    %cst_76 = arith.constant 0.000000e+00 : f32
    %145 = vector.broadcast %cst_76 : f32 to vector<32x16xf32>
    %146 = arith.maximumf %144, %145 : vector<32x16xf32>
    %c0_77 = arith.constant 0 : index
    %c0_78 = arith.constant 0 : index
    %147 = vector.load %arg20[%c0_77, %c0_78] : memref<32x16xf32, #tpu.memory_space<vmem>>, vector<32x16xf32>
    %148 = arith.subf %146, %147 : vector<32x16xf32>
    %149 = arith.mulf %148, %148 : vector<32x16xf32>
    %cst_79 = arith.constant dense<0.000000e+00> : vector<32xf32>
    %150 = vector.multi_reduction <add>, %149, %cst_79 [1] : vector<32x16xf32> to vector<32xf32>
    %151 = vector.shape_cast %150 : vector<32xf32> to vector<32x1xf32>
    %c0_80 = arith.constant 0 : index
    %c0_81 = arith.constant 0 : index
    %152 = vector.load %arg21[%c0_80, %c0_81] : memref<32x64xf32, #tpu.memory_space<vmem>>, vector<32x32xf32>
    tpu.vector_store %arg21[%c0_80, %c0_81], %139 {strides = array<i32>} : memref<32x64xf32, #tpu.memory_space<vmem>>, vector<32x32xf32>,
    %c0_82 = arith.constant 0 : index
    %c32 = arith.constant 32 : index
    %153 = vector.load %arg21[%c0_82, %c32] : memref<32x64xf32, #tpu.memory_space<vmem>>, vector<32x16xf32>
    tpu.vector_store %arg21[%c0_82, %c32], %146 {strides = array<i32>} : memref<32x64xf32, #tpu.memory_space<vmem>>, vector<32x16xf32>,
    %c0_83 = arith.constant 0 : index
    %c48 = arith.constant 48 : index
    %154 = vector.load %arg21[%c0_83, %c48] : memref<32x64xf32, #tpu.memory_space<vmem>>, vector<32x1xf32>
    tpu.vector_store %arg21[%c0_83, %c48], %151 {strides = array<i32>} : memref<32x64xf32, #tpu.memory_space<vmem>>, vector<32x1xf32>,
    return
  }
  func.func @transform_0(%arg0: i32) -> (i32, i32, i32) {
    %c0_i32 = arith.constant 0 : i32
    %c0_i32_0 = arith.constant 0 : i32
    %c0_i32_1 = arith.constant 0 : i32
    return %arg0, %c0_i32, %c0_i32_0 : i32, i32, i32
  }
  func.func @transform_1(%arg0: i32) -> (i32, i32) {
    %c0_i32 = arith.constant 0 : i32
    %c0_i32_0 = arith.constant 0 : i32
    %c0_i32_1 = arith.constant 0 : i32
    return %c0_i32, %c0_i32_0 : i32, i32
  }
  func.func @transform_2(%arg0: i32) -> (i32, i32) {
    %c0_i32 = arith.constant 0 : i32
    %c0_i32_0 = arith.constant 0 : i32
    %c0_i32_1 = arith.constant 0 : i32
    return %c0_i32, %c0_i32_0 : i32, i32
  }
  func.func @transform_3(%arg0: i32) -> (i32, i32) {
    %c0_i32 = arith.constant 0 : i32
    %c0_i32_0 = arith.constant 0 : i32
    %c0_i32_1 = arith.constant 0 : i32
    return %c0_i32, %c0_i32_0 : i32, i32
  }
  func.func @transform_4(%arg0: i32) -> (i32, i32) {
    %c0_i32 = arith.constant 0 : i32
    %c0_i32_0 = arith.constant 0 : i32
    %c0_i32_1 = arith.constant 0 : i32
    return %c0_i32, %c0_i32_0 : i32, i32
  }
  func.func @transform_5(%arg0: i32) -> (i32, i32) {
    %c0_i32 = arith.constant 0 : i32
    %c0_i32_0 = arith.constant 0 : i32
    %c0_i32_1 = arith.constant 0 : i32
    return %c0_i32, %c0_i32_0 : i32, i32
  }
  func.func @transform_6(%arg0: i32) -> (i32, i32) {
    %c0_i32 = arith.constant 0 : i32
    %c0_i32_0 = arith.constant 0 : i32
    %c0_i32_1 = arith.constant 0 : i32
    return %c0_i32, %c0_i32_0 : i32, i32
  }
  func.func @transform_7(%arg0: i32) -> (i32, i32, i32) {
    %c0_i32 = arith.constant 0 : i32
    %c0_i32_0 = arith.constant 0 : i32
    %c0_i32_1 = arith.constant 0 : i32
    %c0_i32_2 = arith.constant 0 : i32
    return %c0_i32, %c0_i32_0, %c0_i32_1 : i32, i32, i32
  }
  func.func @transform_8(%arg0: i32) -> (i32, i32) {
    %c0_i32 = arith.constant 0 : i32
    %c0_i32_0 = arith.constant 0 : i32
    %c0_i32_1 = arith.constant 0 : i32
    return %c0_i32, %c0_i32_0 : i32, i32
  }
  func.func @transform_9(%arg0: i32) -> (i32, i32) {
    %c0_i32 = arith.constant 0 : i32
    %c0_i32_0 = arith.constant 0 : i32
    %c0_i32_1 = arith.constant 0 : i32
    return %c0_i32, %c0_i32_0 : i32, i32
  }
  func.func @transform_10(%arg0: i32) -> (i32, i32) {
    %c0_i32 = arith.constant 0 : i32
    %c0_i32_0 = arith.constant 0 : i32
    %c0_i32_1 = arith.constant 0 : i32
    return %c0_i32, %c0_i32_0 : i32, i32
  }
  func.func @transform_11(%arg0: i32) -> (i32, i32) {
    %c0_i32 = arith.constant 0 : i32
    %c0_i32_0 = arith.constant 0 : i32
    %c0_i32_1 = arith.constant 0 : i32
    return %c0_i32, %c0_i32_0 : i32, i32
  }
  func.func @transform_12(%arg0: i32) -> (i32, i32) {
    %c0_i32 = arith.constant 0 : i32
    %c0_i32_0 = arith.constant 0 : i32
    %c0_i32_1 = arith.constant 0 : i32
    return %c0_i32, %c0_i32_0 : i32, i32
  }
  func.func @transform_13(%arg0: i32) -> (i32, i32) {
    %c0_i32 = arith.constant 0 : i32
    %c0_i32_0 = arith.constant 0 : i32
    %c0_i32_1 = arith.constant 0 : i32
    return %c0_i32, %c0_i32_0 : i32, i32
  }
  func.func @transform_14(%arg0: i32) -> (i32, i32) {
    %c0_i32 = arith.constant 0 : i32
    %c0_i32_0 = arith.constant 0 : i32
    %c0_i32_1 = arith.constant 0 : i32
    return %c0_i32, %c0_i32_0 : i32, i32
  }
  func.func @transform_15(%arg0: i32) -> (i32, i32) {
    %c0_i32 = arith.constant 0 : i32
    %c0_i32_0 = arith.constant 0 : i32
    %c0_i32_1 = arith.constant 0 : i32
    return %c0_i32, %c0_i32_0 : i32, i32
  }
  func.func @transform_16(%arg0: i32) -> (i32, i32) {
    %c0_i32 = arith.constant 0 : i32
    %c0_i32_0 = arith.constant 0 : i32
    %c0_i32_1 = arith.constant 0 : i32
    return %c0_i32, %c0_i32_0 : i32, i32
  }
  func.func @transform_17(%arg0: i32) -> (i32, i32) {
    %c0_i32 = arith.constant 0 : i32
    %c0_i32_0 = arith.constant 0 : i32
    %c0_i32_1 = arith.constant 0 : i32
    return %c0_i32, %c0_i32_0 : i32, i32
  }
  func.func @transform_18(%arg0: i32) -> (i32, i32) {
    %c0_i32 = arith.constant 0 : i32
    %c0_i32_0 = arith.constant 0 : i32
    %c0_i32_1 = arith.constant 0 : i32
    return %c0_i32, %c0_i32_0 : i32, i32
  }
  func.func @transform_19(%arg0: i32) -> (i32, i32) {
    %c0_i32 = arith.constant 0 : i32
    %c0_i32_0 = arith.constant 0 : i32
    return %arg0, %c0_i32 : i32, i32
  }
  func.func @transform_20(%arg0: i32) -> (i32, i32) {
    %c0_i32 = arith.constant 0 : i32
    %c0_i32_0 = arith.constant 0 : i32
    return %arg0, %c0_i32 : i32, i32
  }
}

</mosaic_0001>

<llo_original>
// kernel: tpu_custom_call.1
$region0: #{tpu_custom_call.1}
  #allocation0 [shape = 'u32[]', space=smem, size = 0x4, offset = 0x4, fixed_abs, tag = 'smem constant byte address 0x4 - core index']
  #allocation1 [shape = 'u32[72,128]{1,0:T(1,128)}', space=vmem, size = 0x9000, scoped, tag = 'internal scratch']
  %s0 = inlined_call_operand.hbm [shape: f32[32,8,32], index: 0, kind: input, shape index: {}]
  %s1 = inlined_call_operand.vmem [shape: f32[8,32], index: 1, kind: input, shape index: {}]
  %s2 = inlined_call_operand.hbm [shape: f32[256,256], index: 2, kind: input, shape index: {}]
  %s3 = inlined_call_operand.vmem [shape: f32[1,32], index: 3, kind: input, shape index: {}]
  %s4 = inlined_call_operand.vmem [shape: f32[1,32], index: 4, kind: input, shape index: {}]
  %s5 = inlined_call_operand.vmem [shape: f32[32,96], index: 5, kind: input, shape index: {}]
  %s6 = inlined_call_operand.vmem [shape: f32[1,96], index: 6, kind: input, shape index: {}]
  %s7 = inlined_call_operand.vmem [shape: f32[2,16,32], index: 7, kind: input, shape index: {}]
  %s8 = inlined_call_operand.vmem [shape: f32[1,32], index: 8, kind: input, shape index: {}]
  %s9 = inlined_call_operand.vmem [shape: f32[1,32], index: 9, kind: input, shape index: {}]
  %s10 = inlined_call_operand.vmem [shape: f32[1,32], index: 10, kind: input, shape index: {}]
  %s11 = inlined_call_operand.vmem [shape: f32[32,64], index: 11, kind: input, shape index: {}]
  %s12 = inlined_call_operand.vmem [shape: f32[1,64], index: 12, kind: input, shape index: {}]
  %s13 = inlined_call_operand.vmem [shape: f32[64,32], index: 13, kind: input, shape index: {}]
  %s14 = inlined_call_operand.vmem [shape: f32[1,32], index: 14, kind: input, shape index: {}]
  %s15 = inlined_call_operand.vmem [shape: f32[1,32], index: 15, kind: input, shape index: {}]
  %s16 = inlined_call_operand.vmem [shape: f32[1,32], index: 16, kind: input, shape index: {}]
  %s17 = inlined_call_operand.vmem [shape: f32[32,16], index: 17, kind: input, shape index: {}]
  %s18 = inlined_call_operand.vmem [shape: f32[1,16], index: 18, kind: input, shape index: {}]
  %s19 = inlined_call_operand.vmem [shape: f32[32,16], index: 19, kind: input, shape index: {}]
  %s20 = inlined_call_operand.hbm [shape: f32[32,64], index: 20, kind: output, shape index: {}]
  %s21 = sld [smem:[#allocation0]]
  $region98: #{tpu_custom_call.1} parent=0
    _
  %s23 = ssub.s32 1, %s21
  %s24 = scalar_select 0, %s23, %s21
  $region1: #{tpu_custom_call.1} parent=0
    #allocation2 [shape = 'u8[131072]{0}', space=vmem, size = 0x20000, scoped, tag = 'input window, operand 0, single buffered']
    #allocation3 [shape = 's32[1]{0}', space=sflag, size = 0x4, scoped, tag = 'scoped memory for tpu_custom_call.1']
    #allocation4 [shape = 's32[1]{0}', space=sflag, size = 0x4, scoped, tag = 'scoped memory for tpu_custom_call.1']
    #allocation5 [shape = 'u8[262144]{0}', space=vmem, size = 0x40000, scoped, tag = 'input window, operand 2, single buffered']
    #allocation6 [shape = 's32[1]{0}', space=sflag, size = 0x4, scoped, tag = 'scoped memory for tpu_custom_call.1']
    #allocation7 [shape = 'u8[16384]{0}', space=vmem, size = 0x4000, scoped, tag = 'output window, operand 0, single buffered']
    %25 = vsyncpa [#allocation3], 0
    %26 = vsyncpa [#allocation6], 0
    %27 = vsyncpa [#allocation4], 0
    // Predicated region
    $region2: #{tpu_custom_call.1} parent=1 // pred_check
      _
    $region3: #{tpu_custom_call.1} parent=1 // pred_check_branch
      %29 = sbr.rel (0) target = $region5
    $region4: #{tpu_custom_call.1} parent=1 // pred_region
      %31 = vsyncadd [#allocation3], 0
      %s32 = sshll.u32 %s0, 4
      %s33 = int_to_ptr.hbm [resolvable:$true] %s32
      %s34 = sshll.u32 [#allocation2], 4
      %s35 = int_to_ptr.vmem [resolvable:$true] %s34
      %40 = dma.hbm_to_vmem [thread:$0]  %s33, 4096, %s35, [#allocation3], 128, 128, 8
    $region5: #{tpu_custom_call.1} parent=1 // pred_fallthru
      _
    // Predicated region
    $region6: #{tpu_custom_call.1} parent=1 // pred_check
      _
    $region7: #{tpu_custom_call.1} parent=1 // pred_check_branch
      %42 = sbr.rel (0) target = $region9
    $region8: #{tpu_custom_call.1} parent=1 // pred_region
      _
    $region9: #{tpu_custom_call.1} parent=1 // pred_fallthru
      _
    // Predicated region
    $region10: #{tpu_custom_call.1} parent=1 // pred_check
      _
    $region11: #{tpu_custom_call.1} parent=1 // pred_check_branch
      %44 = sbr.rel (0) target = $region13
    $region12: #{tpu_custom_call.1} parent=1 // pred_region
      %46 = vsyncadd [#allocation6], 0
      %s47 = sshll.u32 %s2, 4
      %s48 = int_to_ptr.hbm [resolvable:$true] %s47
      %s49 = sshll.u32 [#allocation5], 4
      %s50 = int_to_ptr.vmem [resolvable:$true] %s49
      %55 = dma.hbm_to_vmem [thread:$0]  %s48, 8192, %s50, [#allocation6], 256, 256, 16
    $region13: #{tpu_custom_call.1} parent=1 // pred_fallthru
      _
    // Predicated region
    $region14: #{tpu_custom_call.1} parent=1 // pred_check
      _
    $region15: #{tpu_custom_call.1} parent=1 // pred_check_branch
      %57 = sbr.rel (0) target = $region17
    $region16: #{tpu_custom_call.1} parent=1 // pred_region
      _
    $region17: #{tpu_custom_call.1} parent=1 // pred_fallthru
      _
    // Predicated region
    $region18: #{tpu_custom_call.1} parent=1 // pred_check
      _
    $region19: #{tpu_custom_call.1} parent=1 // pred_check_branch
      %59 = sbr.rel (0) target = $region21
    $region20: #{tpu_custom_call.1} parent=1 // pred_region
      _
    $region21: #{tpu_custom_call.1} parent=1 // pred_fallthru
      _
    // Predicated region
    $region22: #{tpu_custom_call.1} parent=1 // pred_check
      _
    $region23: #{tpu_custom_call.1} parent=1 // pred_check_branch
      %61 = sbr.rel (0) target = $region25
    $region24: #{tpu_custom_call.1} parent=1 // pred_region
      _
    $region25: #{tpu_custom_call.1} parent=1 // pred_fallthru
      _
    // Predicated region
    $region26: #{tpu_custom_call.1} parent=1 // pred_check
      _
    $region27: #{tpu_custom_call.1} parent=1 // pred_check_branch
      %63 = sbr.rel (0) target = $region29
    $region28: #{tpu_custom_call.1} parent=1 // pred_region
      _
    $region29: #{tpu_custom_call.1} parent=1 // pred_fallthru
      _
    // Predicated region
    $region30: #{tpu_custom_call.1} parent=1 // pred_check
      _
    $region31: #{tpu_custom_call.1} parent=1 // pred_check_branch
      %65 = sbr.rel (0) target = $region33
    $region32: #{tpu_custom_call.1} parent=1 // pred_region
      _
    $region33: #{tpu_custom_call.1} parent=1 // pred_fallthru
      _
    // Predicated region
    $region34: #{tpu_custom_call.1} parent=1 // pred_check
      _
    $region35: #{tpu_custom_call.1} parent=1 // pred_check_branch
      %67 = sbr.rel (0) target = $region37
    $region36: #{tpu_custom_call.1} parent=1 // pred_region
      _
    $region37: #{tpu_custom_call.1} parent=1 // pred_fallthru
      _
    // Predicated region
    $region38: #{tpu_custom_call.1} parent=1 // pred_check
      _
    $region39: #{tpu_custom_call.1} parent=1 // pred_check_branch
      %69 = sbr.rel (0) target = $region41
    $region40: #{tpu_custom_call.1} parent=1 // pred_region
      _
    $region41: #{tpu_custom_call.1} parent=1 // pred_fallthru
      _
    // Predicated region
    $region42: #{tpu_custom_call.1} parent=1 // pred_check
      _
    $region43: #{tpu_custom_call.1} parent=1 // pred_check_branch
      %71 = sbr.rel (0) target = $region45
    $region44: #{tpu_custom_call.1} parent=1 // pred_region
      _
    $region45: #{tpu_custom_call.1} parent=1 // pred_fallthru
      _
    // Predicated region
    $region46: #{tpu_custom_call.1} parent=1 // pred_check
      _
    $region47: #{tpu_custom_call.1} parent=1 // pred_check_branch
      %73 = sbr.rel (0) target = $region49
    $region48: #{tpu_custom_call.1} parent=1 // pred_region
      _
    $region49: #{tpu_custom_call.1} parent=1 // pred_fallthru
      _
    // Predicated region
    $region50: #{tpu_custom_call.1} parent=1 // pred_check
      _
    $region51: #{tpu_custom_call.1} parent=1 // pred_check_branch
      %75 = sbr.rel (0) target = $region53
    $region52: #{tpu_custom_call.1} parent=1 // pred_region
      _
    $region53: #{tpu_custom_call.1} parent=1 // pred_fallthru
      _
    // Predicated region
    $region54: #{tpu_custom_call.1} parent=1 // pred_check
      _
    $region55: #{tpu_custom_call.1} parent=1 // pred_check_branch
      %77 = sbr.rel (0) target = $region57
    $region56: #{tpu_custom_call.1} parent=1 // pred_region
      _
    $region57: #{tpu_custom_call.1} parent=1 // pred_fallthru
      _
    // Predicated region
    $region58: #{tpu_custom_call.1} parent=1 // pred_check
      _
    $region59: #{tpu_custom_call.1} parent=1 // pred_check_branch
      %79 = sbr.rel (0) target = $region61
    $region60: #{tpu_custom_call.1} parent=1 // pred_region
      _
    $region61: #{tpu_custom_call.1} parent=1 // pred_fallthru
      _
    // Predicated region
    $region62: #{tpu_custom_call.1} parent=1 // pred_check
      _
    $region63: #{tpu_custom_call.1} parent=1 // pred_check_branch
      %81 = sbr.rel (0) target = $region65
    $region64: #{tpu_custom_call.1} parent=1 // pred_region
      _
    $region65: #{tpu_custom_call.1} parent=1 // pred_fallthru
      _
    // Predicated region
    $region66: #{tpu_custom_call.1} parent=1 // pred_check
      _
    $region67: #{tpu_custom_call.1} parent=1 // pred_check_branch
      %83 = sbr.rel (0) target = $region69
    $region68: #{tpu_custom_call.1} parent=1 // pred_region
      _
    $region69: #{tpu_custom_call.1} parent=1 // pred_fallthru
      _
    // Predicated region
    $region70: #{tpu_custom_call.1} parent=1 // pred_check
      _
    $region71: #{tpu_custom_call.1} parent=1 // pred_check_branch
      %85 = sbr.rel (0) target = $region73
    $region72: #{tpu_custom_call.1} parent=1 // pred_region
      _
    $region73: #{tpu_custom_call.1} parent=1 // pred_fallthru
      _
    // Predicated region
    $region74: #{tpu_custom_call.1} parent=1 // pred_check
      _
    $region75: #{tpu_custom_call.1} parent=1 // pred_check_branch
      %87 = sbr.rel (0) target = $region77
    $region76: #{tpu_custom_call.1} parent=1 // pred_region
      _
    $region77: #{tpu_custom_call.1} parent=1 // pred_fallthru
      _
    // Predicated region
    $region78: #{tpu_custom_call.1} parent=1 // pred_check
      _
    $region79: #{tpu_custom_call.1} parent=1 // pred_check_branch
      %89 = sbr.rel (0) target = $region81
    $region80: #{tpu_custom_call.1} parent=1 // pred_region
      _
    $region81: #{tpu_custom_call.1} parent=1 // pred_fallthru
      _
    // Predicated region
    $region82: #{tpu_custom_call.1} parent=1 // pred_check
      _
    $region83: #{tpu_custom_call.1} parent=1 // pred_check_branch
      %91 = sbr.rel (0) target = $region85
    $region84: #{tpu_custom_call.1} parent=1 // pred_region
      %93 = dma.done [#allocation3], 4096
    $region85: #{tpu_custom_call.1} parent=1 // pred_fallthru
      _
    // Predicated region
    $region86: #{tpu_custom_call.1} parent=1 // pred_check
      _
    $region87: #{tpu_custom_call.1} parent=1 // pred_check_branch
      %95 = sbr.rel (0) target = $region89
    $region88: #{tpu_custom_call.1} parent=1 // pred_region
      %97 = dma.done [#allocation6], 8192
    $region89: #{tpu_custom_call.1} parent=1 // pred_fallthru
      _
    %v98 = vld [vmem:[#allocation2] sm:$0xff]
    %v99 = vld [vmem:[#allocation2 + $0x8] sm:$0xff]
    %v100 = vld [vmem:[#allocation2 + $0x10] sm:$0xff]
    %v101 = vld [vmem:[#allocation2 + $0x18] sm:$0xff]
    %v102 = vld [vmem:[#allocation2 + $0x20] sm:$0xff]
    %v103 = vld [vmem:[#allocation2 + $0x28] sm:$0xff]
    %v104 = vld [vmem:[#allocation2 + $0x30] sm:$0xff]
    %v105 = vld [vmem:[#allocation2 + $0x38] sm:$0xff]
    %v106 = vld [vmem:[#allocation2 + $0x40] sm:$0xff]
    %v107 = vld [vmem:[#allocation2 + $0x48] sm:$0xff]
    %v108 = vld [vmem:[#allocation2 + $0x50] sm:$0xff]
    %v109 = vld [vmem:[#allocation2 + $0x58] sm:$0xff]
    %v110 = vld [vmem:[#allocation2 + $0x60] sm:$0xff]
    %v111 = vld [vmem:[#allocation2 + $0x68] sm:$0xff]
    %v112 = vld [vmem:[#allocation2 + $0x70] sm:$0xff]
    %v113 = vld [vmem:[#allocation2 + $0x78] sm:$0xff]
    %v114 = vld [vmem:[#allocation2 + $0x80] sm:$0xff]
    %v115 = vld [vmem:[#allocation2 + $0x88] sm:$0xff]
    %v116 = vld [vmem:[#allocation2 + $0x90] sm:$0xff]
    %v117 = vld [vmem:[#allocation2 + $0x98] sm:$0xff]
    %v118 = vld [vmem:[#allocation2 + $0xa0] sm:$0xff]
    %v119 = vld [vmem:[#allocation2 + $0xa8] sm:$0xff]
    %v120 = vld [vmem:[#allocation2 + $0xb0] sm:$0xff]
    %v121 = vld [vmem:[#allocation2 + $0xb8] sm:$0xff]
    %v122 = vld [vmem:[#allocation2 + $0xc0] sm:$0xff]
    %v123 = vld [vmem:[#allocation2 + $0xc8] sm:$0xff]
    %v124 = vld [vmem:[#allocation2 + $0xd0] sm:$0xff]
    %v125 = vld [vmem:[#allocation2 + $0xd8] sm:$0xff]
    %v126 = vld [vmem:[#allocation2 + $0xe0] sm:$0xff]
    %v127 = vld [vmem:[#allocation2 + $0xe8] sm:$0xff]
    %v128 = vld [vmem:[#allocation2 + $0xf0] sm:$0xff]
    %v129 = vld [vmem:[#allocation2 + $0xf8] sm:$0xff]
    %v130 = vld [vmem:[%s1] sm:$0xff]
    %v131 = vadd.f32 %v98, %v130
    %v132 = vadd.f32 %v99, %v130
    %v133 = vadd.f32 %v100, %v130
    %v134 = vadd.f32 %v101, %v130
    %v135 = vadd.f32 %v102, %v130
    %v136 = vadd.f32 %v103, %v130
    %v137 = vadd.f32 %v104, %v130
    %v138 = vadd.f32 %v105, %v130
    %v139 = vadd.f32 %v106, %v130
    %v140 = vadd.f32 %v107, %v130
    %v141 = vadd.f32 %v108, %v130
    %v142 = vadd.f32 %v109, %v130
    %v143 = vadd.f32 %v110, %v130
    %v144 = vadd.f32 %v111, %v130
    %v145 = vadd.f32 %v112, %v130
    %v146 = vadd.f32 %v113, %v130
    %v147 = vadd.f32 %v114, %v130
    %v148 = vadd.f32 %v115, %v130
    %v149 = vadd.f32 %v116, %v130
    %v150 = vadd.f32 %v117, %v130
    %v151 = vadd.f32 %v118, %v130
    %v152 = vadd.f32 %v119, %v130
    %v153 = vadd.f32 %v120, %v130
    %v154 = vadd.f32 %v121, %v130
    %v155 = vadd.f32 %v122, %v130
    %v156 = vadd.f32 %v123, %v130
    %v157 = vadd.f32 %v124, %v130
    %v158 = vadd.f32 %v125, %v130
    %v159 = vadd.f32 %v126, %v130
    %v160 = vadd.f32 %v127, %v130
    %v161 = vadd.f32 %v128, %v130
    %v162 = vadd.f32 %v129, %v130
    %v163 = vmax.f32 %v131, 0.0
    %v164 = vmax.f32 %v132, 0.0
    %v165 = vmax.f32 %v133, 0.0
    %v166 = vmax.f32 %v134, 0.0
    %v167 = vmax.f32 %v135, 0.0
    %v168 = vmax.f32 %v136, 0.0
    %v169 = vmax.f32 %v137, 0.0
    %v170 = vmax.f32 %v138, 0.0
    %v171 = vmax.f32 %v139, 0.0
    %v172 = vmax.f32 %v140, 0.0
    %v173 = vmax.f32 %v141, 0.0
    %v174 = vmax.f32 %v142, 0.0
    %v175 = vmax.f32 %v143, 0.0
    %v176 = vmax.f32 %v144, 0.0
    %v177 = vmax.f32 %v145, 0.0
    %v178 = vmax.f32 %v146, 0.0
    %v179 = vmax.f32 %v147, 0.0
    %v180 = vmax.f32 %v148, 0.0
    %v181 = vmax.f32 %v149, 0.0
    %v182 = vmax.f32 %v150, 0.0
    %v183 = vmax.f32 %v151, 0.0
    %v184 = vmax.f32 %v152, 0.0
    %v185 = vmax.f32 %v153, 0.0
    %v186 = vmax.f32 %v154, 0.0
    %v187 = vmax.f32 %v155, 0.0
    %v188 = vmax.f32 %v156, 0.0
    %v189 = vmax.f32 %v157, 0.0
    %v190 = vmax.f32 %v158, 0.0
    %v191 = vmax.f32 %v159, 0.0
    %v192 = vmax.f32 %v160, 0.0
    %v193 = vmax.f32 %v161, 0.0
    %v194 = vmax.f32 %v162, 0.0
    %v195 = vld [vmem:[%s3] sm:$0x1]
    %v196 = vld [vmem:[%s4] sm:$0x1]
    %vm197 = vcmask 261120
    %v198 = vsel %vm197, %v163, 0.0
    %199 = vadd.xlane.f32.xlu0 %v198
    %v200 = vpop.xlane.xlu0 %199
    %v201 = vsel %vm197, %v164, 0.0
    %202 = vadd.xlane.f32.xlu0 %v201
    %v203 = vpop.xlane.xlu0 %202
    %v204 = vsel %vm197, %v165, 0.0
    %205 = vadd.xlane.f32.xlu0 %v204
    %v206 = vpop.xlane.xlu0 %205
    %v207 = vsel %vm197, %v166, 0.0
    %208 = vadd.xlane.f32.xlu0 %v207
    %v209 = vpop.xlane.xlu0 %208
    %v210 = vsel %vm197, %v167, 0.0
    %211 = vadd.xlane.f32.xlu0 %v210
    %v212 = vpop.xlane.xlu0 %211
    %v213 = vsel %vm197, %v168, 0.0
    %214 = vadd.xlane.f32.xlu0 %v213
    %v215 = vpop.xlane.xlu0 %214
    %v216 = vsel %vm197, %v169, 0.0
    %217 = vadd.xlane.f32.xlu0 %v216
    %v218 = vpop.xlane.xlu0 %217
    %v219 = vsel %vm197, %v170, 0.0
    %220 = vadd.xlane.f32.xlu0 %v219
    %v221 = vpop.xlane.xlu0 %220
    %v222 = vsel %vm197, %v171, 0.0
    %223 = vadd.xlane.f32.xlu0 %v222
    %v224 = vpop.xlane.xlu0 %223
    %v225 = vsel %vm197, %v172, 0.0
    %226 = vadd.xlane.f32.xlu0 %v225
    %v227 = vpop.xlane.xlu0 %226
    %v228 = vsel %vm197, %v173, 0.0
    %229 = vadd.xlane.f32.xlu0 %v228
    %v230 = vpop.xlane.xlu0 %229
    %v231 = vsel %vm197, %v174, 0.0
    %232 = vadd.xlane.f32.xlu0 %v231
    %v233 = vpop.xlane.xlu0 %232
    %v234 = vsel %vm197, %v175, 0.0
    %235 = vadd.xlane.f32.xlu0 %v234
    %v236 = vpop.xlane.xlu0 %235
    %v237 = vsel %vm197, %v176, 0.0
    %238 = vadd.xlane.f32.xlu0 %v237
    %v239 = vpop.xlane.xlu0 %238
    %v240 = vsel %vm197, %v177, 0.0
    %241 = vadd.xlane.f32.xlu0 %v240
    %v242 = vpop.xlane.xlu0 %241
    %v243 = vsel %vm197, %v178, 0.0
    %244 = vadd.xlane.f32.xlu0 %v243
    %v245 = vpop.xlane.xlu0 %244
    %v246 = vsel %vm197, %v179, 0.0
    %247 = vadd.xlane.f32.xlu0 %v246
    %v248 = vpop.xlane.xlu0 %247
    %v249 = vsel %vm197, %v180, 0.0
    %250 = vadd.xlane.f32.xlu0 %v249
    %v251 = vpop.xlane.xlu0 %250
    %v252 = vsel %vm197, %v181, 0.0
    %253 = vadd.xlane.f32.xlu0 %v252
    %v254 = vpop.xlane.xlu0 %253
    %v255 = vsel %vm197, %v182, 0.0
    %256 = vadd.xlane.f32.xlu0 %v255
    %v257 = vpop.xlane.xlu0 %256
    %v258 = vsel %vm197, %v183, 0.0
    %259 = vadd.xlane.f32.xlu0 %v258
    %v260 = vpop.xlane.xlu0 %259
    %v261 = vsel %vm197, %v184, 0.0
    %262 = vadd.xlane.f32.xlu0 %v261
    %v263 = vpop.xlane.xlu0 %262
    %v264 = vsel %vm197, %v185, 0.0
    %265 = vadd.xlane.f32.xlu0 %v264
    %v266 = vpop.xlane.xlu0 %265
    %v267 = vsel %vm197, %v186, 0.0
    %268 = vadd.xlane.f32.xlu0 %v267
    %v269 = vpop.xlane.xlu0 %268
    %v270 = vsel %vm197, %v187, 0.0
    %271 = vadd.xlane.f32.xlu0 %v270
    %v272 = vpop.xlane.xlu0 %271
    %v273 = vsel %vm197, %v188, 0.0
    %274 = vadd.xlane.f32.xlu0 %v273
    %v275 = vpop.xlane.xlu0 %274
    %v276 = vsel %vm197, %v189, 0.0
    %277 = vadd.xlane.f32.xlu0 %v276
    %v278 = vpop.xlane.xlu0 %277
    %v279 = vsel %vm197, %v190, 0.0
    %280 = vadd.xlane.f32.xlu0 %v279
    %v281 = vpop.xlane.xlu0 %280
    %v282 = vsel %vm197, %v191, 0.0
    %283 = vadd.xlane.f32.xlu0 %v282
    %v284 = vpop.xlane.xlu0 %283
    %v285 = vsel %vm197, %v192, 0.0
    %286 = vadd.xlane.f32.xlu0 %v285
    %v287 = vpop.xlane.xlu0 %286
    %v288 = vsel %vm197, %v193, 0.0
    %289 = vadd.xlane.f32.xlu0 %v288
    %v290 = vpop.xlane.xlu0 %289
    %v291 = vsel %vm197, %v194, 0.0
    %292 = vadd.xlane.f32.xlu0 %v291
    %v293 = vpop.xlane.xlu0 %292
    %v294 = vmul.f32 %v200, 0.03125
    %v295 = vmul.f32 %v203, 0.03125
    %v296 = vmul.f32 %v206, 0.03125
    %v297 = vmul.f32 %v209, 0.03125
    %v298 = vmul.f32 %v212, 0.03125
    %v299 = vmul.f32 %v215, 0.03125
    %v300 = vmul.f32 %v218, 0.03125
    %v301 = vmul.f32 %v221, 0.03125
    %v302 = vmul.f32 %v224, 0.03125
    %v303 = vmul.f32 %v227, 0.03125
    %v304 = vmul.f32 %v230, 0.03125
    %v305 = vmul.f32 %v233, 0.03125
    %v306 = vmul.f32 %v236, 0.03125
    %v307 = vmul.f32 %v239, 0.03125
    %v308 = vmul.f32 %v242, 0.03125
    %v309 = vmul.f32 %v245, 0.03125
    %v310 = vmul.f32 %v248, 0.03125
    %v311 = vmul.f32 %v251, 0.03125
    %v312 = vmul.f32 %v254, 0.03125
    %v313 = vmul.f32 %v257, 0.03125
    %v314 = vmul.f32 %v260, 0.03125
    %v315 = vmul.f32 %v263, 0.03125
    %v316 = vmul.f32 %v266, 0.03125
    %v317 = vmul.f32 %v269, 0.03125
    %v318 = vmul.f32 %v272, 0.03125
    %v319 = vmul.f32 %v275, 0.03125
    %v320 = vmul.f32 %v278, 0.03125
    %v321 = vmul.f32 %v281, 0.03125
    %v322 = vmul.f32 %v284, 0.03125
    %v323 = vmul.f32 %v287, 0.03125
    %v324 = vmul.f32 %v290, 0.03125
    %v325 = vmul.f32 %v293, 0.03125
    %v326 = vmul.f32 %v163, %v163
    %v327 = vmul.f32 %v164, %v164
    %v328 = vmul.f32 %v165, %v165
    %v329 = vmul.f32 %v166, %v166
    %v330 = vmul.f32 %v167, %v167
    %v331 = vmul.f32 %v168, %v168
    %v332 = vmul.f32 %v169, %v169
    %v333 = vmul.f32 %v170, %v170
    %v334 = vmul.f32 %v171, %v171
    %v335 = vmul.f32 %v172, %v172
    %v336 = vmul.f32 %v173, %v173
    %v337 = vmul.f32 %v174, %v174
    %v338 = vmul.f32 %v175, %v175
    %v339 = vmul.f32 %v176, %v176
    %v340 = vmul.f32 %v177, %v177
    %v341 = vmul.f32 %v178, %v178
    %v342 = vmul.f32 %v179, %v179
    %v343 = vmul.f32 %v180, %v180
    %v344 = vmul.f32 %v181, %v181
    %v345 = vmul.f32 %v182, %v182
    %v346 = vmul.f32 %v183, %v183
    %v347 = vmul.f32 %v184, %v184
    %v348 = vmul.f32 %v185, %v185
    %v349 = vmul.f32 %v186, %v186
    %v350 = vmul.f32 %v187, %v187
    %v351 = vmul.f32 %v188, %v188
    %v352 = vmul.f32 %v189, %v189
    %v353 = vmul.f32 %v190, %v190
    %v354 = vmul.f32 %v191, %v191
    %v355 = vmul.f32 %v192, %v192
    %v356 = vmul.f32 %v193, %v193
    %v357 = vmul.f32 %v194, %v194
    %v358 = vsel %vm197, %v326, 0.0
    %359 = vadd.xlane.f32.xlu0 %v358
    %v360 = vpop.xlane.xlu0 %359
    %v361 = vsel %vm197, %v327, 0.0
    %362 = vadd.xlane.f32.xlu0 %v361
    %v363 = vpop.xlane.xlu0 %362
    %v364 = vsel %vm197, %v328, 0.0
    %365 = vadd.xlane.f32.xlu0 %v364
    %v366 = vpop.xlane.xlu0 %365
    %v367 = vsel %vm197, %v329, 0.0
    %368 = vadd.xlane.f32.xlu0 %v367
    %v369 = vpop.xlane.xlu0 %368
    %v370 = vsel %vm197, %v330, 0.0
    %371 = vadd.xlane.f32.xlu0 %v370
    %v372 = vpop.xlane.xlu0 %371
    %v373 = vsel %vm197, %v331, 0.0
    %374 = vadd.xlane.f32.xlu0 %v373
    %v375 = vpop.xlane.xlu0 %374
    %v376 = vsel %vm197, %v332, 0.0
    %377 = vadd.xlane.f32.xlu0 %v376
    %v378 = vpop.xlane.xlu0 %377
    %v379 = vsel %vm197, %v333, 0.0
    %380 = vadd.xlane.f32.xlu0 %v379
    %v381 = vpop.xlane.xlu0 %380
    %v382 = vsel %vm197, %v334, 0.0
    %383 = vadd.xlane.f32.xlu0 %v382
    %v384 = vpop.xlane.xlu0 %383
    %v385 = vsel %vm197, %v335, 0.0
    %386 = vadd.xlane.f32.xlu0 %v385
    %v387 = vpop.xlane.xlu0 %386
    %v388 = vsel %vm197, %v336, 0.0
    %389 = vadd.xlane.f32.xlu0 %v388
    %v390 = vpop.xlane.xlu0 %389
    %v391 = vsel %vm197, %v337, 0.0
    %392 = vadd.xlane.f32.xlu0 %v391
    %v393 = vpop.xlane.xlu0 %392
    %v394 = vsel %vm197, %v338, 0.0
    %395 = vadd.xlane.f32.xlu0 %v394
    %v396 = vpop.xlane.xlu0 %395
    %v397 = vsel %vm197, %v339, 0.0
    %398 = vadd.xlane.f32.xlu0 %v397
    %v399 = vpop.xlane.xlu0 %398
    %v400 = vsel %vm197, %v340, 0.0
    %401 = vadd.xlane.f32.xlu0 %v400
    %v402 = vpop.xlane.xlu0 %401
    %v403 = vsel %vm197, %v341, 0.0
    %404 = vadd.xlane.f32.xlu0 %v403
    %v405 = vpop.xlane.xlu0 %404
    %v406 = vsel %vm197, %v342, 0.0
    %407 = vadd.xlane.f32.xlu0 %v406
    %v408 = vpop.xlane.xlu0 %407
    %v409 = vsel %vm197, %v343, 0.0
    %410 = vadd.xlane.f32.xlu0 %v409
    %v411 = vpop.xlane.xlu0 %410
    %v412 = vsel %vm197, %v344, 0.0
    %413 = vadd.xlane.f32.xlu0 %v412
    %v414 = vpop.xlane.xlu0 %413
    %v415 = vsel %vm197, %v345, 0.0
    %416 = vadd.xlane.f32.xlu0 %v415
    %v417 = vpop.xlane.xlu0 %416
    %v418 = vsel %vm197, %v346, 0.0
    %419 = vadd.xlane.f32.xlu0 %v418
    %v420 = vpop.xlane.xlu0 %419
    %v421 = vsel %vm197, %v347, 0.0
    %422 = vadd.xlane.f32.xlu0 %v421
    %v423 = vpop.xlane.xlu0 %422
    %v424 = vsel %vm197, %v348, 0.0
    %425 = vadd.xlane.f32.xlu0 %v424
    %v426 = vpop.xlane.xlu0 %425
    %v427 = vsel %vm197, %v349, 0.0
    %428 = vadd.xlane.f32.xlu0 %v427
    %v429 = vpop.xlane.xlu0 %428
    %v430 = vsel %vm197, %v350, 0.0
    %431 = vadd.xlane.f32.xlu0 %v430
    %v432 = vpop.xlane.xlu0 %431
    %v433 = vsel %vm197, %v351, 0.0
    %434 = vadd.xlane.f32.xlu0 %v433
    %v435 = vpop.xlane.xlu0 %434
    %v436 = vsel %vm197, %v352, 0.0
    %437 = vadd.xlane.f32.xlu0 %v436
    %v438 = vpop.xlane.xlu0 %437
    %v439 = vsel %vm197, %v353, 0.0
    %440 = vadd.xlane.f32.xlu0 %v439
    %v441 = vpop.xlane.xlu0 %440
    %v442 = vsel %vm197, %v354, 0.0
    %443 = vadd.xlane.f32.xlu0 %v442
    %v444 = vpop.xlane.xlu0 %443
    %v445 = vsel %vm197, %v355, 0.0
    %446 = vadd.xlane.f32.xlu0 %v445
    %v447 = vpop.xlane.xlu0 %446
    %v448 = vsel %vm197, %v356, 0.0
    %449 = vadd.xlane.f32.xlu0 %v448
    %v450 = vpop.xlane.xlu0 %449
    %v451 = vsel %vm197, %v357, 0.0
    %452 = vadd.xlane.f32.xlu0 %v451
    %v453 = vpop.xlane.xlu0 %452
    %v454 = vmul.f32 %v360, 0.03125
    %v455 = vmul.f32 %v363, 0.03125
    %v456 = vmul.f32 %v366, 0.03125
    %v457 = vmul.f32 %v369, 0.03125
    %v458 = vmul.f32 %v372, 0.03125
    %v459 = vmul.f32 %v375, 0.03125
    %v460 = vmul.f32 %v378, 0.03125
    %v461 = vmul.f32 %v381, 0.03125
    %v462 = vmul.f32 %v384, 0.03125
    %v463 = vmul.f32 %v387, 0.03125
    %v464 = vmul.f32 %v390, 0.03125
    %v465 = vmul.f32 %v393, 0.03125
    %v466 = vmul.f32 %v396, 0.03125
    %v467 = vmul.f32 %v399, 0.03125
    %v468 = vmul.f32 %v402, 0.03125
    %v469 = vmul.f32 %v405, 0.03125
    %v470 = vmul.f32 %v408, 0.03125
    %v471 = vmul.f32 %v411, 0.03125
    %v472 = vmul.f32 %v414, 0.03125
    %v473 = vmul.f32 %v417, 0.03125
    %v474 = vmul.f32 %v420, 0.03125
    %v475 = vmul.f32 %v423, 0.03125
    %v476 = vmul.f32 %v426, 0.03125
    %v477 = vmul.f32 %v429, 0.03125
    %v478 = vmul.f32 %v432, 0.03125
    %v479 = vmul.f32 %v435, 0.03125
    %v480 = vmul.f32 %v438, 0.03125
    %v481 = vmul.f32 %v441, 0.03125
    %v482 = vmul.f32 %v444, 0.03125
    %v483 = vmul.f32 %v447, 0.03125
    %v484 = vmul.f32 %v450, 0.03125
    %v485 = vmul.f32 %v453, 0.03125
    %v486 = vmul.f32 %v294, %v294
    %v487 = vmul.f32 %v295, %v295
    %v488 = vmul.f32 %v296, %v296
    %v489 = vmul.f32 %v297, %v297
    %v490 = vmul.f32 %v298, %v298
    %v491 = vmul.f32 %v299, %v299
    %v492 = vmul.f32 %v300, %v300
    %v493 = vmul.f32 %v301, %v301
    %v494 = vmul.f32 %v302, %v302
    %v495 = vmul.f32 %v303, %v303
    %v496 = vmul.f32 %v304, %v304
    %v497 = vmul.f32 %v305, %v305
    %v498 = vmul.f32 %v306, %v306
    %v499 = vmul.f32 %v307, %v307
    %v500 = vmul.f32 %v308, %v308
    %v501 = vmul.f32 %v309, %v309
    %v502 = vmul.f32 %v310, %v310
    %v503 = vmul.f32 %v311, %v311
    %v504 = vmul.f32 %v312, %v312
    %v505 = vmul.f32 %v313, %v313
    %v506 = vmul.f32 %v314, %v314
    %v507 = vmul.f32 %v315, %v315
    %v508 = vmul.f32 %v316, %v316
    %v509 = vmul.f32 %v317, %v317
    %v510 = vmul.f32 %v318, %v318
    %v511 = vmul.f32 %v319, %v319
    %v512 = vmul.f32 %v320, %v320
    %v513 = vmul.f32 %v321, %v321
    %v514 = vmul.f32 %v322, %v322
    %v515 = vmul.f32 %v323, %v323
    %v516 = vmul.f32 %v324, %v324
    %v517 = vmul.f32 %v325, %v325
    %v518 = vsub.f32 %v454, %v486
    %v519 = vsub.f32 %v455, %v487
    %v520 = vsub.f32 %v456, %v488
    %v521 = vsub.f32 %v457, %v489
    %v522 = vsub.f32 %v458, %v490
    %v523 = vsub.f32 %v459, %v491
    %v524 = vsub.f32 %v460, %v492
    %v525 = vsub.f32 %v461, %v493
    %v526 = vsub.f32 %v462, %v494
    %v527 = vsub.f32 %v463, %v495
    %v528 = vsub.f32 %v464, %v496
    %v529 = vsub.f32 %v465, %v497
    %v530 = vsub.f32 %v466, %v498
    %v531 = vsub.f32 %v467, %v499
    %v532 = vsub.f32 %v468, %v500
    %v533 = vsub.f32 %v469, %v501
    %v534 = vsub.f32 %v470, %v502
    %v535 = vsub.f32 %v471, %v503
    %v536 = vsub.f32 %v472, %v504
    %v537 = vsub.f32 %v473, %v505
    %v538 = vsub.f32 %v474, %v506
    %v539 = vsub.f32 %v475, %v507
    %v540 = vsub.f32 %v476, %v508
    %v541 = vsub.f32 %v477, %v509
    %v542 = vsub.f32 %v478, %v510
    %v543 = vsub.f32 %v479, %v511
    %v544 = vsub.f32 %v480, %v512
    %v545 = vsub.f32 %v481, %v513
    %v546 = vsub.f32 %v482, %v514
    %v547 = vsub.f32 %v483, %v515
    %v548 = vsub.f32 %v484, %v516
    %v549 = vsub.f32 %v485, %v517
    %v550 = vsub.f32 %v163, %v294
    %v551 = vsub.f32 %v164, %v295
    %v552 = vsub.f32 %v165, %v296
    %v553 = vsub.f32 %v166, %v297
    %v554 = vsub.f32 %v167, %v298
    %v555 = vsub.f32 %v168, %v299
    %v556 = vsub.f32 %v169, %v300
    %v557 = vsub.f32 %v170, %v301
    %v558 = vsub.f32 %v171, %v302
    %v559 = vsub.f32 %v172, %v303
    %v560 = vsub.f32 %v173, %v304
    %v561 = vsub.f32 %v174, %v305
    %v562 = vsub.f32 %v175, %v306
    %v563 = vsub.f32 %v176, %v307
    %v564 = vsub.f32 %v177, %v308
    %v565 = vsub.f32 %v178, %v309
    %v566 = vsub.f32 %v179, %v310
    %v567 = vsub.f32 %v180, %v311
    %v568 = vsub.f32 %v181, %v312
    %v569 = vsub.f32 %v182, %v313
    %v570 = vsub.f32 %v183, %v314
    %v571 = vsub.f32 %v184, %v315
    %v572 = vsub.f32 %v185, %v316
    %v573 = vsub.f32 %v186, %v317
    %v574 = vsub.f32 %v187, %v318
    %v575 = vsub.f32 %v188, %v319
    %v576 = vsub.f32 %v189, %v320
    %v577 = vsub.f32 %v190, %v321
    %v578 = vsub.f32 %v191, %v322
    %v579 = vsub.f32 %v192, %v323
    %v580 = vsub.f32 %v193, %v324
    %v581 = vsub.f32 %v194, %v325
    %v582 = vadd.f32 %v518, 1e-05
    %v583 = vadd.f32 %v519, 1e-05
    %v584 = vadd.f32 %v520, 1e-05
    %v585 = vadd.f32 %v521, 1e-05
    %v586 = vadd.f32 %v522, 1e-05
    %v587 = vadd.f32 %v523, 1e-05
    %v588 = vadd.f32 %v524, 1e-05
    %v589 = vadd.f32 %v525, 1e-05
    %v590 = vadd.f32 %v526, 1e-05
    %v591 = vadd.f32 %v527, 1e-05
    %v592 = vadd.f32 %v528, 1e-05
    %v593 = vadd.f32 %v529, 1e-05
    %v594 = vadd.f32 %v530, 1e-05
    %v595 = vadd.f32 %v531, 1e-05
    %v596 = vadd.f32 %v532, 1e-05
    %v597 = vadd.f32 %v533, 1e-05
    %v598 = vadd.f32 %v534, 1e-05
    %v599 = vadd.f32 %v535, 1e-05
    %v600 = vadd.f32 %v536, 1e-05
    %v601 = vadd.f32 %v537, 1e-05
    %v602 = vadd.f32 %v538, 1e-05
    %v603 = vadd.f32 %v539, 1e-05
    %v604 = vadd.f32 %v540, 1e-05
    %v605 = vadd.f32 %v541, 1e-05
    %v606 = vadd.f32 %v542, 1e-05
    %v607 = vadd.f32 %v543, 1e-05
    %v608 = vadd.f32 %v544, 1e-05
    %v609 = vadd.f32 %v545, 1e-05
    %v610 = vadd.f32 %v546, 1e-05
    %v611 = vadd.f32 %v547, 1e-05
    %v612 = vadd.f32 %v548, 1e-05
    %v613 = vadd.f32 %v549, 1e-05
    %v614 = vrsqrt.pop %v582
    %v615 = vmul.f32 %v614, %v582
    %v616 = vmul.f32 %v615, %v614
    %v617 = vmul.f32 0.5, %v616
    %v618 = vsub.f32 1.5, %v617
    %v619 = vmul.f32 %v614, %v618
    %vm620 = vweird.f32 %v582
    %vm621 = vweird.f32 %v614
    %vm622 = vmor %vm620, %vm621
    %v623 = vsel %vm622, %v614, %v619
    %v624 = vrsqrt.pop %v583
    %v625 = vmul.f32 %v624, %v583
    %v626 = vmul.f32 %v625, %v624
    %v627 = vmul.f32 0.5, %v626
    %v628 = vsub.f32 1.5, %v627
    %v629 = vmul.f32 %v624, %v628
    %vm630 = vweird.f32 %v583
    %vm631 = vweird.f32 %v624
    %vm632 = vmor %vm630, %vm631
    %v633 = vsel %vm632, %v624, %v629
    %v634 = vrsqrt.pop %v584
    %v635 = vmul.f32 %v634, %v584
    %v636 = vmul.f32 %v635, %v634
    %v637 = vmul.f32 0.5, %v636
    %v638 = vsub.f32 1.5, %v637
    %v639 = vmul.f32 %v634, %v638
    %vm640 = vweird.f32 %v584
    %vm641 = vweird.f32 %v634
    %vm642 = vmor %vm640, %vm641
    %v643 = vsel %vm642, %v634, %v639
    %v644 = vrsqrt.pop %v585
    %v645 = vmul.f32 %v644, %v585
    %v646 = vmul.f32 %v645, %v644
    %v647 = vmul.f32 0.5, %v646
    %v648 = vsub.f32 1.5, %v647
    %v649 = vmul.f32 %v644, %v648
    %vm650 = vweird.f32 %v585
    %vm651 = vweird.f32 %v644
    %vm652 = vmor %vm650, %vm651
    %v653 = vsel %vm652, %v644, %v649
    %v654 = vrsqrt.pop %v586
    %v655 = vmul.f32 %v654, %v586
    %v656 = vmul.f32 %v655, %v654
    %v657 = vmul.f32 0.5, %v656
    %v658 = vsub.f32 1.5, %v657
    %v659 = vmul.f32 %v654, %v658
    %vm660 = vweird.f32 %v586
    %vm661 = vweird.f32 %v654
    %vm662 = vmor %vm660, %vm661
    %v663 = vsel %vm662, %v654, %v659
    %v664 = vrsqrt.pop %v587
    %v665 = vmul.f32 %v664, %v587
    %v666 = vmul.f32 %v665, %v664
    %v667 = vmul.f32 0.5, %v666
    %v668 = vsub.f32 1.5, %v667
    %v669 = vmul.f32 %v664, %v668
    %vm670 = vweird.f32 %v587
    %vm671 = vweird.f32 %v664
    %vm672 = vmor %vm670, %vm671
    %v673 = vsel %vm672, %v664, %v669
    %v674 = vrsqrt.pop %v588
    %v675 = vmul.f32 %v674, %v588
    %v676 = vmul.f32 %v675, %v674
    %v677 = vmul.f32 0.5, %v676
    %v678 = vsub.f32 1.5, %v677
    %v679 = vmul.f32 %v674, %v678
    %vm680 = vweird.f32 %v588
    %vm681 = vweird.f32 %v674
    %vm682 = vmor %vm680, %vm681
    %v683 = vsel %vm682, %v674, %v679
    %v684 = vrsqrt.pop %v589
    %v685 = vmul.f32 %v684, %v589
    %v686 = vmul.f32 %v685, %v684
    %v687 = vmul.f32 0.5, %v686
    %v688 = vsub.f32 1.5, %v687
    %v689 = vmul.f32 %v684, %v688
    %vm690 = vweird.f32 %v589
    %vm691 = vweird.f32 %v684
    %vm692 = vmor %vm690, %vm691
    %v693 = vsel %vm692, %v684, %v689
    %v694 = vrsqrt.pop %v590
    %v695 = vmul.f32 %v694, %v590
    %v696 = vmul.f32 %v695, %v694
    %v697 = vmul.f32 0.5, %v696
    %v698 = vsub.f32 1.5, %v697
    %v699 = vmul.f32 %v694, %v698
    %vm700 = vweird.f32 %v590
    %vm701 = vweird.f32 %v694
    %vm702 = vmor %vm700, %vm701
    %v703 = vsel %vm702, %v694, %v699
    %v704 = vrsqrt.pop %v591
    %v705 = vmul.f32 %v704, %v591
    %v706 = vmul.f32 %v705, %v704
    %v707 = vmul.f32 0.5, %v706
    %v708 = vsub.f32 1.5, %v707
    %v709 = vmul.f32 %v704, %v708
    %vm710 = vweird.f32 %v591
    %vm711 = vweird.f32 %v704
    %vm712 = vmor %vm710, %vm711
    %v713 = vsel %vm712, %v704, %v709
    %v714 = vrsqrt.pop %v592
    %v715 = vmul.f32 %v714, %v592
    %v716 = vmul.f32 %v715, %v714
    %v717 = vmul.f32 0.5, %v716
    %v718 = vsub.f32 1.5, %v717
    %v719 = vmul.f32 %v714, %v718
    %vm720 = vweird.f32 %v592
    %vm721 = vweird.f32 %v714
    %vm722 = vmor %vm720, %vm721
    %v723 = vsel %vm722, %v714, %v719
    %v724 = vrsqrt.pop %v593
    %v725 = vmul.f32 %v724, %v593
    %v726 = vmul.f32 %v725, %v724
    %v727 = vmul.f32 0.5, %v726
    %v728 = vsub.f32 1.5, %v727
    %v729 = vmul.f32 %v724, %v728
    %vm730 = vweird.f32 %v593
    %vm731 = vweird.f32 %v724
    %vm732 = vmor %vm730, %vm731
    %v733 = vsel %vm732, %v724, %v729
    %v734 = vrsqrt.pop %v594
    %v735 = vmul.f32 %v734, %v594
    %v736 = vmul.f32 %v735, %v734
    %v737 = vmul.f32 0.5, %v736
    %v738 = vsub.f32 1.5, %v737
    %v739 = vmul.f32 %v734, %v738
    %vm740 = vweird.f32 %v594
    %vm741 = vweird.f32 %v734
    %vm742 = vmor %vm740, %vm741
    %v743 = vsel %vm742, %v734, %v739
    %v744 = vrsqrt.pop %v595
    %v745 = vmul.f32 %v744, %v595
    %v746 = vmul.f32 %v745, %v744
    %v747 = vmul.f32 0.5, %v746
    %v748 = vsub.f32 1.5, %v747
    %v749 = vmul.f32 %v744, %v748
    %vm750 = vweird.f32 %v595
    %vm751 = vweird.f32 %v744
    %vm752 = vmor %vm750, %vm751
    %v753 = vsel %vm752, %v744, %v749
    %v754 = vrsqrt.pop %v596
    %v755 = vmul.f32 %v754, %v596
    %v756 = vmul.f32 %v755, %v754
    %v757 = vmul.f32 0.5, %v756
    %v758 = vsub.f32 1.5, %v757
    %v759 = vmul.f32 %v754, %v758
    %vm760 = vweird.f32 %v596
    %vm761 = vweird.f32 %v754
    %vm762 = vmor %vm760, %vm761
    %v763 = vsel %vm762, %v754, %v759
    %v764 = vrsqrt.pop %v597
    %v765 = vmul.f32 %v764, %v597
    %v766 = vmul.f32 %v765, %v764
    %v767 = vmul.f32 0.5, %v766
    %v768 = vsub.f32 1.5, %v767
    %v769 = vmul.f32 %v764, %v768
    %vm770 = vweird.f32 %v597
    %vm771 = vweird.f32 %v764
    %vm772 = vmor %vm770, %vm771
    %v773 = vsel %vm772, %v764, %v769
    %v774 = vrsqrt.pop %v598
    %v775 = vmul.f32 %v774, %v598
    %v776 = vmul.f32 %v775, %v774
    %v777 = vmul.f32 0.5, %v776
    %v778 = vsub.f32 1.5, %v777
    %v779 = vmul.f32 %v774, %v778
    %vm780 = vweird.f32 %v598
    %vm781 = vweird.f32 %v774
    %vm782 = vmor %vm780, %vm781
    %v783 = vsel %vm782, %v774, %v779
    %v784 = vrsqrt.pop %v599
    %v785 = vmul.f32 %v784, %v599
    %v786 = vmul.f32 %v785, %v784
    %v787 = vmul.f32 0.5, %v786
    %v788 = vsub.f32 1.5, %v787
    %v789 = vmul.f32 %v784, %v788
    %vm790 = vweird.f32 %v599
    %vm791 = vweird.f32 %v784
    %vm792 = vmor %vm790, %vm791
    %v793 = vsel %vm792, %v784, %v789
    %v794 = vrsqrt.pop %v600
    %v795 = vmul.f32 %v794, %v600
    %v796 = vmul.f32 %v795, %v794
    %v797 = vmul.f32 0.5, %v796
    %v798 = vsub.f32 1.5, %v797
    %v799 = vmul.f32 %v794, %v798
    %vm800 = vweird.f32 %v600
    %vm801 = vweird.f32 %v794
    %vm802 = vmor %vm800, %vm801
    %v803 = vsel %vm802, %v794, %v799
    %v804 = vrsqrt.pop %v601
    %v805 = vmul.f32 %v804, %v601
    %v806 = vmul.f32 %v805, %v804
    %v807 = vmul.f32 0.5, %v806
    %v808 = vsub.f32 1.5, %v807
    %v809 = vmul.f32 %v804, %v808
    %vm810 = vweird.f32 %v601
    %vm811 = vweird.f32 %v804
    %vm812 = vmor %vm810, %vm811
    %v813 = vsel %vm812, %v804, %v809
    %v814 = vrsqrt.pop %v602
    %v815 = vmul.f32 %v814, %v602
    %v816 = vmul.f32 %v815, %v814
    %v817 = vmul.f32 0.5, %v816
    %v818 = vsub.f32 1.5, %v817
    %v819 = vmul.f32 %v814, %v818
    %vm820 = vweird.f32 %v602
    %vm821 = vweird.f32 %v814
    %vm822 = vmor %vm820, %vm821
    %v823 = vsel %vm822, %v814, %v819
    %v824 = vrsqrt.pop %v603
    %v825 = vmul.f32 %v824, %v603
    %v826 = vmul.f32 %v825, %v824
    %v827 = vmul.f32 0.5, %v826
    %v828 = vsub.f32 1.5, %v827
    %v829 = vmul.f32 %v824, %v828
    %vm830 = vweird.f32 %v603
    %vm831 = vweird.f32 %v824
    %vm832 = vmor %vm830, %vm831
    %v833 = vsel %vm832, %v824, %v829
    %v834 = vrsqrt.pop %v604
    %v835 = vmul.f32 %v834, %v604
    %v836 = vmul.f32 %v835, %v834
    %v837 = vmul.f32 0.5, %v836
    %v838 = vsub.f32 1.5, %v837
    %v839 = vmul.f32 %v834, %v838
    %vm840 = vweird.f32 %v604
    %vm841 = vweird.f32 %v834
    %vm842 = vmor %vm840, %vm841
    %v843 = vsel %vm842, %v834, %v839
    %v844 = vrsqrt.pop %v605
    %v845 = vmul.f32 %v844, %v605
    %v846 = vmul.f32 %v845, %v844
    %v847 = vmul.f32 0.5, %v846
    %v848 = vsub.f32 1.5, %v847
    %v849 = vmul.f32 %v844, %v848
    %vm850 = vweird.f32 %v605
    %vm851 = vweird.f32 %v844
    %vm852 = vmor %vm850, %vm851
    %v853 = vsel %vm852, %v844, %v849
    %v854 = vrsqrt.pop %v606
    %v855 = vmul.f32 %v854, %v606
    %v856 = vmul.f32 %v855, %v854
    %v857 = vmul.f32 0.5, %v856
    %v858 = vsub.f32 1.5, %v857
    %v859 = vmul.f32 %v854, %v858
    %vm860 = vweird.f32 %v606
    %vm861 = vweird.f32 %v854
    %vm862 = vmor %vm860, %vm861
    %v863 = vsel %vm862, %v854, %v859
    %v864 = vrsqrt.pop %v607
    %v865 = vmul.f32 %v864, %v607
    %v866 = vmul.f32 %v865, %v864
    %v867 = vmul.f32 0.5, %v866
    %v868 = vsub.f32 1.5, %v867
    %v869 = vmul.f32 %v864, %v868
    %vm870 = vweird.f32 %v607
    %vm871 = vweird.f32 %v864
    %vm872 = vmor %vm870, %vm871
    %v873 = vsel %vm872, %v864, %v869
    %v874 = vrsqrt.pop %v608
    %v875 = vmul.f32 %v874, %v608
    %v876 = vmul.f32 %v875, %v874
    %v877 = vmul.f32 0.5, %v876
    %v878 = vsub.f32 1.5, %v877
    %v879 = vmul.f32 %v874, %v878
    %vm880 = vweird.f32 %v608
    %vm881 = vweird.f32 %v874
    %vm882 = vmor %vm880, %vm881
    %v883 = vsel %vm882, %v874, %v879
    %v884 = vrsqrt.pop %v609
    %v885 = vmul.f32 %v884, %v609
    %v886 = vmul.f32 %v885, %v884
    %v887 = vmul.f32 0.5, %v886
    %v888 = vsub.f32 1.5, %v887
    %v889 = vmul.f32 %v884, %v888
    %vm890 = vweird.f32 %v609
    %vm891 = vweird.f32 %v884
    %vm892 = vmor %vm890, %vm891
    %v893 = vsel %vm892, %v884, %v889
    %v894 = vrsqrt.pop %v610
    %v895 = vmul.f32 %v894, %v610
    %v896 = vmul.f32 %v895, %v894
    %v897 = vmul.f32 0.5, %v896
    %v898 = vsub.f32 1.5, %v897
    %v899 = vmul.f32 %v894, %v898
    %vm900 = vweird.f32 %v610
    %vm901 = vweird.f32 %v894
    %vm902 = vmor %vm900, %vm901
    %v903 = vsel %vm902, %v894, %v899
    %v904 = vrsqrt.pop %v611
    %v905 = vmul.f32 %v904, %v611
    %v906 = vmul.f32 %v905, %v904
    %v907 = vmul.f32 0.5, %v906
    %v908 = vsub.f32 1.5, %v907
    %v909 = vmul.f32 %v904, %v908
    %vm910 = vweird.f32 %v611
    %vm911 = vweird.f32 %v904
    %vm912 = vmor %vm910, %vm911
    %v913 = vsel %vm912, %v904, %v909
    %v914 = vrsqrt.pop %v612
    %v915 = vmul.f32 %v914, %v612
    %v916 = vmul.f32 %v915, %v914
    %v917 = vmul.f32 0.5, %v916
    %v918 = vsub.f32 1.5, %v917
    %v919 = vmul.f32 %v914, %v918
    %vm920 = vweird.f32 %v612
    %vm921 = vweird.f32 %v914
    %vm922 = vmor %vm920, %vm921
    %v923 = vsel %vm922, %v914, %v919
    %v924 = vrsqrt.pop %v613
    %v925 = vmul.f32 %v924, %v613
    %v926 = vmul.f32 %v925, %v924
    %v927 = vmul.f32 0.5, %v926
    %v928 = vsub.f32 1.5, %v927
    %v929 = vmul.f32 %v924, %v928
    %vm930 = vweird.f32 %v613
    %vm931 = vweird.f32 %v924
    %vm932 = vmor %vm930, %vm931
    %v933 = vsel %vm932, %v924, %v929
    %v934 = vmul.f32 %v550, %v623
    %v935 = vmul.f32 %v551, %v633
    %v936 = vmul.f32 %v552, %v643
    %v937 = vmul.f32 %v553, %v653
    %v938 = vmul.f32 %v554, %v663
    %v939 = vmul.f32 %v555, %v673
    %v940 = vmul.f32 %v556, %v683
    %v941 = vmul.f32 %v557, %v693
    %v942 = vmul.f32 %v558, %v703
    %v943 = vmul.f32 %v559, %v713
    %v944 = vmul.f32 %v560, %v723
    %v945 = vmul.f32 %v561, %v733
    %v946 = vmul.f32 %v562, %v743
    %v947 = vmul.f32 %v563, %v753
    %v948 = vmul.f32 %v564, %v763
    %v949 = vmul.f32 %v565, %v773
    %v950 = vmul.f32 %v566, %v783
    %v951 = vmul.f32 %v567, %v793
    %v952 = vmul.f32 %v568, %v803
    %v953 = vmul.f32 %v569, %v813
    %v954 = vmul.f32 %v570, %v823
    %v955 = vmul.f32 %v571, %v833
    %v956 = vmul.f32 %v572, %v843
    %v957 = vmul.f32 %v573, %v853
    %v958 = vmul.f32 %v574, %v863
    %v959 = vmul.f32 %v575, %v873
    %v960 = vmul.f32 %v576, %v883
    %v961 = vmul.f32 %v577, %v893
    %v962 = vmul.f32 %v578, %v903
    %v963 = vmul.f32 %v579, %v913
    %v964 = vmul.f32 %v580, %v923
    %v965 = vmul.f32 %v581, %v933
    %v967 = vperm.slane %v195, 0
    %v969 = vmul.f32 %v934, %v967
    %v970 = vmul.f32 %v935, %v967
    %v971 = vmul.f32 %v936, %v967
    %v972 = vmul.f32 %v937, %v967
    %v973 = vmul.f32 %v938, %v967
    %v974 = vmul.f32 %v939, %v967
    %v975 = vmul.f32 %v940, %v967
    %v976 = vmul.f32 %v941, %v967
    %v977 = vmul.f32 %v942, %v967
    %v978 = vmul.f32 %v943, %v967
    %v979 = vmul.f32 %v944, %v967
    %v980 = vmul.f32 %v945, %v967
    %v981 = vmul.f32 %v946, %v967
    %v982 = vmul.f32 %v947, %v967
    %v983 = vmul.f32 %v948, %v967
    %v984 = vmul.f32 %v949, %v967
    %v985 = vmul.f32 %v950, %v967
    %v986 = vmul.f32 %v951, %v967
    %v987 = vmul.f32 %v952, %v967
    %v988 = vmul.f32 %v953, %v967
    %v989 = vmul.f32 %v954, %v967
    %v990 = vmul.f32 %v955, %v967
    %v991 = vmul.f32 %v956, %v967
    %v992 = vmul.f32 %v957, %v967
    %v993 = vmul.f32 %v958, %v967
    %v994 = vmul.f32 %v959, %v967
    %v995 = vmul.f32 %v960, %v967
    %v996 = vmul.f32 %v961, %v967
    %v997 = vmul.f32 %v962, %v967
    %v998 = vmul.f32 %v963, %v967
    %v999 = vmul.f32 %v964, %v967
    %v1000 = vmul.f32 %v965, %v967
    %v1002 = vperm.slane %v196, 0
    %v1004 = vadd.f32 %v969, %v1002
    %v1005 = vadd.f32 %v970, %v1002
    %v1006 = vadd.f32 %v971, %v1002
    %v1007 = vadd.f32 %v972, %v1002
    %v1008 = vadd.f32 %v973, %v1002
    %v1009 = vadd.f32 %v974, %v1002
    %v1010 = vadd.f32 %v975, %v1002
    %v1011 = vadd.f32 %v976, %v1002
    %v1012 = vadd.f32 %v977, %v1002
    %v1013 = vadd.f32 %v978, %v1002
    %v1014 = vadd.f32 %v979, %v1002
    %v1015 = vadd.f32 %v980, %v1002
    %v1016 = vadd.f32 %v981, %v1002
    %v1017 = vadd.f32 %v982, %v1002
    %v1018 = vadd.f32 %v983, %v1002
    %v1019 = vadd.f32 %v984, %v1002
    %v1020 = vadd.f32 %v985, %v1002
    %v1021 = vadd.f32 %v986, %v1002
    %v1022 = vadd.f32 %v987, %v1002
    %v1023 = vadd.f32 %v988, %v1002
    %v1024 = vadd.f32 %v989, %v1002
    %v1025 = vadd.f32 %v990, %v1002
    %v1026 = vadd.f32 %v991, %v1002
    %v1027 = vadd.f32 %v992, %v1002
    %v1028 = vadd.f32 %v993, %v1002
    %v1029 = vadd.f32 %v994, %v1002
    %v1030 = vadd.f32 %v995, %v1002
    %v1031 = vadd.f32 %v996, %v1002
    %v1032 = vadd.f32 %v997, %v1002
    %v1033 = vadd.f32 %v998, %v1002
    %v1034 = vadd.f32 %v999, %v1002
    %v1035 = vadd.f32 %v1000, %v1002
    %v1036 = vld [vmem:[%s5] sm:$0xff]
    %v1037 = vld [vmem:[%s5 + $0x8] sm:$0xff]
    %v1038 = vld [vmem:[%s5 + $0x10] sm:$0xff]
    %v1039 = vld [vmem:[%s5 + $0x18] sm:$0xff]
    %v1040 = vld [vmem:[%s6] sm:$0x1]
    %v1042 = vperm.slane %v1040, 0
    %v1045 = vsel %vm197, %v1004, 0
    %v1048 = vsel %vm197, %v1005, 0
    %v1051 = vsel %vm197, %v1006, 0
    %v1054 = vsel %vm197, %v1007, 0
    %v1057 = vsel %vm197, %v1008, 0
    %v1060 = vsel %vm197, %v1009, 0
    %v1063 = vsel %vm197, %v1010, 0
    %v1066 = vsel %vm197, %v1011, 0
    %v1069 = vsel %vm197, %v1012, 0
    %v1072 = vsel %vm197, %v1013, 0
    %v1075 = vsel %vm197, %v1014, 0
    %v1078 = vsel %vm197, %v1015, 0
    %v1081 = vsel %vm197, %v1016, 0
    %v1084 = vsel %vm197, %v1017, 0
    %v1087 = vsel %vm197, %v1018, 0
    %v1090 = vsel %vm197, %v1019, 0
    %v1093 = vsel %vm197, %v1020, 0
    %v1096 = vsel %vm197, %v1021, 0
    %v1099 = vsel %vm197, %v1022, 0
    %v1102 = vsel %vm197, %v1023, 0
    %v1105 = vsel %vm197, %v1024, 0
    %v1108 = vsel %vm197, %v1025, 0
    %v1111 = vsel %vm197, %v1026, 0
    %v1114 = vsel %vm197, %v1027, 0
    %v1117 = vsel %vm197, %v1028, 0
    %v1120 = vsel %vm197, %v1029, 0
    %v1123 = vsel %vm197, %v1030, 0
    %v1126 = vsel %vm197, %v1031, 0
    %v1129 = vsel %vm197, %v1032, 0
    %v1132 = vsel %vm197, %v1033, 0
    %v1135 = vsel %vm197, %v1034, 0
    %v1138 = vsel %vm197, %v1035, 0
    %1140 = vmatpush.msra.mxu0 0.0
    %1141 = vmatpush.msra.mxu0 0.0
    %1142 = vmatpush.msra.mxu0 0.0
    %1143 = vmatpush.msra.mxu0 0.0
    %1144 = vmatpush.msra.mxu0 0.0
    %1145 = vmatpush.msra.mxu0 0.0
    %1146 = vmatpush.msra.mxu0 0.0
    %1147 = vmatpush.msra.mxu0 0.0
    %1148 = vmatpush.msra.mxu0 0.0
    %1149 = vmatpush.msra.mxu0 0.0
    %1150 = vmatpush.msra.mxu0 0.0
    %1151 = vmatpush.msra.mxu0 0.0
    %1152 = vmatpush.msra.mxu0 %v1039
    %1153 = vmatpush.msra.mxu0 %v1038
    %1154 = vmatpush.msra.mxu0 %v1037
    %1155 = vmatpush.msra.mxu0 %v1036
    %1156 = vmatmul.f32.gmra.mxu0 %v1045
    %v1157 = vpop.f32.mrf.mxu0
    %v1158 = vadd.f32 %v1042, %v1157
    %1159 = vmatmul.f32.gmra.mxu0 %v1048
    %v1160 = vpop.f32.mrf.mxu0
    %v1161 = vadd.f32 %v1042, %v1160
    %1162 = vmatmul.f32.gmra.mxu0 %v1051
    %v1163 = vpop.f32.mrf.mxu0
    %v1164 = vadd.f32 %v1042, %v1163
    %1165 = vmatmul.f32.gmra.mxu0 %v1054
    %v1166 = vpop.f32.mrf.mxu0
    %v1167 = vadd.f32 %v1042, %v1166
    %1168 = vmatmul.f32.gmra.mxu0 %v1057
    %v1169 = vpop.f32.mrf.mxu0
    %v1170 = vadd.f32 %v1042, %v1169
    %1171 = vmatmul.f32.gmra.mxu0 %v1060
    %v1172 = vpop.f32.mrf.mxu0
    %v1173 = vadd.f32 %v1042, %v1172
    %1174 = vmatmul.f32.gmra.mxu0 %v1063
    %v1175 = vpop.f32.mrf.mxu0
    %v1176 = vadd.f32 %v1042, %v1175
    %1177 = vmatmul.f32.gmra.mxu0 %v1066
    %v1178 = vpop.f32.mrf.mxu0
    %v1179 = vadd.f32 %v1042, %v1178
    %1180 = vmatmul.f32.gmra.mxu0 %v1069
    %v1181 = vpop.f32.mrf.mxu0
    %v1182 = vadd.f32 %v1042, %v1181
    %1183 = vmatmul.f32.gmra.mxu0 %v1072
    %v1184 = vpop.f32.mrf.mxu0
    %v1185 = vadd.f32 %v1042, %v1184
    %1186 = vmatmul.f32.gmra.mxu0 %v1075
    %v1187 = vpop.f32.mrf.mxu0
    %v1188 = vadd.f32 %v1042, %v1187
    %1189 = vmatmul.f32.gmra.mxu0 %v1078
    %v1190 = vpop.f32.mrf.mxu0
    %v1191 = vadd.f32 %v1042, %v1190
    %1192 = vmatmul.f32.gmra.mxu0 %v1081
    %v1193 = vpop.f32.mrf.mxu0
    %v1194 = vadd.f32 %v1042, %v1193
    %1195 = vmatmul.f32.gmra.mxu0 %v1084
    %v1196 = vpop.f32.mrf.mxu0
    %v1197 = vadd.f32 %v1042, %v1196
    %1198 = vmatmul.f32.gmra.mxu0 %v1087
    %v1199 = vpop.f32.mrf.mxu0
    %v1200 = vadd.f32 %v1042, %v1199
    %1201 = vmatmul.f32.gmra.mxu0 %v1090
    %v1202 = vpop.f32.mrf.mxu0
    %v1203 = vadd.f32 %v1042, %v1202
    %1204 = vmatmul.f32.gmra.mxu0 %v1093
    %v1205 = vpop.f32.mrf.mxu0
    %v1206 = vadd.f32 %v1042, %v1205
    %1207 = vmatmul.f32.gmra.mxu0 %v1096
    %v1208 = vpop.f32.mrf.mxu0
    %v1209 = vadd.f32 %v1042, %v1208
    %1210 = vmatmul.f32.gmra.mxu0 %v1099
    %v1211 = vpop.f32.mrf.mxu0
    %v1212 = vadd.f32 %v1042, %v1211
    %1213 = vmatmul.f32.gmra.mxu0 %v1102
    %v1214 = vpop.f32.mrf.mxu0
    %v1215 = vadd.f32 %v1042, %v1214
    %1216 = vmatmul.f32.gmra.mxu0 %v1105
    %v1217 = vpop.f32.mrf.mxu0
    %v1218 = vadd.f32 %v1042, %v1217
    %1219 = vmatmul.f32.gmra.mxu0 %v1108
    %v1220 = vpop.f32.mrf.mxu0
    %v1221 = vadd.f32 %v1042, %v1220
    %1222 = vmatmul.f32.gmra.mxu0 %v1111
    %v1223 = vpop.f32.mrf.mxu0
    %v1224 = vadd.f32 %v1042, %v1223
    %1225 = vmatmul.f32.gmra.mxu0 %v1114
    %v1226 = vpop.f32.mrf.mxu0
    %v1227 = vadd.f32 %v1042, %v1226
    %1228 = vmatmul.f32.gmra.mxu0 %v1117
    %v1229 = vpop.f32.mrf.mxu0
    %v1230 = vadd.f32 %v1042, %v1229
    %1231 = vmatmul.f32.gmra.mxu0 %v1120
    %v1232 = vpop.f32.mrf.mxu0
    %v1233 = vadd.f32 %v1042, %v1232
    %1234 = vmatmul.f32.gmra.mxu0 %v1123
    %v1235 = vpop.f32.mrf.mxu0
    %v1236 = vadd.f32 %v1042, %v1235
    %1237 = vmatmul.f32.gmra.mxu0 %v1126
    %v1238 = vpop.f32.mrf.mxu0
    %v1239 = vadd.f32 %v1042, %v1238
    %1240 = vmatmul.f32.gmra.mxu0 %v1129
    %v1241 = vpop.f32.mrf.mxu0
    %v1242 = vadd.f32 %v1042, %v1241
    %1243 = vmatmul.f32.gmra.mxu0 %v1132
    %v1244 = vpop.f32.mrf.mxu0
    %v1245 = vadd.f32 %v1042, %v1244
    %1246 = vmatmul.f32.gmra.mxu0 %v1135
    %v1247 = vpop.f32.mrf.mxu0
    %v1248 = vadd.f32 %v1042, %v1247
    %1249 = vmatmul.f32.gmra.mxu0 %v1138
    %v1250 = vpop.f32.mrf.mxu0
    %v1251 = vadd.f32 %v1042, %v1250
    %1252 = vdwg.mxu0
    %v1253 = vmax.f32 %v1158, 0.0
    %v1254 = vmax.f32 %v1161, 0.0
    %v1255 = vmax.f32 %v1164, 0.0
    %v1256 = vmax.f32 %v1167, 0.0
    %v1257 = vmax.f32 %v1170, 0.0
    %v1258 = vmax.f32 %v1173, 0.0
    %v1259 = vmax.f32 %v1176, 0.0
    %v1260 = vmax.f32 %v1179, 0.0
    %v1261 = vmax.f32 %v1182, 0.0
    %v1262 = vmax.f32 %v1185, 0.0
    %v1263 = vmax.f32 %v1188, 0.0
    %v1264 = vmax.f32 %v1191, 0.0
    %v1265 = vmax.f32 %v1194, 0.0
    %v1266 = vmax.f32 %v1197, 0.0
    %v1267 = vmax.f32 %v1200, 0.0
    %v1268 = vmax.f32 %v1203, 0.0
    %v1269 = vmax.f32 %v1206, 0.0
    %v1270 = vmax.f32 %v1209, 0.0
    %v1271 = vmax.f32 %v1212, 0.0
    %v1272 = vmax.f32 %v1215, 0.0
    %v1273 = vmax.f32 %v1218, 0.0
    %v1274 = vmax.f32 %v1221, 0.0
    %v1275 = vmax.f32 %v1224, 0.0
    %v1276 = vmax.f32 %v1227, 0.0
    %v1277 = vmax.f32 %v1230, 0.0
    %v1278 = vmax.f32 %v1233, 0.0
    %v1279 = vmax.f32 %v1236, 0.0
    %v1280 = vmax.f32 %v1239, 0.0
    %v1281 = vmax.f32 %v1242, 0.0
    %v1282 = vmax.f32 %v1245, 0.0
    %v1283 = vmax.f32 %v1248, 0.0
    %v1284 = vmax.f32 %v1251, 0.0
    %v1285 = vld [vmem:[#allocation5] sm:$0xff]
    %v1286 = vld [vmem:[#allocation5 + $0x8] sm:$0xff]
    %v1287 = vld [vmem:[#allocation5 + $0x10] sm:$0xff]
    %v1288 = vld [vmem:[#allocation5 + $0x18] sm:$0xff]
    %v1289 = vld [vmem:[#allocation5 + $0x20] sm:$0xff]
    %v1290 = vld [vmem:[#allocation5 + $0x28] sm:$0xff]
    %v1291 = vld [vmem:[#allocation5 + $0x30] sm:$0xff]
    %v1292 = vld [vmem:[#allocation5 + $0x38] sm:$0xff]
    %v1293 = vld [vmem:[#allocation5 + $0x40] sm:$0xff]
    %v1294 = vld [vmem:[#allocation5 + $0x48] sm:$0xff]
    %v1295 = vld [vmem:[#allocation5 + $0x50] sm:$0xff]
    %v1296 = vld [vmem:[#allocation5 + $0x58] sm:$0xff]
    %v1297 = vld [vmem:[#allocation5 + $0x60] sm:$0xff]
    %v1298 = vld [vmem:[#allocation5 + $0x68] sm:$0xff]
    %v1299 = vld [vmem:[#allocation5 + $0x70] sm:$0xff]
    %v1300 = vld [vmem:[#allocation5 + $0x78] sm:$0xff]
    %v1301 = vld [vmem:[#allocation5 + $0x80] sm:$0xff]
    %v1302 = vld [vmem:[#allocation5 + $0x88] sm:$0xff]
    %v1303 = vld [vmem:[#allocation5 + $0x90] sm:$0xff]
    %v1304 = vld [vmem:[#allocation5 + $0x98] sm:$0xff]
    %v1305 = vld [vmem:[#allocation5 + $0xa0] sm:$0xff]
    %v1306 = vld [vmem:[#allocation5 + $0xa8] sm:$0xff]
    %v1307 = vld [vmem:[#allocation5 + $0xb0] sm:$0xff]
    %v1308 = vld [vmem:[#allocation5 + $0xb8] sm:$0xff]
    %v1309 = vld [vmem:[#allocation5 + $0xc0] sm:$0xff]
    %v1310 = vld [vmem:[#allocation5 + $0xc8] sm:$0xff]
    %v1311 = vld [vmem:[#allocation5 + $0xd0] sm:$0xff]
    %v1312 = vld [vmem:[#allocation5 + $0xd8] sm:$0xff]
    %v1313 = vld [vmem:[#allocation5 + $0xe0] sm:$0xff]
    %v1314 = vld [vmem:[#allocation5 + $0xe8] sm:$0xff]
    %v1315 = vld [vmem:[#allocation5 + $0xf0] sm:$0xff]
    %v1316 = vld [vmem:[#allocation5 + $0xf8] sm:$0xff]
    %v1317 = vld [vmem:[#allocation5 + $0x100] sm:$0xff]
    %v1318 = vld [vmem:[#allocation5 + $0x108] sm:$0xff]
    %v1319 = vld [vmem:[#allocation5 + $0x110] sm:$0xff]
    %v1320 = vld [vmem:[#allocation5 + $0x118] sm:$0xff]
    %v1321 = vld [vmem:[#allocation5 + $0x120] sm:$0xff]
    %v1322 = vld [vmem:[#allocation5 + $0x128] sm:$0xff]
    %v1323 = vld [vmem:[#allocation5 + $0x130] sm:$0xff]
    %v1324 = vld [vmem:[#allocation5 + $0x138] sm:$0xff]
    %v1325 = vld [vmem:[#allocation5 + $0x140] sm:$0xff]
    %v1326 = vld [vmem:[#allocation5 + $0x148] sm:$0xff]
    %v1327 = vld [vmem:[#allocation5 + $0x150] sm:$0xff]
    %v1328 = vld [vmem:[#allocation5 + $0x158] sm:$0xff]
    %v1329 = vld [vmem:[#allocation5 + $0x160] sm:$0xff]
    %v1330 = vld [vmem:[#allocation5 + $0x168] sm:$0xff]
    %v1331 = vld [vmem:[#allocation5 + $0x170] sm:$0xff]
    %v1332 = vld [vmem:[#allocation5 + $0x178] sm:$0xff]
    %v1333 = vld [vmem:[#allocation5 + $0x180] sm:$0xff]
    %v1334 = vld [vmem:[#allocation5 + $0x188] sm:$0xff]
    %v1335 = vld [vmem:[#allocation5 + $0x190] sm:$0xff]
    %v1336 = vld [vmem:[#allocation5 + $0x198] sm:$0xff]
    %v1337 = vld [vmem:[#allocation5 + $0x1a0] sm:$0xff]
    %v1338 = vld [vmem:[#allocation5 + $0x1a8] sm:$0xff]
    %v1339 = vld [vmem:[#allocation5 + $0x1b0] sm:$0xff]
    %v1340 = vld [vmem:[#allocation5 + $0x1b8] sm:$0xff]
    %v1341 = vld [vmem:[#allocation5 + $0x1c0] sm:$0xff]
    %v1342 = vld [vmem:[#allocation5 + $0x1c8] sm:$0xff]
    %v1343 = vld [vmem:[#allocation5 + $0x1d0] sm:$0xff]
    %v1344 = vld [vmem:[#allocation5 + $0x1d8] sm:$0xff]
    %v1345 = vld [vmem:[#allocation5 + $0x1e0] sm:$0xff]
    %v1346 = vld [vmem:[#allocation5 + $0x1e8] sm:$0xff]
    %v1347 = vld [vmem:[#allocation5 + $0x1f0] sm:$0xff]
    %v1348 = vld [vmem:[#allocation5 + $0x1f8] sm:$0xff]
    %v1349 = vld [vmem:[%s8] sm:$0x1]
    %1382 = vrot.lane.b32.xlu0 %v1253, 96
    %v1383 = vpop.permute.xlu0 %1382
    %1384 = vrot.lane.b32.xlu0 %v1254, 96
    %v1385 = vpop.permute.xlu0 %1384
    %1386 = vrot.lane.b32.xlu0 %v1255, 96
    %v1387 = vpop.permute.xlu0 %1386
    %1388 = vrot.lane.b32.xlu0 %v1256, 96
    %v1389 = vpop.permute.xlu0 %1388
    %1390 = vrot.lane.b32.xlu0 %v1257, 96
    %v1391 = vpop.permute.xlu0 %1390
    %1392 = vrot.lane.b32.xlu0 %v1258, 96
    %v1393 = vpop.permute.xlu0 %1392
    %1394 = vrot.lane.b32.xlu0 %v1259, 96
    %v1395 = vpop.permute.xlu0 %1394
    %1396 = vrot.lane.b32.xlu0 %v1260, 96
    %v1397 = vpop.permute.xlu0 %1396
    %1398 = vrot.lane.b32.xlu0 %v1261, 96
    %v1399 = vpop.permute.xlu0 %1398
    %1400 = vrot.lane.b32.xlu0 %v1262, 96
    %v1401 = vpop.permute.xlu0 %1400
    %1402 = vrot.lane.b32.xlu0 %v1263, 96
    %v1403 = vpop.permute.xlu0 %1402
    %1404 = vrot.lane.b32.xlu0 %v1264, 96
    %v1405 = vpop.permute.xlu0 %1404
    %1406 = vrot.lane.b32.xlu0 %v1265, 96
    %v1407 = vpop.permute.xlu0 %1406
    %1408 = vrot.lane.b32.xlu0 %v1266, 96
    %v1409 = vpop.permute.xlu0 %1408
    %1410 = vrot.lane.b32.xlu0 %v1267, 96
    %v1411 = vpop.permute.xlu0 %1410
    %1412 = vrot.lane.b32.xlu0 %v1268, 96
    %v1413 = vpop.permute.xlu0 %1412
    %1414 = vrot.lane.b32.xlu0 %v1269, 96
    %v1415 = vpop.permute.xlu0 %1414
    %1416 = vrot.lane.b32.xlu0 %v1270, 96
    %v1417 = vpop.permute.xlu0 %1416
    %1418 = vrot.lane.b32.xlu0 %v1271, 96
    %v1419 = vpop.permute.xlu0 %1418
    %1420 = vrot.lane.b32.xlu0 %v1272, 96
    %v1421 = vpop.permute.xlu0 %1420
    %1422 = vrot.lane.b32.xlu0 %v1273, 96
    %v1423 = vpop.permute.xlu0 %1422
    %1424 = vrot.lane.b32.xlu0 %v1274, 96
    %v1425 = vpop.permute.xlu0 %1424
    %1426 = vrot.lane.b32.xlu0 %v1275, 96
    %v1427 = vpop.permute.xlu0 %1426
    %1428 = vrot.lane.b32.xlu0 %v1276, 96
    %v1429 = vpop.permute.xlu0 %1428
    %1430 = vrot.lane.b32.xlu0 %v1277, 96
    %v1431 = vpop.permute.xlu0 %1430
    %1432 = vrot.lane.b32.xlu0 %v1278, 96
    %v1433 = vpop.permute.xlu0 %1432
    %1434 = vrot.lane.b32.xlu0 %v1279, 96
    %v1435 = vpop.permute.xlu0 %1434
    %1436 = vrot.lane.b32.xlu0 %v1280, 96
    %v1437 = vpop.permute.xlu0 %1436
    %1438 = vrot.lane.b32.xlu0 %v1281, 96
    %v1439 = vpop.permute.xlu0 %1438
    %1440 = vrot.lane.b32.xlu0 %v1282, 96
    %v1441 = vpop.permute.xlu0 %1440
    %1442 = vrot.lane.b32.xlu0 %v1283, 96
    %v1443 = vpop.permute.xlu0 %1442
    %1444 = vrot.lane.b32.xlu0 %v1284, 96
    %v1445 = vpop.permute.xlu0 %1444
    %vm1446 = vcmask 130048
    %v1447 = vsel %vm1446, %v1253, 0
    %v1449 = vsel %vm1446, %v1254, 0
    %v1451 = vsel %vm1446, %v1255, 0
    %v1453 = vsel %vm1446, %v1256, 0
    %v1455 = vsel %vm1446, %v1257, 0
    %v1457 = vsel %vm1446, %v1258, 0
    %v1459 = vsel %vm1446, %v1259, 0
    %v1461 = vsel %vm1446, %v1260, 0
    %v1463 = vsel %vm1446, %v1261, 0
    %v1465 = vsel %vm1446, %v1262, 0
    %v1467 = vsel %vm1446, %v1263, 0
    %v1469 = vsel %vm1446, %v1264, 0
    %v1471 = vsel %vm1446, %v1265, 0
    %v1473 = vsel %vm1446, %v1266, 0
    %v1475 = vsel %vm1446, %v1267, 0
    %v1477 = vsel %vm1446, %v1268, 0
    %v1479 = vsel %vm1446, %v1269, 0
    %v1481 = vsel %vm1446, %v1270, 0
    %v1483 = vsel %vm1446, %v1271, 0
    %v1485 = vsel %vm1446, %v1272, 0
    %v1487 = vsel %vm1446, %v1273, 0
    %v1489 = vsel %vm1446, %v1274, 0
    %v1491 = vsel %vm1446, %v1275, 0
    %v1493 = vsel %vm1446, %v1276, 0
    %v1495 = vsel %vm1446, %v1277, 0
    %v1497 = vsel %vm1446, %v1278, 0
    %v1499 = vsel %vm1446, %v1279, 0
    %v1501 = vsel %vm1446, %v1280, 0
    %v1503 = vsel %vm1446, %v1281, 0
    %v1505 = vsel %vm1446, %v1282, 0
    %v1507 = vsel %vm1446, %v1283, 0
    %v1509 = vsel %vm1446, %v1284, 0
    %v1511 = vsel %vm1446, %v1383, 0
    %v1513 = vsel %vm1446, %v1385, 0
    %v1515 = vsel %vm1446, %v1387, 0
    %v1517 = vsel %vm1446, %v1389, 0
    %v1519 = vsel %vm1446, %v1391, 0
    %v1521 = vsel %vm1446, %v1393, 0
    %v1523 = vsel %vm1446, %v1395, 0
    %v1525 = vsel %vm1446, %v1397, 0
    %v1527 = vsel %vm1446, %v1399, 0
    %v1529 = vsel %vm1446, %v1401, 0
    %v1531 = vsel %vm1446, %v1403, 0
    %v1533 = vsel %vm1446, %v1405, 0
    %v1535 = vsel %vm1446, %v1407, 0
    %v1537 = vsel %vm1446, %v1409, 0
    %v1539 = vsel %vm1446, %v1411, 0
    %v1541 = vsel %vm1446, %v1413, 0
    %v1543 = vsel %vm1446, %v1415, 0
    %v1545 = vsel %vm1446, %v1417, 0
    %v1547 = vsel %vm1446, %v1419, 0
    %v1549 = vsel %vm1446, %v1421, 0
    %v1551 = vsel %vm1446, %v1423, 0
    %v1553 = vsel %vm1446, %v1425, 0
    %v1555 = vsel %vm1446, %v1427, 0
    %v1557 = vsel %vm1446, %v1429, 0
    %v1559 = vsel %vm1446, %v1431, 0
    %v1561 = vsel %vm1446, %v1433, 0
    %v1563 = vsel %vm1446, %v1435, 0
    %v1565 = vsel %vm1446, %v1437, 0
    %v1567 = vsel %vm1446, %v1439, 0
    %v1569 = vsel %vm1446, %v1441, 0
    %v1571 = vsel %vm1446, %v1443, 0
    %v1573 = vsel %vm1446, %v1445, 0
    %1575 = vmatpush.xpose.msra.mxu0 %v1541
    %1576 = vmatpush.xpose.msra.mxu0 %v1539
    %1577 = vmatpush.xpose.msra.mxu0 %v1537
    %1578 = vmatpush.xpose.msra.mxu0 %v1535
    %1579 = vmatpush.xpose.msra.mxu0 %v1533
    %1580 = vmatpush.xpose.msra.mxu0 %v1531
    %1581 = vmatpush.xpose.msra.mxu0 %v1529
    %1582 = vmatpush.xpose.msra.mxu0 %v1527
    %1583 = vmatpush.xpose.msra.mxu0 %v1525
    %1584 = vmatpush.xpose.msra.mxu0 %v1523
    %1585 = vmatpush.xpose.msra.mxu0 %v1521
    %1586 = vmatpush.xpose.msra.mxu0 %v1519
    %1587 = vmatpush.xpose.msra.mxu0 %v1517
    %1588 = vmatpush.xpose.msra.mxu0 %v1515
    %1589 = vmatpush.xpose.msra.mxu0 %v1513
    %1590 = vmatpush.xpose.msra.mxu0 %v1511
    %1591 = vmatmul.f32.gmra.mxu0 %v1447
    %v1592 = vpop.f32.mrf.mxu0
    %v1593 = vadd.f32 0.0, %v1592
    %1594 = vmatmul.f32.gmra.mxu0 %v1449
    %v1595 = vpop.f32.mrf.mxu0
    %v1596 = vadd.f32 0.0, %v1595
    %1597 = vmatmul.f32.gmra.mxu0 %v1451
    %v1598 = vpop.f32.mrf.mxu0
    %v1599 = vadd.f32 0.0, %v1598
    %1600 = vmatmul.f32.gmra.mxu0 %v1453
    %v1601 = vpop.f32.mrf.mxu0
    %v1602 = vadd.f32 0.0, %v1601
    %1603 = vmatmul.f32.gmra.mxu0 %v1455
    %v1604 = vpop.f32.mrf.mxu0
    %v1605 = vadd.f32 0.0, %v1604
    %1606 = vmatmul.f32.gmra.mxu0 %v1457
    %v1607 = vpop.f32.mrf.mxu0
    %v1608 = vadd.f32 0.0, %v1607
    %1609 = vmatmul.f32.gmra.mxu0 %v1459
    %v1610 = vpop.f32.mrf.mxu0
    %v1611 = vadd.f32 0.0, %v1610
    %1612 = vmatmul.f32.gmra.mxu0 %v1461
    %v1613 = vpop.f32.mrf.mxu0
    %v1614 = vadd.f32 0.0, %v1613
    %1615 = vmatmul.f32.gmra.mxu0 %v1463
    %v1616 = vpop.f32.mrf.mxu0
    %v1617 = vadd.f32 0.0, %v1616
    %1618 = vmatmul.f32.gmra.mxu0 %v1465
    %v1619 = vpop.f32.mrf.mxu0
    %v1620 = vadd.f32 0.0, %v1619
    %1621 = vmatmul.f32.gmra.mxu0 %v1467
    %v1622 = vpop.f32.mrf.mxu0
    %v1623 = vadd.f32 0.0, %v1622
    %1624 = vmatmul.f32.gmra.mxu0 %v1469
    %v1625 = vpop.f32.mrf.mxu0
    %v1626 = vadd.f32 0.0, %v1625
    %1627 = vmatmul.f32.gmra.mxu0 %v1471
    %v1628 = vpop.f32.mrf.mxu0
    %v1629 = vadd.f32 0.0, %v1628
    %1630 = vmatmul.f32.gmra.mxu0 %v1473
    %v1631 = vpop.f32.mrf.mxu0
    %v1632 = vadd.f32 0.0, %v1631
    %1633 = vmatmul.f32.gmra.mxu0 %v1475
    %v1634 = vpop.f32.mrf.mxu0
    %v1635 = vadd.f32 0.0, %v1634
    %1636 = vmatmul.f32.gmra.mxu0 %v1477
    %v1637 = vpop.f32.mrf.mxu0
    %v1638 = vadd.f32 0.0, %v1637
    %1639 = vmatmul.f32.gmra.mxu0 %v1479
    %v1640 = vpop.f32.mrf.mxu0
    %v1641 = vadd.f32 0.0, %v1640
    %1642 = vmatmul.f32.gmra.mxu0 %v1481
    %v1643 = vpop.f32.mrf.mxu0
    %v1644 = vadd.f32 0.0, %v1643
    %1645 = vmatmul.f32.gmra.mxu0 %v1483
    %v1646 = vpop.f32.mrf.mxu0
    %v1647 = vadd.f32 0.0, %v1646
    %1648 = vmatmul.f32.gmra.mxu0 %v1485
    %v1649 = vpop.f32.mrf.mxu0
    %v1650 = vadd.f32 0.0, %v1649
    %1651 = vmatmul.f32.gmra.mxu0 %v1487
    %v1652 = vpop.f32.mrf.mxu0
    %v1653 = vadd.f32 0.0, %v1652
    %1654 = vmatmul.f32.gmra.mxu0 %v1489
    %v1655 = vpop.f32.mrf.mxu0
    %v1656 = vadd.f32 0.0, %v1655
    %1657 = vmatmul.f32.gmra.mxu0 %v1491
    %v1658 = vpop.f32.mrf.mxu0
    %v1659 = vadd.f32 0.0, %v1658
    %1660 = vmatmul.f32.gmra.mxu0 %v1493
    %v1661 = vpop.f32.mrf.mxu0
    %v1662 = vadd.f32 0.0, %v1661
    %1663 = vmatmul.f32.gmra.mxu0 %v1495
    %v1664 = vpop.f32.mrf.mxu0
    %v1665 = vadd.f32 0.0, %v1664
    %1666 = vmatmul.f32.gmra.mxu0 %v1497
    %v1667 = vpop.f32.mrf.mxu0
    %v1668 = vadd.f32 0.0, %v1667
    %1669 = vmatmul.f32.gmra.mxu0 %v1499
    %v1670 = vpop.f32.mrf.mxu0
    %v1671 = vadd.f32 0.0, %v1670
    %1672 = vmatmul.f32.gmra.mxu0 %v1501
    %v1673 = vpop.f32.mrf.mxu0
    %v1674 = vadd.f32 0.0, %v1673
    %1675 = vmatmul.f32.gmra.mxu0 %v1503
    %v1676 = vpop.f32.mrf.mxu0
    %v1677 = vadd.f32 0.0, %v1676
    %1678 = vmatmul.f32.gmra.mxu0 %v1505
    %v1679 = vpop.f32.mrf.mxu0
    %v1680 = vadd.f32 0.0, %v1679
    %1681 = vmatmul.f32.gmra.mxu0 %v1507
    %v1682 = vpop.f32.mrf.mxu0
    %v1683 = vadd.f32 0.0, %v1682
    %1684 = vmatmul.f32.gmra.mxu0 %v1509
    %v1685 = vpop.f32.mrf.mxu0
    %v1686 = vadd.f32 0.0, %v1685
    %1687 = vdwg.mxu0
    %1688 = vmatpush.xpose.msra.mxu0 %v1573
    %1689 = vmatpush.xpose.msra.mxu0 %v1571
    %1690 = vmatpush.xpose.msra.mxu0 %v1569
    %1691 = vmatpush.xpose.msra.mxu0 %v1567
    %1692 = vmatpush.xpose.msra.mxu0 %v1565
    %1693 = vmatpush.xpose.msra.mxu0 %v1563
    %1694 = vmatpush.xpose.msra.mxu0 %v1561
    %1695 = vmatpush.xpose.msra.mxu0 %v1559
    %1696 = vmatpush.xpose.msra.mxu0 %v1557
    %1697 = vmatpush.xpose.msra.mxu0 %v1555
    %1698 = vmatpush.xpose.msra.mxu0 %v1553
    %1699 = vmatpush.xpose.msra.mxu0 %v1551
    %1700 = vmatpush.xpose.msra.mxu0 %v1549
    %1701 = vmatpush.xpose.msra.mxu0 %v1547
    %1702 = vmatpush.xpose.msra.mxu0 %v1545
    %1703 = vmatpush.xpose.msra.mxu0 %v1543
    %1704 = vmatmul.f32.gmra.mxu0 %v1447
    %v1705 = vpop.f32.mrf.mxu0
    %v1706 = vadd.f32 0.0, %v1705
    %1707 = vmatmul.f32.gmra.mxu0 %v1449
    %v1708 = vpop.f32.mrf.mxu0
    %v1709 = vadd.f32 0.0, %v1708
    %1710 = vmatmul.f32.gmra.mxu0 %v1451
    %v1711 = vpop.f32.mrf.mxu0
    %v1712 = vadd.f32 0.0, %v1711
    %1713 = vmatmul.f32.gmra.mxu0 %v1453
    %v1714 = vpop.f32.mrf.mxu0
    %v1715 = vadd.f32 0.0, %v1714
    %1716 = vmatmul.f32.gmra.mxu0 %v1455
    %v1717 = vpop.f32.mrf.mxu0
    %v1718 = vadd.f32 0.0, %v1717
    %1719 = vmatmul.f32.gmra.mxu0 %v1457
    %v1720 = vpop.f32.mrf.mxu0
    %v1721 = vadd.f32 0.0, %v1720
    %1722 = vmatmul.f32.gmra.mxu0 %v1459
    %v1723 = vpop.f32.mrf.mxu0
    %v1724 = vadd.f32 0.0, %v1723
    %1725 = vmatmul.f32.gmra.mxu0 %v1461
    %v1726 = vpop.f32.mrf.mxu0
    %v1727 = vadd.f32 0.0, %v1726
    %1728 = vmatmul.f32.gmra.mxu0 %v1463
    %v1729 = vpop.f32.mrf.mxu0
    %v1730 = vadd.f32 0.0, %v1729
    %1731 = vmatmul.f32.gmra.mxu0 %v1465
    %v1732 = vpop.f32.mrf.mxu0
    %v1733 = vadd.f32 0.0, %v1732
    %1734 = vmatmul.f32.gmra.mxu0 %v1467
    %v1735 = vpop.f32.mrf.mxu0
    %v1736 = vadd.f32 0.0, %v1735
    %1737 = vmatmul.f32.gmra.mxu0 %v1469
    %v1738 = vpop.f32.mrf.mxu0
    %v1739 = vadd.f32 0.0, %v1738
    %1740 = vmatmul.f32.gmra.mxu0 %v1471
    %v1741 = vpop.f32.mrf.mxu0
    %v1742 = vadd.f32 0.0, %v1741
    %1743 = vmatmul.f32.gmra.mxu0 %v1473
    %v1744 = vpop.f32.mrf.mxu0
    %v1745 = vadd.f32 0.0, %v1744
    %1746 = vmatmul.f32.gmra.mxu0 %v1475
    %v1747 = vpop.f32.mrf.mxu0
    %v1748 = vadd.f32 0.0, %v1747
    %1749 = vmatmul.f32.gmra.mxu0 %v1477
    %v1750 = vpop.f32.mrf.mxu0
    %v1751 = vadd.f32 0.0, %v1750
    %1752 = vmatmul.f32.gmra.mxu0 %v1479
    %v1753 = vpop.f32.mrf.mxu0
    %v1754 = vadd.f32 0.0, %v1753
    %1755 = vmatmul.f32.gmra.mxu0 %v1481
    %v1756 = vpop.f32.mrf.mxu0
    %v1757 = vadd.f32 0.0, %v1756
    %1758 = vmatmul.f32.gmra.mxu0 %v1483
    %v1759 = vpop.f32.mrf.mxu0
    %v1760 = vadd.f32 0.0, %v1759
    %1761 = vmatmul.f32.gmra.mxu0 %v1485
    %v1762 = vpop.f32.mrf.mxu0
    %v1763 = vadd.f32 0.0, %v1762
    %1764 = vmatmul.f32.gmra.mxu0 %v1487
    %v1765 = vpop.f32.mrf.mxu0
    %v1766 = vadd.f32 0.0, %v1765
    %1767 = vmatmul.f32.gmra.mxu0 %v1489
    %v1768 = vpop.f32.mrf.mxu0
    %v1769 = vadd.f32 0.0, %v1768
    %1770 = vmatmul.f32.gmra.mxu0 %v1491
    %v1771 = vpop.f32.mrf.mxu0
    %v1772 = vadd.f32 0.0, %v1771
    %1773 = vmatmul.f32.gmra.mxu0 %v1493
    %v1774 = vpop.f32.mrf.mxu0
    %v1775 = vadd.f32 0.0, %v1774
    %1776 = vmatmul.f32.gmra.mxu0 %v1495
    %v1777 = vpop.f32.mrf.mxu0
    %v1778 = vadd.f32 0.0, %v1777
    %1779 = vmatmul.f32.gmra.mxu0 %v1497
    %v1780 = vpop.f32.mrf.mxu0
    %v1781 = vadd.f32 0.0, %v1780
    %1782 = vmatmul.f32.gmra.mxu0 %v1499
    %v1783 = vpop.f32.mrf.mxu0
    %v1784 = vadd.f32 0.0, %v1783
    %1785 = vmatmul.f32.gmra.mxu0 %v1501
    %v1786 = vpop.f32.mrf.mxu0
    %v1787 = vadd.f32 0.0, %v1786
    %1788 = vmatmul.f32.gmra.mxu0 %v1503
    %v1789 = vpop.f32.mrf.mxu0
    %v1790 = vadd.f32 0.0, %v1789
    %1791 = vmatmul.f32.gmra.mxu0 %v1505
    %v1792 = vpop.f32.mrf.mxu0
    %v1793 = vadd.f32 0.0, %v1792
    %1794 = vmatmul.f32.gmra.mxu0 %v1507
    %v1795 = vpop.f32.mrf.mxu0
    %v1796 = vadd.f32 0.0, %v1795
    %1797 = vmatmul.f32.gmra.mxu0 %v1509
    %v1798 = vpop.f32.mrf.mxu0
    %v1799 = vadd.f32 0.0, %v1798
    %1800 = vdwg.mxu0
    %v1801 = vmul.f32 %v1593, 0.25
    %v1802 = vmul.f32 %v1706, 0.25
    %v1803 = vmul.f32 %v1596, 0.25
    %v1804 = vmul.f32 %v1709, 0.25
    %v1805 = vmul.f32 %v1599, 0.25
    %v1806 = vmul.f32 %v1712, 0.25
    %v1807 = vmul.f32 %v1602, 0.25
    %v1808 = vmul.f32 %v1715, 0.25
    %v1809 = vmul.f32 %v1605, 0.25
    %v1810 = vmul.f32 %v1718, 0.25
    %v1811 = vmul.f32 %v1608, 0.25
    %v1812 = vmul.f32 %v1721, 0.25
    %v1813 = vmul.f32 %v1611, 0.25
    %v1814 = vmul.f32 %v1724, 0.25
    %v1815 = vmul.f32 %v1614, 0.25
    %v1816 = vmul.f32 %v1727, 0.25
    %v1817 = vmul.f32 %v1617, 0.25
    %v1818 = vmul.f32 %v1730, 0.25
    %v1819 = vmul.f32 %v1620, 0.25
    %v1820 = vmul.f32 %v1733, 0.25
    %v1821 = vmul.f32 %v1623, 0.25
    %v1822 = vmul.f32 %v1736, 0.25
    %v1823 = vmul.f32 %v1626, 0.25
    %v1824 = vmul.f32 %v1739, 0.25
    %v1825 = vmul.f32 %v1629, 0.25
    %v1826 = vmul.f32 %v1742, 0.25
    %v1827 = vmul.f32 %v1632, 0.25
    %v1828 = vmul.f32 %v1745, 0.25
    %v1829 = vmul.f32 %v1635, 0.25
    %v1830 = vmul.f32 %v1748, 0.25
    %v1831 = vmul.f32 %v1638, 0.25
    %v1832 = vmul.f32 %v1751, 0.25
    %v1833 = vmul.f32 %v1641, 0.25
    %v1834 = vmul.f32 %v1754, 0.25
    %v1835 = vmul.f32 %v1644, 0.25
    %v1836 = vmul.f32 %v1757, 0.25
    %v1837 = vmul.f32 %v1647, 0.25
    %v1838 = vmul.f32 %v1760, 0.25
    %v1839 = vmul.f32 %v1650, 0.25
    %v1840 = vmul.f32 %v1763, 0.25
    %v1841 = vmul.f32 %v1653, 0.25
    %v1842 = vmul.f32 %v1766, 0.25
    %v1843 = vmul.f32 %v1656, 0.25
    %v1844 = vmul.f32 %v1769, 0.25
    %v1845 = vmul.f32 %v1659, 0.25
    %v1846 = vmul.f32 %v1772, 0.25
    %v1847 = vmul.f32 %v1662, 0.25
    %v1848 = vmul.f32 %v1775, 0.25
    %v1849 = vmul.f32 %v1665, 0.25
    %v1850 = vmul.f32 %v1778, 0.25
    %v1851 = vmul.f32 %v1668, 0.25
    %v1852 = vmul.f32 %v1781, 0.25
    %v1853 = vmul.f32 %v1671, 0.25
    %v1854 = vmul.f32 %v1784, 0.25
    %v1855 = vmul.f32 %v1674, 0.25
    %v1856 = vmul.f32 %v1787, 0.25
    %v1857 = vmul.f32 %v1677, 0.25
    %v1858 = vmul.f32 %v1790, 0.25
    %v1859 = vmul.f32 %v1680, 0.25
    %v1860 = vmul.f32 %v1793, 0.25
    %v1861 = vmul.f32 %v1683, 0.25
    %v1862 = vmul.f32 %v1796, 0.25
    %v1863 = vmul.f32 %v1686, 0.25
    %v1864 = vmul.f32 %v1799, 0.25
    %v1865 = vmax.f32 %v1801, 0.0
    %v1866 = vmax.f32 %v1802, 0.0
    %v1867 = vmax.f32 %v1803, 0.0
    %v1868 = vmax.f32 %v1804, 0.0
    %v1869 = vmax.f32 %v1805, 0.0
    %v1870 = vmax.f32 %v1806, 0.0
    %v1871 = vmax.f32 %v1807, 0.0
    %v1872 = vmax.f32 %v1808, 0.0
    %v1873 = vmax.f32 %v1809, 0.0
    %v1874 = vmax.f32 %v1810, 0.0
    %v1875 = vmax.f32 %v1811, 0.0
    %v1876 = vmax.f32 %v1812, 0.0
    %v1877 = vmax.f32 %v1813, 0.0
    %v1878 = vmax.f32 %v1814, 0.0
    %v1879 = vmax.f32 %v1815, 0.0
    %v1880 = vmax.f32 %v1816, 0.0
    %v1881 = vmax.f32 %v1817, 0.0
    %v1882 = vmax.f32 %v1818, 0.0
    %v1883 = vmax.f32 %v1819, 0.0
    %v1884 = vmax.f32 %v1820, 0.0
    %v1885 = vmax.f32 %v1821, 0.0
    %v1886 = vmax.f32 %v1822, 0.0
    %v1887 = vmax.f32 %v1823, 0.0
    %v1888 = vmax.f32 %v1824, 0.0
    %v1889 = vmax.f32 %v1825, 0.0
    %v1890 = vmax.f32 %v1826, 0.0
    %v1891 = vmax.f32 %v1827, 0.0
    %v1892 = vmax.f32 %v1828, 0.0
    %v1893 = vmax.f32 %v1829, 0.0
    %v1894 = vmax.f32 %v1830, 0.0
    %v1895 = vmax.f32 %v1831, 0.0
    %v1896 = vmax.f32 %v1832, 0.0
    %v1897 = vmax.f32 %v1833, 0.0
    %v1898 = vmax.f32 %v1834, 0.0
    %v1899 = vmax.f32 %v1835, 0.0
    %v1900 = vmax.f32 %v1836, 0.0
    %v1901 = vmax.f32 %v1837, 0.0
    %v1902 = vmax.f32 %v1838, 0.0
    %v1903 = vmax.f32 %v1839, 0.0
    %v1904 = vmax.f32 %v1840, 0.0
    %v1905 = vmax.f32 %v1841, 0.0
    %v1906 = vmax.f32 %v1842, 0.0
    %v1907 = vmax.f32 %v1843, 0.0
    %v1908 = vmax.f32 %v1844, 0.0
    %v1909 = vmax.f32 %v1845, 0.0
    %v1910 = vmax.f32 %v1846, 0.0
    %v1911 = vmax.f32 %v1847, 0.0
    %v1912 = vmax.f32 %v1848, 0.0
    %v1913 = vmax.f32 %v1849, 0.0
    %v1914 = vmax.f32 %v1850, 0.0
    %v1915 = vmax.f32 %v1851, 0.0
    %v1916 = vmax.f32 %v1852, 0.0
    %v1917 = vmax.f32 %v1853, 0.0
    %v1918 = vmax.f32 %v1854, 0.0
    %v1919 = vmax.f32 %v1855, 0.0
    %v1920 = vmax.f32 %v1856, 0.0
    %v1921 = vmax.f32 %v1857, 0.0
    %v1922 = vmax.f32 %v1858, 0.0
    %v1923 = vmax.f32 %v1859, 0.0
    %v1924 = vmax.f32 %v1860, 0.0
    %v1925 = vmax.f32 %v1861, 0.0
    %v1926 = vmax.f32 %v1862, 0.0
    %v1927 = vmax.f32 %v1863, 0.0
    %v1928 = vmax.f32 %v1864, 0.0
    %v1929 = vmul.f32 %v1865, %v1285
    %v1930 = vmul.f32 %v1866, %v1286
    %v1931 = vmul.f32 %v1867, %v1287
    %v1932 = vmul.f32 %v1868, %v1288
    %v1933 = vmul.f32 %v1869, %v1289
    %v1934 = vmul.f32 %v1870, %v1290
    %v1935 = vmul.f32 %v1871, %v1291
    %v1936 = vmul.f32 %v1872, %v1292
    %v1937 = vmul.f32 %v1873, %v1293
    %v1938 = vmul.f32 %v1874, %v1294
    %v1939 = vmul.f32 %v1875, %v1295
    %v1940 = vmul.f32 %v1876, %v1296
    %v1941 = vmul.f32 %v1877, %v1297
    %v1942 = vmul.f32 %v1878, %v1298
    %v1943 = vmul.f32 %v1879, %v1299
    %v1944 = vmul.f32 %v1880, %v1300
    %v1945 = vmul.f32 %v1881, %v1301
    %v1946 = vmul.f32 %v1882, %v1302
    %v1947 = vmul.f32 %v1883, %v1303
    %v1948 = vmul.f32 %v1884, %v1304
    %v1949 = vmul.f32 %v1885, %v1305
    %v1950 = vmul.f32 %v1886, %v1306
    %v1951 = vmul.f32 %v1887, %v1307
    %v1952 = vmul.f32 %v1888, %v1308
    %v1953 = vmul.f32 %v1889, %v1309
    %v1954 = vmul.f32 %v1890, %v1310
    %v1955 = vmul.f32 %v1891, %v1311
    %v1956 = vmul.f32 %v1892, %v1312
    %v1957 = vmul.f32 %v1893, %v1313
    %v1958 = vmul.f32 %v1894, %v1314
    %v1959 = vmul.f32 %v1895, %v1315
    %v1960 = vmul.f32 %v1896, %v1316
    %v1961 = vmul.f32 %v1897, %v1317
    %v1962 = vmul.f32 %v1898, %v1318
    %v1963 = vmul.f32 %v1899, %v1319
    %v1964 = vmul.f32 %v1900, %v1320
    %v1965 = vmul.f32 %v1901, %v1321
    %v1966 = vmul.f32 %v1902, %v1322
    %v1967 = vmul.f32 %v1903, %v1323
    %v1968 = vmul.f32 %v1904, %v1324
    %v1969 = vmul.f32 %v1905, %v1325
    %v1970 = vmul.f32 %v1906, %v1326
    %v1971 = vmul.f32 %v1907, %v1327
    %v1972 = vmul.f32 %v1908, %v1328
    %v1973 = vmul.f32 %v1909, %v1329
    %v1974 = vmul.f32 %v1910, %v1330
    %v1975 = vmul.f32 %v1911, %v1331
    %v1976 = vmul.f32 %v1912, %v1332
    %v1977 = vmul.f32 %v1913, %v1333
    %v1978 = vmul.f32 %v1914, %v1334
    %v1979 = vmul.f32 %v1915, %v1335
    %v1980 = vmul.f32 %v1916, %v1336
    %v1981 = vmul.f32 %v1917, %v1337
    %v1982 = vmul.f32 %v1918, %v1338
    %v1983 = vmul.f32 %v1919, %v1339
    %v1984 = vmul.f32 %v1920, %v1340
    %v1985 = vmul.f32 %v1921, %v1341
    %v1986 = vmul.f32 %v1922, %v1342
    %v1987 = vmul.f32 %v1923, %v1343
    %v1988 = vmul.f32 %v1924, %v1344
    %v1989 = vmul.f32 %v1925, %v1345
    %v1990 = vmul.f32 %v1926, %v1346
    %v1991 = vmul.f32 %v1927, %v1347
    %v1992 = vmul.f32 %v1928, %v1348
    %1993 = vrot.lane.b32.xlu0 %v1253, 64
    %v1994 = vpop.permute.xlu0 %1993
    %1995 = vrot.lane.b32.xlu0 %v1254, 64
    %v1996 = vpop.permute.xlu0 %1995
    %1997 = vrot.lane.b32.xlu0 %v1255, 64
    %v1998 = vpop.permute.xlu0 %1997
    %1999 = vrot.lane.b32.xlu0 %v1256, 64
    %v2000 = vpop.permute.xlu0 %1999
    %2001 = vrot.lane.b32.xlu0 %v1257, 64
    %v2002 = vpop.permute.xlu0 %2001
    %2003 = vrot.lane.b32.xlu0 %v1258, 64
    %v2004 = vpop.permute.xlu0 %2003
    %2005 = vrot.lane.b32.xlu0 %v1259, 64
    %v2006 = vpop.permute.xlu0 %2005
    %2007 = vrot.lane.b32.xlu0 %v1260, 64
    %v2008 = vpop.permute.xlu0 %2007
    %2009 = vrot.lane.b32.xlu0 %v1261, 64
    %v2010 = vpop.permute.xlu0 %2009
    %2011 = vrot.lane.b32.xlu0 %v1262, 64
    %v2012 = vpop.permute.xlu0 %2011
    %2013 = vrot.lane.b32.xlu0 %v1263, 64
    %v2014 = vpop.permute.xlu0 %2013
    %2015 = vrot.lane.b32.xlu0 %v1264, 64
    %v2016 = vpop.permute.xlu0 %2015
    %2017 = vrot.lane.b32.xlu0 %v1265, 64
    %v2018 = vpop.permute.xlu0 %2017
    %2019 = vrot.lane.b32.xlu0 %v1266, 64
    %v2020 = vpop.permute.xlu0 %2019
    %2021 = vrot.lane.b32.xlu0 %v1267, 64
    %v2022 = vpop.permute.xlu0 %2021
    %2023 = vrot.lane.b32.xlu0 %v1268, 64
    %v2024 = vpop.permute.xlu0 %2023
    %2025 = vrot.lane.b32.xlu0 %v1269, 64
    %v2026 = vpop.permute.xlu0 %2025
    %2027 = vrot.lane.b32.xlu0 %v1270, 64
    %v2028 = vpop.permute.xlu0 %2027
    %2029 = vrot.lane.b32.xlu0 %v1271, 64
    %v2030 = vpop.permute.xlu0 %2029
    %2031 = vrot.lane.b32.xlu0 %v1272, 64
    %v2032 = vpop.permute.xlu0 %2031
    %2033 = vrot.lane.b32.xlu0 %v1273, 64
    %v2034 = vpop.permute.xlu0 %2033
    %2035 = vrot.lane.b32.xlu0 %v1274, 64
    %v2036 = vpop.permute.xlu0 %2035
    %2037 = vrot.lane.b32.xlu0 %v1275, 64
    %v2038 = vpop.permute.xlu0 %2037
    %2039 = vrot.lane.b32.xlu0 %v1276, 64
    %v2040 = vpop.permute.xlu0 %2039
    %2041 = vrot.lane.b32.xlu0 %v1277, 64
    %v2042 = vpop.permute.xlu0 %2041
    %2043 = vrot.lane.b32.xlu0 %v1278, 64
    %v2044 = vpop.permute.xlu0 %2043
    %2045 = vrot.lane.b32.xlu0 %v1279, 64
    %v2046 = vpop.permute.xlu0 %2045
    %2047 = vrot.lane.b32.xlu0 %v1280, 64
    %v2048 = vpop.permute.xlu0 %2047
    %2049 = vrot.lane.b32.xlu0 %v1281, 64
    %v2050 = vpop.permute.xlu0 %2049
    %2051 = vrot.lane.b32.xlu0 %v1282, 64
    %v2052 = vpop.permute.xlu0 %2051
    %2053 = vrot.lane.b32.xlu0 %v1283, 64
    %v2054 = vpop.permute.xlu0 %2053
    %2055 = vrot.lane.b32.xlu0 %v1284, 64
    %v2056 = vpop.permute.xlu0 %2055
    %2089 = vmatpush.msra.mxu0 %v2024
    %2090 = vmatpush.msra.mxu0 %v2022
    %2091 = vmatpush.msra.mxu0 %v2020
    %2092 = vmatpush.msra.mxu0 %v2018
    %2093 = vmatpush.msra.mxu0 %v2016
    %2094 = vmatpush.msra.mxu0 %v2014
    %2095 = vmatpush.msra.mxu0 %v2012
    %2096 = vmatpush.msra.mxu0 %v2010
    %2097 = vmatpush.msra.mxu0 %v2008
    %2098 = vmatpush.msra.mxu0 %v2006
    %2099 = vmatpush.msra.mxu0 %v2004
    %2100 = vmatpush.msra.mxu0 %v2002
    %2101 = vmatpush.msra.mxu0 %v2000
    %2102 = vmatpush.msra.mxu0 %v1998
    %2103 = vmatpush.msra.mxu0 %v1996
    %2104 = vmatpush.msra.mxu0 %v1994
    %2105 = vmatmul.f32.gmra.mxu0 %v1929
    %v2106 = vpop.f32.mrf.mxu0
    %v2107 = vadd.f32 0.0, %v2106
    %2108 = vmatmul.f32.gmra.mxu0 %v1931
    %v2109 = vpop.f32.mrf.mxu0
    %v2110 = vadd.f32 0.0, %v2109
    %2111 = vmatmul.f32.gmra.mxu0 %v1933
    %v2112 = vpop.f32.mrf.mxu0
    %v2113 = vadd.f32 0.0, %v2112
    %2114 = vmatmul.f32.gmra.mxu0 %v1935
    %v2115 = vpop.f32.mrf.mxu0
    %v2116 = vadd.f32 0.0, %v2115
    %2117 = vmatmul.f32.gmra.mxu0 %v1937
    %v2118 = vpop.f32.mrf.mxu0
    %v2119 = vadd.f32 0.0, %v2118
    %2120 = vmatmul.f32.gmra.mxu0 %v1939
    %v2121 = vpop.f32.mrf.mxu0
    %v2122 = vadd.f32 0.0, %v2121
    %2123 = vmatmul.f32.gmra.mxu0 %v1941
    %v2124 = vpop.f32.mrf.mxu0
    %v2125 = vadd.f32 0.0, %v2124
    %2126 = vmatmul.f32.gmra.mxu0 %v1943
    %v2127 = vpop.f32.mrf.mxu0
    %v2128 = vadd.f32 0.0, %v2127
    %2129 = vmatmul.f32.gmra.mxu0 %v1945
    %v2130 = vpop.f32.mrf.mxu0
    %v2131 = vadd.f32 0.0, %v2130
    %2132 = vmatmul.f32.gmra.mxu0 %v1947
    %v2133 = vpop.f32.mrf.mxu0
    %v2134 = vadd.f32 0.0, %v2133
    %2135 = vmatmul.f32.gmra.mxu0 %v1949
    %v2136 = vpop.f32.mrf.mxu0
    %v2137 = vadd.f32 0.0, %v2136
    %2138 = vmatmul.f32.gmra.mxu0 %v1951
    %v2139 = vpop.f32.mrf.mxu0
    %v2140 = vadd.f32 0.0, %v2139
    %2141 = vmatmul.f32.gmra.mxu0 %v1953
    %v2142 = vpop.f32.mrf.mxu0
    %v2143 = vadd.f32 0.0, %v2142
    %2144 = vmatmul.f32.gmra.mxu0 %v1955
    %v2145 = vpop.f32.mrf.mxu0
    %v2146 = vadd.f32 0.0, %v2145
    %2147 = vmatmul.f32.gmra.mxu0 %v1957
    %v2148 = vpop.f32.mrf.mxu0
    %v2149 = vadd.f32 0.0, %v2148
    %2150 = vmatmul.f32.gmra.mxu0 %v1959
    %v2151 = vpop.f32.mrf.mxu0
    %v2152 = vadd.f32 0.0, %v2151
    %2153 = vmatmul.f32.gmra.mxu0 %v1961
    %v2154 = vpop.f32.mrf.mxu0
    %v2155 = vadd.f32 0.0, %v2154
    %2156 = vmatmul.f32.gmra.mxu0 %v1963
    %v2157 = vpop.f32.mrf.mxu0
    %v2158 = vadd.f32 0.0, %v2157
    %2159 = vmatmul.f32.gmra.mxu0 %v1965
    %v2160 = vpop.f32.mrf.mxu0
    %v2161 = vadd.f32 0.0, %v2160
    %2162 = vmatmul.f32.gmra.mxu0 %v1967
    %v2163 = vpop.f32.mrf.mxu0
    %v2164 = vadd.f32 0.0, %v2163
    %2165 = vmatmul.f32.gmra.mxu0 %v1969
    %v2166 = vpop.f32.mrf.mxu0
    %v2167 = vadd.f32 0.0, %v2166
    %2168 = vmatmul.f32.gmra.mxu0 %v1971
    %v2169 = vpop.f32.mrf.mxu0
    %v2170 = vadd.f32 0.0, %v2169
    %2171 = vmatmul.f32.gmra.mxu0 %v1973
    %v2172 = vpop.f32.mrf.mxu0
    %v2173 = vadd.f32 0.0, %v2172
    %2174 = vmatmul.f32.gmra.mxu0 %v1975
    %v2175 = vpop.f32.mrf.mxu0
    %v2176 = vadd.f32 0.0, %v2175
    %2177 = vmatmul.f32.gmra.mxu0 %v1977
    %v2178 = vpop.f32.mrf.mxu0
    %v2179 = vadd.f32 0.0, %v2178
    %2180 = vmatmul.f32.gmra.mxu0 %v1979
    %v2181 = vpop.f32.mrf.mxu0
    %v2182 = vadd.f32 0.0, %v2181
    %2183 = vmatmul.f32.gmra.mxu0 %v1981
    %v2184 = vpop.f32.mrf.mxu0
    %v2185 = vadd.f32 0.0, %v2184
    %2186 = vmatmul.f32.gmra.mxu0 %v1983
    %v2187 = vpop.f32.mrf.mxu0
    %v2188 = vadd.f32 0.0, %v2187
    %2189 = vmatmul.f32.gmra.mxu0 %v1985
    %v2190 = vpop.f32.mrf.mxu0
    %v2191 = vadd.f32 0.0, %v2190
    %2192 = vmatmul.f32.gmra.mxu0 %v1987
    %v2193 = vpop.f32.mrf.mxu0
    %v2194 = vadd.f32 0.0, %v2193
    %2195 = vmatmul.f32.gmra.mxu0 %v1989
    %v2196 = vpop.f32.mrf.mxu0
    %v2197 = vadd.f32 0.0, %v2196
    %2198 = vmatmul.f32.gmra.mxu0 %v1991
    %v2199 = vpop.f32.mrf.mxu0
    %v2200 = vadd.f32 0.0, %v2199
    %2201 = vdwg.mxu0
    %2202 = vmatpush.msra.mxu0 %v2056
    %2203 = vmatpush.msra.mxu0 %v2054
    %2204 = vmatpush.msra.mxu0 %v2052
    %2205 = vmatpush.msra.mxu0 %v2050
    %2206 = vmatpush.msra.mxu0 %v2048
    %2207 = vmatpush.msra.mxu0 %v2046
    %2208 = vmatpush.msra.mxu0 %v2044
    %2209 = vmatpush.msra.mxu0 %v2042
    %2210 = vmatpush.msra.mxu0 %v2040
    %2211 = vmatpush.msra.mxu0 %v2038
    %2212 = vmatpush.msra.mxu0 %v2036
    %2213 = vmatpush.msra.mxu0 %v2034
    %2214 = vmatpush.msra.mxu0 %v2032
    %2215 = vmatpush.msra.mxu0 %v2030
    %2216 = vmatpush.msra.mxu0 %v2028
    %2217 = vmatpush.msra.mxu0 %v2026
    %2218 = vmatmul.f32.gmra.mxu0 %v1930
    %v2219 = vpop.f32.mrf.mxu0
    %v2220 = vadd.f32 %v2107, %v2219
    %2221 = vmatmul.f32.gmra.mxu0 %v1932
    %v2222 = vpop.f32.mrf.mxu0
    %v2223 = vadd.f32 %v2110, %v2222
    %2224 = vmatmul.f32.gmra.mxu0 %v1934
    %v2225 = vpop.f32.mrf.mxu0
    %v2226 = vadd.f32 %v2113, %v2225
    %2227 = vmatmul.f32.gmra.mxu0 %v1936
    %v2228 = vpop.f32.mrf.mxu0
    %v2229 = vadd.f32 %v2116, %v2228
    %2230 = vmatmul.f32.gmra.mxu0 %v1938
    %v2231 = vpop.f32.mrf.mxu0
    %v2232 = vadd.f32 %v2119, %v2231
    %2233 = vmatmul.f32.gmra.mxu0 %v1940
    %v2234 = vpop.f32.mrf.mxu0
    %v2235 = vadd.f32 %v2122, %v2234
    %2236 = vmatmul.f32.gmra.mxu0 %v1942
    %v2237 = vpop.f32.mrf.mxu0
    %v2238 = vadd.f32 %v2125, %v2237
    %2239 = vmatmul.f32.gmra.mxu0 %v1944
    %v2240 = vpop.f32.mrf.mxu0
    %v2241 = vadd.f32 %v2128, %v2240
    %2242 = vmatmul.f32.gmra.mxu0 %v1946
    %v2243 = vpop.f32.mrf.mxu0
    %v2244 = vadd.f32 %v2131, %v2243
    %2245 = vmatmul.f32.gmra.mxu0 %v1948
    %v2246 = vpop.f32.mrf.mxu0
    %v2247 = vadd.f32 %v2134, %v2246
    %2248 = vmatmul.f32.gmra.mxu0 %v1950
    %v2249 = vpop.f32.mrf.mxu0
    %v2250 = vadd.f32 %v2137, %v2249
    %2251 = vmatmul.f32.gmra.mxu0 %v1952
    %v2252 = vpop.f32.mrf.mxu0
    %v2253 = vadd.f32 %v2140, %v2252
    %2254 = vmatmul.f32.gmra.mxu0 %v1954
    %v2255 = vpop.f32.mrf.mxu0
    %v2256 = vadd.f32 %v2143, %v2255
    %2257 = vmatmul.f32.gmra.mxu0 %v1956
    %v2258 = vpop.f32.mrf.mxu0
    %v2259 = vadd.f32 %v2146, %v2258
    %2260 = vmatmul.f32.gmra.mxu0 %v1958
    %v2261 = vpop.f32.mrf.mxu0
    %v2262 = vadd.f32 %v2149, %v2261
    %2263 = vmatmul.f32.gmra.mxu0 %v1960
    %v2264 = vpop.f32.mrf.mxu0
    %v2265 = vadd.f32 %v2152, %v2264
    %2266 = vmatmul.f32.gmra.mxu0 %v1962
    %v2267 = vpop.f32.mrf.mxu0
    %v2268 = vadd.f32 %v2155, %v2267
    %2269 = vmatmul.f32.gmra.mxu0 %v1964
    %v2270 = vpop.f32.mrf.mxu0
    %v2271 = vadd.f32 %v2158, %v2270
    %2272 = vmatmul.f32.gmra.mxu0 %v1966
    %v2273 = vpop.f32.mrf.mxu0
    %v2274 = vadd.f32 %v2161, %v2273
    %2275 = vmatmul.f32.gmra.mxu0 %v1968
    %v2276 = vpop.f32.mrf.mxu0
    %v2277 = vadd.f32 %v2164, %v2276
    %2278 = vmatmul.f32.gmra.mxu0 %v1970
    %v2279 = vpop.f32.mrf.mxu0
    %v2280 = vadd.f32 %v2167, %v2279
    %2281 = vmatmul.f32.gmra.mxu0 %v1972
    %v2282 = vpop.f32.mrf.mxu0
    %v2283 = vadd.f32 %v2170, %v2282
    %2284 = vmatmul.f32.gmra.mxu0 %v1974
    %v2285 = vpop.f32.mrf.mxu0
    %v2286 = vadd.f32 %v2173, %v2285
    %2287 = vmatmul.f32.gmra.mxu0 %v1976
    %v2288 = vpop.f32.mrf.mxu0
    %v2289 = vadd.f32 %v2176, %v2288
    %2290 = vmatmul.f32.gmra.mxu0 %v1978
    %v2291 = vpop.f32.mrf.mxu0
    %v2292 = vadd.f32 %v2179, %v2291
    %2293 = vmatmul.f32.gmra.mxu0 %v1980
    %v2294 = vpop.f32.mrf.mxu0
    %v2295 = vadd.f32 %v2182, %v2294
    %2296 = vmatmul.f32.gmra.mxu0 %v1982
    %v2297 = vpop.f32.mrf.mxu0
    %v2298 = vadd.f32 %v2185, %v2297
    %2299 = vmatmul.f32.gmra.mxu0 %v1984
    %v2300 = vpop.f32.mrf.mxu0
    %v2301 = vadd.f32 %v2188, %v2300
    %2302 = vmatmul.f32.gmra.mxu0 %v1986
    %v2303 = vpop.f32.mrf.mxu0
    %v2304 = vadd.f32 %v2191, %v2303
    %2305 = vmatmul.f32.gmra.mxu0 %v1988
    %v2306 = vpop.f32.mrf.mxu0
    %v2307 = vadd.f32 %v2194, %v2306
    %2308 = vmatmul.f32.gmra.mxu0 %v1990
    %v2309 = vpop.f32.mrf.mxu0
    %v2310 = vadd.f32 %v2197, %v2309
    %2311 = vmatmul.f32.gmra.mxu0 %v1992
    %v2312 = vpop.f32.mrf.mxu0
    %v2313 = vadd.f32 %v2200, %v2312
    %2314 = vdwg.mxu0
    %v2315 = vld [vmem:[%s7] sm:$0xff]
    %v2316 = vld [vmem:[%s7 + $0x8] sm:$0xff]
    %v2318 = vsel %vm1446, %v2220, 0
    %v2321 = vsel %vm1446, %v2223, 0
    %v2324 = vsel %vm1446, %v2226, 0
    %v2327 = vsel %vm1446, %v2229, 0
    %v2330 = vsel %vm1446, %v2232, 0
    %v2333 = vsel %vm1446, %v2235, 0
    %v2336 = vsel %vm1446, %v2238, 0
    %v2339 = vsel %vm1446, %v2241, 0
    %v2342 = vsel %vm1446, %v2244, 0
    %v2345 = vsel %vm1446, %v2247, 0
    %v2348 = vsel %vm1446, %v2250, 0
    %v2351 = vsel %vm1446, %v2253, 0
    %v2354 = vsel %vm1446, %v2256, 0
    %v2357 = vsel %vm1446, %v2259, 0
    %v2360 = vsel %vm1446, %v2262, 0
    %v2363 = vsel %vm1446, %v2265, 0
    %v2366 = vsel %vm1446, %v2268, 0
    %v2369 = vsel %vm1446, %v2271, 0
    %v2372 = vsel %vm1446, %v2274, 0
    %v2375 = vsel %vm1446, %v2277, 0
    %v2378 = vsel %vm1446, %v2280, 0
    %v2381 = vsel %vm1446, %v2283, 0
    %v2384 = vsel %vm1446, %v2286, 0
    %v2387 = vsel %vm1446, %v2289, 0
    %v2390 = vsel %vm1446, %v2292, 0
    %v2393 = vsel %vm1446, %v2295, 0
    %v2396 = vsel %vm1446, %v2298, 0
    %v2399 = vsel %vm1446, %v2301, 0
    %v2402 = vsel %vm1446, %v2304, 0
    %v2405 = vsel %vm1446, %v2307, 0
    %v2408 = vsel %vm1446, %v2310, 0
    %v2411 = vsel %vm1446, %v2313, 0
    %2413 = vmatpush.msra.mxu0 0.0
    %2414 = vmatpush.msra.mxu0 0.0
    %2415 = vmatpush.msra.mxu0 0.0
    %2416 = vmatpush.msra.mxu0 0.0
    %2417 = vmatpush.msra.mxu0 0.0
    %2418 = vmatpush.msra.mxu0 0.0
    %2419 = vmatpush.msra.mxu0 0.0
    %2420 = vmatpush.msra.mxu0 0.0
    %2421 = vmatpush.msra.mxu0 0.0
    %2422 = vmatpush.msra.mxu0 0.0
    %2423 = vmatpush.msra.mxu0 0.0
    %2424 = vmatpush.msra.mxu0 0.0
    %2425 = vmatpush.msra.mxu0 0.0
    %2426 = vmatpush.msra.mxu0 0.0
    %2427 = vmatpush.msra.mxu0 %v2316
    %2428 = vmatpush.msra.mxu0 %v2315
    %2429 = vmatmul.f32.gmra.mxu0 %v2318
    %v2430 = vpop.f32.mrf.mxu0
    %v2431 = vadd.f32 0.0, %v2430
    %2432 = vmatmul.f32.gmra.mxu0 %v2321
    %v2433 = vpop.f32.mrf.mxu0
    %v2434 = vadd.f32 0.0, %v2433
    %2435 = vmatmul.f32.gmra.mxu0 %v2324
    %v2436 = vpop.f32.mrf.mxu0
    %v2437 = vadd.f32 0.0, %v2436
    %2438 = vmatmul.f32.gmra.mxu0 %v2327
    %v2439 = vpop.f32.mrf.mxu0
    %v2440 = vadd.f32 0.0, %v2439
    %2441 = vmatmul.f32.gmra.mxu0 %v2330
    %v2442 = vpop.f32.mrf.mxu0
    %v2443 = vadd.f32 0.0, %v2442
    %2444 = vmatmul.f32.gmra.mxu0 %v2333
    %v2445 = vpop.f32.mrf.mxu0
    %v2446 = vadd.f32 0.0, %v2445
    %2447 = vmatmul.f32.gmra.mxu0 %v2336
    %v2448 = vpop.f32.mrf.mxu0
    %v2449 = vadd.f32 0.0, %v2448
    %2450 = vmatmul.f32.gmra.mxu0 %v2339
    %v2451 = vpop.f32.mrf.mxu0
    %v2452 = vadd.f32 0.0, %v2451
    %2453 = vmatmul.f32.gmra.mxu0 %v2342
    %v2454 = vpop.f32.mrf.mxu0
    %v2455 = vadd.f32 0.0, %v2454
    %2456 = vmatmul.f32.gmra.mxu0 %v2345
    %v2457 = vpop.f32.mrf.mxu0
    %v2458 = vadd.f32 0.0, %v2457
    %2459 = vmatmul.f32.gmra.mxu0 %v2348
    %v2460 = vpop.f32.mrf.mxu0
    %v2461 = vadd.f32 0.0, %v2460
    %2462 = vmatmul.f32.gmra.mxu0 %v2351
    %v2463 = vpop.f32.mrf.mxu0
    %v2464 = vadd.f32 0.0, %v2463
    %2465 = vmatmul.f32.gmra.mxu0 %v2354
    %v2466 = vpop.f32.mrf.mxu0
    %v2467 = vadd.f32 0.0, %v2466
    %2468 = vmatmul.f32.gmra.mxu0 %v2357
    %v2469 = vpop.f32.mrf.mxu0
    %v2470 = vadd.f32 0.0, %v2469
    %2471 = vmatmul.f32.gmra.mxu0 %v2360
    %v2472 = vpop.f32.mrf.mxu0
    %v2473 = vadd.f32 0.0, %v2472
    %2474 = vmatmul.f32.gmra.mxu0 %v2363
    %v2475 = vpop.f32.mrf.mxu0
    %v2476 = vadd.f32 0.0, %v2475
    %2477 = vmatmul.f32.gmra.mxu0 %v2366
    %v2478 = vpop.f32.mrf.mxu0
    %v2479 = vadd.f32 0.0, %v2478
    %2480 = vmatmul.f32.gmra.mxu0 %v2369
    %v2481 = vpop.f32.mrf.mxu0
    %v2482 = vadd.f32 0.0, %v2481
    %2483 = vmatmul.f32.gmra.mxu0 %v2372
    %v2484 = vpop.f32.mrf.mxu0
    %v2485 = vadd.f32 0.0, %v2484
    %2486 = vmatmul.f32.gmra.mxu0 %v2375
    %v2487 = vpop.f32.mrf.mxu0
    %v2488 = vadd.f32 0.0, %v2487
    %2489 = vmatmul.f32.gmra.mxu0 %v2378
    %v2490 = vpop.f32.mrf.mxu0
    %v2491 = vadd.f32 0.0, %v2490
    %2492 = vmatmul.f32.gmra.mxu0 %v2381
    %v2493 = vpop.f32.mrf.mxu0
    %v2494 = vadd.f32 0.0, %v2493
    %2495 = vmatmul.f32.gmra.mxu0 %v2384
    %v2496 = vpop.f32.mrf.mxu0
    %v2497 = vadd.f32 0.0, %v2496
    %2498 = vmatmul.f32.gmra.mxu0 %v2387
    %v2499 = vpop.f32.mrf.mxu0
    %v2500 = vadd.f32 0.0, %v2499
    %2501 = vmatmul.f32.gmra.mxu0 %v2390
    %v2502 = vpop.f32.mrf.mxu0
    %v2503 = vadd.f32 0.0, %v2502
    %2504 = vmatmul.f32.gmra.mxu0 %v2393
    %v2505 = vpop.f32.mrf.mxu0
    %v2506 = vadd.f32 0.0, %v2505
    %2507 = vmatmul.f32.gmra.mxu0 %v2396
    %v2508 = vpop.f32.mrf.mxu0
    %v2509 = vadd.f32 0.0, %v2508
    %2510 = vmatmul.f32.gmra.mxu0 %v2399
    %v2511 = vpop.f32.mrf.mxu0
    %v2512 = vadd.f32 0.0, %v2511
    %2513 = vmatmul.f32.gmra.mxu0 %v2402
    %v2514 = vpop.f32.mrf.mxu0
    %v2515 = vadd.f32 0.0, %v2514
    %2516 = vmatmul.f32.gmra.mxu0 %v2405
    %v2517 = vpop.f32.mrf.mxu0
    %v2518 = vadd.f32 0.0, %v2517
    %2519 = vmatmul.f32.gmra.mxu0 %v2408
    %v2520 = vpop.f32.mrf.mxu0
    %v2521 = vadd.f32 0.0, %v2520
    %2522 = vmatmul.f32.gmra.mxu0 %v2411
    %v2523 = vpop.f32.mrf.mxu0
    %v2524 = vadd.f32 0.0, %v2523
    %2525 = vdwg.mxu0
    %v2527 = vperm.slane %v1349, 0
    %v2529 = vadd.f32 %v2527, %v2431
    %v2530 = vadd.f32 %v2527, %v2434
    %v2531 = vadd.f32 %v2527, %v2437
    %v2532 = vadd.f32 %v2527, %v2440
    %v2533 = vadd.f32 %v2527, %v2443
    %v2534 = vadd.f32 %v2527, %v2446
    %v2535 = vadd.f32 %v2527, %v2449
    %v2536 = vadd.f32 %v2527, %v2452
    %v2537 = vadd.f32 %v2527, %v2455
    %v2538 = vadd.f32 %v2527, %v2458
    %v2539 = vadd.f32 %v2527, %v2461
    %v2540 = vadd.f32 %v2527, %v2464
    %v2541 = vadd.f32 %v2527, %v2467
    %v2542 = vadd.f32 %v2527, %v2470
    %v2543 = vadd.f32 %v2527, %v2473
    %v2544 = vadd.f32 %v2527, %v2476
    %v2545 = vadd.f32 %v2527, %v2479
    %v2546 = vadd.f32 %v2527, %v2482
    %v2547 = vadd.f32 %v2527, %v2485
    %v2548 = vadd.f32 %v2527, %v2488
    %v2549 = vadd.f32 %v2527, %v2491
    %v2550 = vadd.f32 %v2527, %v2494
    %v2551 = vadd.f32 %v2527, %v2497
    %v2552 = vadd.f32 %v2527, %v2500
    %v2553 = vadd.f32 %v2527, %v2503
    %v2554 = vadd.f32 %v2527, %v2506
    %v2555 = vadd.f32 %v2527, %v2509
    %v2556 = vadd.f32 %v2527, %v2512
    %v2557 = vadd.f32 %v2527, %v2515
    %v2558 = vadd.f32 %v2527, %v2518
    %v2559 = vadd.f32 %v2527, %v2521
    %v2560 = vadd.f32 %v2527, %v2524
    %2561 = vrot.lane.b32.xlu0 %v1253, 112
    %v2562 = vpop.permute.xlu0 %2561
    %2563 = vrot.lane.b32.xlu0 %v1254, 112
    %v2564 = vpop.permute.xlu0 %2563
    %2565 = vrot.lane.b32.xlu0 %v1255, 112
    %v2566 = vpop.permute.xlu0 %2565
    %2567 = vrot.lane.b32.xlu0 %v1256, 112
    %v2568 = vpop.permute.xlu0 %2567
    %2569 = vrot.lane.b32.xlu0 %v1257, 112
    %v2570 = vpop.permute.xlu0 %2569
    %2571 = vrot.lane.b32.xlu0 %v1258, 112
    %v2572 = vpop.permute.xlu0 %2571
    %2573 = vrot.lane.b32.xlu0 %v1259, 112
    %v2574 = vpop.permute.xlu0 %2573
    %2575 = vrot.lane.b32.xlu0 %v1260, 112
    %v2576 = vpop.permute.xlu0 %2575
    %2577 = vrot.lane.b32.xlu0 %v1261, 112
    %v2578 = vpop.permute.xlu0 %2577
    %2579 = vrot.lane.b32.xlu0 %v1262, 112
    %v2580 = vpop.permute.xlu0 %2579
    %2581 = vrot.lane.b32.xlu0 %v1263, 112
    %v2582 = vpop.permute.xlu0 %2581
    %2583 = vrot.lane.b32.xlu0 %v1264, 112
    %v2584 = vpop.permute.xlu0 %2583
    %2585 = vrot.lane.b32.xlu0 %v1265, 112
    %v2586 = vpop.permute.xlu0 %2585
    %2587 = vrot.lane.b32.xlu0 %v1266, 112
    %v2588 = vpop.permute.xlu0 %2587
    %2589 = vrot.lane.b32.xlu0 %v1267, 112
    %v2590 = vpop.permute.xlu0 %2589
    %2591 = vrot.lane.b32.xlu0 %v1268, 112
    %v2592 = vpop.permute.xlu0 %2591
    %2593 = vrot.lane.b32.xlu0 %v1269, 112
    %v2594 = vpop.permute.xlu0 %2593
    %2595 = vrot.lane.b32.xlu0 %v1270, 112
    %v2596 = vpop.permute.xlu0 %2595
    %2597 = vrot.lane.b32.xlu0 %v1271, 112
    %v2598 = vpop.permute.xlu0 %2597
    %2599 = vrot.lane.b32.xlu0 %v1272, 112
    %v2600 = vpop.permute.xlu0 %2599
    %2601 = vrot.lane.b32.xlu0 %v1273, 112
    %v2602 = vpop.permute.xlu0 %2601
    %2603 = vrot.lane.b32.xlu0 %v1274, 112
    %v2604 = vpop.permute.xlu0 %2603
    %2605 = vrot.lane.b32.xlu0 %v1275, 112
    %v2606 = vpop.permute.xlu0 %2605
    %2607 = vrot.lane.b32.xlu0 %v1276, 112
    %v2608 = vpop.permute.xlu0 %2607
    %2609 = vrot.lane.b32.xlu0 %v1277, 112
    %v2610 = vpop.permute.xlu0 %2609
    %2611 = vrot.lane.b32.xlu0 %v1278, 112
    %v2612 = vpop.permute.xlu0 %2611
    %2613 = vrot.lane.b32.xlu0 %v1279, 112
    %v2614 = vpop.permute.xlu0 %2613
    %2615 = vrot.lane.b32.xlu0 %v1280, 112
    %v2616 = vpop.permute.xlu0 %2615
    %2617 = vrot.lane.b32.xlu0 %v1281, 112
    %v2618 = vpop.permute.xlu0 %2617
    %2619 = vrot.lane.b32.xlu0 %v1282, 112
    %v2620 = vpop.permute.xlu0 %2619
    %2621 = vrot.lane.b32.xlu0 %v1283, 112
    %v2622 = vpop.permute.xlu0 %2621
    %2623 = vrot.lane.b32.xlu0 %v1284, 112
    %v2624 = vpop.permute.xlu0 %2623
    %2625 = vrot.lane.b32.xlu0 %v1253, 80
    %v2626 = vpop.permute.xlu0 %2625
    %2627 = vrot.lane.b32.xlu0 %v1254, 80
    %v2628 = vpop.permute.xlu0 %2627
    %2629 = vrot.lane.b32.xlu0 %v1255, 80
    %v2630 = vpop.permute.xlu0 %2629
    %2631 = vrot.lane.b32.xlu0 %v1256, 80
    %v2632 = vpop.permute.xlu0 %2631
    %2633 = vrot.lane.b32.xlu0 %v1257, 80
    %v2634 = vpop.permute.xlu0 %2633
    %2635 = vrot.lane.b32.xlu0 %v1258, 80
    %v2636 = vpop.permute.xlu0 %2635
    %2637 = vrot.lane.b32.xlu0 %v1259, 80
    %v2638 = vpop.permute.xlu0 %2637
    %2639 = vrot.lane.b32.xlu0 %v1260, 80
    %v2640 = vpop.permute.xlu0 %2639
    %2641 = vrot.lane.b32.xlu0 %v1261, 80
    %v2642 = vpop.permute.xlu0 %2641
    %2643 = vrot.lane.b32.xlu0 %v1262, 80
    %v2644 = vpop.permute.xlu0 %2643
    %2645 = vrot.lane.b32.xlu0 %v1263, 80
    %v2646 = vpop.permute.xlu0 %2645
    %2647 = vrot.lane.b32.xlu0 %v1264, 80
    %v2648 = vpop.permute.xlu0 %2647
    %2649 = vrot.lane.b32.xlu0 %v1265, 80
    %v2650 = vpop.permute.xlu0 %2649
    %2651 = vrot.lane.b32.xlu0 %v1266, 80
    %v2652 = vpop.permute.xlu0 %2651
    %2653 = vrot.lane.b32.xlu0 %v1267, 80
    %v2654 = vpop.permute.xlu0 %2653
    %2655 = vrot.lane.b32.xlu0 %v1268, 80
    %v2656 = vpop.permute.xlu0 %2655
    %2657 = vrot.lane.b32.xlu0 %v1269, 80
    %v2658 = vpop.permute.xlu0 %2657
    %2659 = vrot.lane.b32.xlu0 %v1270, 80
    %v2660 = vpop.permute.xlu0 %2659
    %2661 = vrot.lane.b32.xlu0 %v1271, 80
    %v2662 = vpop.permute.xlu0 %2661
    %2663 = vrot.lane.b32.xlu0 %v1272, 80
    %v2664 = vpop.permute.xlu0 %2663
    %2665 = vrot.lane.b32.xlu0 %v1273, 80
    %v2666 = vpop.permute.xlu0 %2665
    %2667 = vrot.lane.b32.xlu0 %v1274, 80
    %v2668 = vpop.permute.xlu0 %2667
    %2669 = vrot.lane.b32.xlu0 %v1275, 80
    %v2670 = vpop.permute.xlu0 %2669
    %2671 = vrot.lane.b32.xlu0 %v1276, 80
    %v2672 = vpop.permute.xlu0 %2671
    %2673 = vrot.lane.b32.xlu0 %v1277, 80
    %v2674 = vpop.permute.xlu0 %2673
    %2675 = vrot.lane.b32.xlu0 %v1278, 80
    %v2676 = vpop.permute.xlu0 %2675
    %2677 = vrot.lane.b32.xlu0 %v1279, 80
    %v2678 = vpop.permute.xlu0 %2677
    %2679 = vrot.lane.b32.xlu0 %v1280, 80
    %v2680 = vpop.permute.xlu0 %2679
    %2681 = vrot.lane.b32.xlu0 %v1281, 80
    %v2682 = vpop.permute.xlu0 %2681
    %2683 = vrot.lane.b32.xlu0 %v1282, 80
    %v2684 = vpop.permute.xlu0 %2683
    %2685 = vrot.lane.b32.xlu0 %v1283, 80
    %v2686 = vpop.permute.xlu0 %2685
    %2687 = vrot.lane.b32.xlu0 %v1284, 80
    %v2688 = vpop.permute.xlu0 %2687
    %v2689 = vsel %vm1446, %v2562, 0
    %v2691 = vsel %vm1446, %v2564, 0
    %v2693 = vsel %vm1446, %v2566, 0
    %v2695 = vsel %vm1446, %v2568, 0
    %v2697 = vsel %vm1446, %v2570, 0
    %v2699 = vsel %vm1446, %v2572, 0
    %v2701 = vsel %vm1446, %v2574, 0
    %v2703 = vsel %vm1446, %v2576, 0
    %v2705 = vsel %vm1446, %v2578, 0
    %v2707 = vsel %vm1446, %v2580, 0
    %v2709 = vsel %vm1446, %v2582, 0
    %v2711 = vsel %vm1446, %v2584, 0
    %v2713 = vsel %vm1446, %v2586, 0
    %v2715 = vsel %vm1446, %v2588, 0
    %v2717 = vsel %vm1446, %v2590, 0
    %v2719 = vsel %vm1446, %v2592, 0
    %v2721 = vsel %vm1446, %v2594, 0
    %v2723 = vsel %vm1446, %v2596, 0
    %v2725 = vsel %vm1446, %v2598, 0
    %v2727 = vsel %vm1446, %v2600, 0
    %v2729 = vsel %vm1446, %v2602, 0
    %v2731 = vsel %vm1446, %v2604, 0
    %v2733 = vsel %vm1446, %v2606, 0
    %v2735 = vsel %vm1446, %v2608, 0
    %v2737 = vsel %vm1446, %v2610, 0
    %v2739 = vsel %vm1446, %v2612, 0
    %v2741 = vsel %vm1446, %v2614, 0
    %v2743 = vsel %vm1446, %v2616, 0
    %v2745 = vsel %vm1446, %v2618, 0
    %v2747 = vsel %vm1446, %v2620, 0
    %v2749 = vsel %vm1446, %v2622, 0
    %v2751 = vsel %vm1446, %v2624, 0
    %v2753 = vsel %vm1446, %v2626, 0
    %v2755 = vsel %vm1446, %v2628, 0
    %v2757 = vsel %vm1446, %v2630, 0
    %v2759 = vsel %vm1446, %v2632, 0
    %v2761 = vsel %vm1446, %v2634, 0
    %v2763 = vsel %vm1446, %v2636, 0
    %v2765 = vsel %vm1446, %v2638, 0
    %v2767 = vsel %vm1446, %v2640, 0
    %v2769 = vsel %vm1446, %v2642, 0
    %v2771 = vsel %vm1446, %v2644, 0
    %v2773 = vsel %vm1446, %v2646, 0
    %v2775 = vsel %vm1446, %v2648, 0
    %v2777 = vsel %vm1446, %v2650, 0
    %v2779 = vsel %vm1446, %v2652, 0
    %v2781 = vsel %vm1446, %v2654, 0
    %v2783 = vsel %vm1446, %v2656, 0
    %v2785 = vsel %vm1446, %v2658, 0
    %v2787 = vsel %vm1446, %v2660, 0
    %v2789 = vsel %vm1446, %v2662, 0
    %v2791 = vsel %vm1446, %v2664, 0
    %v2793 = vsel %vm1446, %v2666, 0
    %v2795 = vsel %vm1446, %v2668, 0
    %v2797 = vsel %vm1446, %v2670, 0
    %v2799 = vsel %vm1446, %v2672, 0
    %v2801 = vsel %vm1446, %v2674, 0
    %v2803 = vsel %vm1446, %v2676, 0
    %v2805 = vsel %vm1446, %v2678, 0
    %v2807 = vsel %vm1446, %v2680, 0
    %v2809 = vsel %vm1446, %v2682, 0
    %v2811 = vsel %vm1446, %v2684, 0
    %v2813 = vsel %vm1446, %v2686, 0
    %v2815 = vsel %vm1446, %v2688, 0
    %2817 = vmatpush.xpose.msra.mxu0 %v2783
    %2818 = vmatpush.xpose.msra.mxu0 %v2781
    %2819 = vmatpush.xpose.msra.mxu0 %v2779
    %2820 = vmatpush.xpose.msra.mxu0 %v2777
    %2821 = vmatpush.xpose.msra.mxu0 %v2775
    %2822 = vmatpush.xpose.msra.mxu0 %v2773
    %2823 = vmatpush.xpose.msra.mxu0 %v2771
    %2824 = vmatpush.xpose.msra.mxu0 %v2769
    %2825 = vmatpush.xpose.msra.mxu0 %v2767
    %2826 = vmatpush.xpose.msra.mxu0 %v2765
    %2827 = vmatpush.xpose.msra.mxu0 %v2763
    %2828 = vmatpush.xpose.msra.mxu0 %v2761
    %2829 = vmatpush.xpose.msra.mxu0 %v2759
    %2830 = vmatpush.xpose.msra.mxu0 %v2757
    %2831 = vmatpush.xpose.msra.mxu0 %v2755
    %2832 = vmatpush.xpose.msra.mxu0 %v2753
    %2833 = vmatmul.f32.gmra.mxu0 %v2689
    %v2834 = vpop.f32.mrf.mxu0
    %v2835 = vadd.f32 0.0, %v2834
    %2836 = vmatmul.f32.gmra.mxu0 %v2691
    %v2837 = vpop.f32.mrf.mxu0
    %v2838 = vadd.f32 0.0, %v2837
    %2839 = vmatmul.f32.gmra.mxu0 %v2693
    %v2840 = vpop.f32.mrf.mxu0
    %v2841 = vadd.f32 0.0, %v2840
    %2842 = vmatmul.f32.gmra.mxu0 %v2695
    %v2843 = vpop.f32.mrf.mxu0
    %v2844 = vadd.f32 0.0, %v2843
    %2845 = vmatmul.f32.gmra.mxu0 %v2697
    %v2846 = vpop.f32.mrf.mxu0
    %v2847 = vadd.f32 0.0, %v2846
    %2848 = vmatmul.f32.gmra.mxu0 %v2699
    %v2849 = vpop.f32.mrf.mxu0
    %v2850 = vadd.f32 0.0, %v2849
    %2851 = vmatmul.f32.gmra.mxu0 %v2701
    %v2852 = vpop.f32.mrf.mxu0
    %v2853 = vadd.f32 0.0, %v2852
    %2854 = vmatmul.f32.gmra.mxu0 %v2703
    %v2855 = vpop.f32.mrf.mxu0
    %v2856 = vadd.f32 0.0, %v2855
    %2857 = vmatmul.f32.gmra.mxu0 %v2705
    %v2858 = vpop.f32.mrf.mxu0
    %v2859 = vadd.f32 0.0, %v2858
    %2860 = vmatmul.f32.gmra.mxu0 %v2707
    %v2861 = vpop.f32.mrf.mxu0
    %v2862 = vadd.f32 0.0, %v2861
    %2863 = vmatmul.f32.gmra.mxu0 %v2709
    %v2864 = vpop.f32.mrf.mxu0
    %v2865 = vadd.f32 0.0, %v2864
    %2866 = vmatmul.f32.gmra.mxu0 %v2711
    %v2867 = vpop.f32.mrf.mxu0
    %v2868 = vadd.f32 0.0, %v2867
    %2869 = vmatmul.f32.gmra.mxu0 %v2713
    %v2870 = vpop.f32.mrf.mxu0
    %v2871 = vadd.f32 0.0, %v2870
    %2872 = vmatmul.f32.gmra.mxu0 %v2715
    %v2873 = vpop.f32.mrf.mxu0
    %v2874 = vadd.f32 0.0, %v2873
    %2875 = vmatmul.f32.gmra.mxu0 %v2717
    %v2876 = vpop.f32.mrf.mxu0
    %v2877 = vadd.f32 0.0, %v2876
    %2878 = vmatmul.f32.gmra.mxu0 %v2719
    %v2879 = vpop.f32.mrf.mxu0
    %v2880 = vadd.f32 0.0, %v2879
    %2881 = vmatmul.f32.gmra.mxu0 %v2721
    %v2882 = vpop.f32.mrf.mxu0
    %v2883 = vadd.f32 0.0, %v2882
    %2884 = vmatmul.f32.gmra.mxu0 %v2723
    %v2885 = vpop.f32.mrf.mxu0
    %v2886 = vadd.f32 0.0, %v2885
    %2887 = vmatmul.f32.gmra.mxu0 %v2725
    %v2888 = vpop.f32.mrf.mxu0
    %v2889 = vadd.f32 0.0, %v2888
    %2890 = vmatmul.f32.gmra.mxu0 %v2727
    %v2891 = vpop.f32.mrf.mxu0
    %v2892 = vadd.f32 0.0, %v2891
    %2893 = vmatmul.f32.gmra.mxu0 %v2729
    %v2894 = vpop.f32.mrf.mxu0
    %v2895 = vadd.f32 0.0, %v2894
    %2896 = vmatmul.f32.gmra.mxu0 %v2731
    %v2897 = vpop.f32.mrf.mxu0
    %v2898 = vadd.f32 0.0, %v2897
    %2899 = vmatmul.f32.gmra.mxu0 %v2733
    %v2900 = vpop.f32.mrf.mxu0
    %v2901 = vadd.f32 0.0, %v2900
    %2902 = vmatmul.f32.gmra.mxu0 %v2735
    %v2903 = vpop.f32.mrf.mxu0
    %v2904 = vadd.f32 0.0, %v2903
    %2905 = vmatmul.f32.gmra.mxu0 %v2737
    %v2906 = vpop.f32.mrf.mxu0
    %v2907 = vadd.f32 0.0, %v2906
    %2908 = vmatmul.f32.gmra.mxu0 %v2739
    %v2909 = vpop.f32.mrf.mxu0
    %v2910 = vadd.f32 0.0, %v2909
    %2911 = vmatmul.f32.gmra.mxu0 %v2741
    %v2912 = vpop.f32.mrf.mxu0
    %v2913 = vadd.f32 0.0, %v2912
    %2914 = vmatmul.f32.gmra.mxu0 %v2743
    %v2915 = vpop.f32.mrf.mxu0
    %v2916 = vadd.f32 0.0, %v2915
    %2917 = vmatmul.f32.gmra.mxu0 %v2745
    %v2918 = vpop.f32.mrf.mxu0
    %v2919 = vadd.f32 0.0, %v2918
    %2920 = vmatmul.f32.gmra.mxu0 %v2747
    %v2921 = vpop.f32.mrf.mxu0
    %v2922 = vadd.f32 0.0, %v2921
    %2923 = vmatmul.f32.gmra.mxu0 %v2749
    %v2924 = vpop.f32.mrf.mxu0
    %v2925 = vadd.f32 0.0, %v2924
    %2926 = vmatmul.f32.gmra.mxu0 %v2751
    %v2927 = vpop.f32.mrf.mxu0
    %v2928 = vadd.f32 0.0, %v2927
    %2929 = vdwg.mxu0
    %2930 = vmatpush.xpose.msra.mxu0 %v2815
    %2931 = vmatpush.xpose.msra.mxu0 %v2813
    %2932 = vmatpush.xpose.msra.mxu0 %v2811
    %2933 = vmatpush.xpose.msra.mxu0 %v2809
    %2934 = vmatpush.xpose.msra.mxu0 %v2807
    %2935 = vmatpush.xpose.msra.mxu0 %v2805
    %2936 = vmatpush.xpose.msra.mxu0 %v2803
    %2937 = vmatpush.xpose.msra.mxu0 %v2801
    %2938 = vmatpush.xpose.msra.mxu0 %v2799
    %2939 = vmatpush.xpose.msra.mxu0 %v2797
    %2940 = vmatpush.xpose.msra.mxu0 %v2795
    %2941 = vmatpush.xpose.msra.mxu0 %v2793
    %2942 = vmatpush.xpose.msra.mxu0 %v2791
    %2943 = vmatpush.xpose.msra.mxu0 %v2789
    %2944 = vmatpush.xpose.msra.mxu0 %v2787
    %2945 = vmatpush.xpose.msra.mxu0 %v2785
    %2946 = vmatmul.f32.gmra.mxu0 %v2689
    %v2947 = vpop.f32.mrf.mxu0
    %v2948 = vadd.f32 0.0, %v2947
    %2949 = vmatmul.f32.gmra.mxu0 %v2691
    %v2950 = vpop.f32.mrf.mxu0
    %v2951 = vadd.f32 0.0, %v2950
    %2952 = vmatmul.f32.gmra.mxu0 %v2693
    %v2953 = vpop.f32.mrf.mxu0
    %v2954 = vadd.f32 0.0, %v2953
    %2955 = vmatmul.f32.gmra.mxu0 %v2695
    %v2956 = vpop.f32.mrf.mxu0
    %v2957 = vadd.f32 0.0, %v2956
    %2958 = vmatmul.f32.gmra.mxu0 %v2697
    %v2959 = vpop.f32.mrf.mxu0
    %v2960 = vadd.f32 0.0, %v2959
    %2961 = vmatmul.f32.gmra.mxu0 %v2699
    %v2962 = vpop.f32.mrf.mxu0
    %v2963 = vadd.f32 0.0, %v2962
    %2964 = vmatmul.f32.gmra.mxu0 %v2701
    %v2965 = vpop.f32.mrf.mxu0
    %v2966 = vadd.f32 0.0, %v2965
    %2967 = vmatmul.f32.gmra.mxu0 %v2703
    %v2968 = vpop.f32.mrf.mxu0
    %v2969 = vadd.f32 0.0, %v2968
    %2970 = vmatmul.f32.gmra.mxu0 %v2705
    %v2971 = vpop.f32.mrf.mxu0
    %v2972 = vadd.f32 0.0, %v2971
    %2973 = vmatmul.f32.gmra.mxu0 %v2707
    %v2974 = vpop.f32.mrf.mxu0
    %v2975 = vadd.f32 0.0, %v2974
    %2976 = vmatmul.f32.gmra.mxu0 %v2709
    %v2977 = vpop.f32.mrf.mxu0
    %v2978 = vadd.f32 0.0, %v2977
    %2979 = vmatmul.f32.gmra.mxu0 %v2711
    %v2980 = vpop.f32.mrf.mxu0
    %v2981 = vadd.f32 0.0, %v2980
    %2982 = vmatmul.f32.gmra.mxu0 %v2713
    %v2983 = vpop.f32.mrf.mxu0
    %v2984 = vadd.f32 0.0, %v2983
    %2985 = vmatmul.f32.gmra.mxu0 %v2715
    %v2986 = vpop.f32.mrf.mxu0
    %v2987 = vadd.f32 0.0, %v2986
    %2988 = vmatmul.f32.gmra.mxu0 %v2717
    %v2989 = vpop.f32.mrf.mxu0
    %v2990 = vadd.f32 0.0, %v2989
    %2991 = vmatmul.f32.gmra.mxu0 %v2719
    %v2992 = vpop.f32.mrf.mxu0
    %v2993 = vadd.f32 0.0, %v2992
    %2994 = vmatmul.f32.gmra.mxu0 %v2721
    %v2995 = vpop.f32.mrf.mxu0
    %v2996 = vadd.f32 0.0, %v2995
    %2997 = vmatmul.f32.gmra.mxu0 %v2723
    %v2998 = vpop.f32.mrf.mxu0
    %v2999 = vadd.f32 0.0, %v2998
    %3000 = vmatmul.f32.gmra.mxu0 %v2725
    %v3001 = vpop.f32.mrf.mxu0
    %v3002 = vadd.f32 0.0, %v3001
    %3003 = vmatmul.f32.gmra.mxu0 %v2727
    %v3004 = vpop.f32.mrf.mxu0
    %v3005 = vadd.f32 0.0, %v3004
    %3006 = vmatmul.f32.gmra.mxu0 %v2729
    %v3007 = vpop.f32.mrf.mxu0
    %v3008 = vadd.f32 0.0, %v3007
    %3009 = vmatmul.f32.gmra.mxu0 %v2731
    %v3010 = vpop.f32.mrf.mxu0
    %v3011 = vadd.f32 0.0, %v3010
    %3012 = vmatmul.f32.gmra.mxu0 %v2733
    %v3013 = vpop.f32.mrf.mxu0
    %v3014 = vadd.f32 0.0, %v3013
    %3015 = vmatmul.f32.gmra.mxu0 %v2735
    %v3016 = vpop.f32.mrf.mxu0
    %v3017 = vadd.f32 0.0, %v3016
    %3018 = vmatmul.f32.gmra.mxu0 %v2737
    %v3019 = vpop.f32.mrf.mxu0
    %v3020 = vadd.f32 0.0, %v3019
    %3021 = vmatmul.f32.gmra.mxu0 %v2739
    %v3022 = vpop.f32.mrf.mxu0
    %v3023 = vadd.f32 0.0, %v3022
    %3024 = vmatmul.f32.gmra.mxu0 %v2741
    %v3025 = vpop.f32.mrf.mxu0
    %v3026 = vadd.f32 0.0, %v3025
    %3027 = vmatmul.f32.gmra.mxu0 %v2743
    %v3028 = vpop.f32.mrf.mxu0
    %v3029 = vadd.f32 0.0, %v3028
    %3030 = vmatmul.f32.gmra.mxu0 %v2745
    %v3031 = vpop.f32.mrf.mxu0
    %v3032 = vadd.f32 0.0, %v3031
    %3033 = vmatmul.f32.gmra.mxu0 %v2747
    %v3034 = vpop.f32.mrf.mxu0
    %v3035 = vadd.f32 0.0, %v3034
    %3036 = vmatmul.f32.gmra.mxu0 %v2749
    %v3037 = vpop.f32.mrf.mxu0
    %v3038 = vadd.f32 0.0, %v3037
    %3039 = vmatmul.f32.gmra.mxu0 %v2751
    %v3040 = vpop.f32.mrf.mxu0
    %v3041 = vadd.f32 0.0, %v3040
    %3042 = vdwg.mxu0
    %v3043 = vmul.f32 %v2835, 0.25
    %v3044 = vmul.f32 %v2948, 0.25
    %v3045 = vmul.f32 %v2838, 0.25
    %v3046 = vmul.f32 %v2951, 0.25
    %v3047 = vmul.f32 %v2841, 0.25
    %v3048 = vmul.f32 %v2954, 0.25
    %v3049 = vmul.f32 %v2844, 0.25
    %v3050 = vmul.f32 %v2957, 0.25
    %v3051 = vmul.f32 %v2847, 0.25
    %v3052 = vmul.f32 %v2960, 0.25
    %v3053 = vmul.f32 %v2850, 0.25
    %v3054 = vmul.f32 %v2963, 0.25
    %v3055 = vmul.f32 %v2853, 0.25
    %v3056 = vmul.f32 %v2966, 0.25
    %v3057 = vmul.f32 %v2856, 0.25
    %v3058 = vmul.f32 %v2969, 0.25
    %v3059 = vmul.f32 %v2859, 0.25
    %v3060 = vmul.f32 %v2972, 0.25
    %v3061 = vmul.f32 %v2862, 0.25
    %v3062 = vmul.f32 %v2975, 0.25
    %v3063 = vmul.f32 %v2865, 0.25
    %v3064 = vmul.f32 %v2978, 0.25
    %v3065 = vmul.f32 %v2868, 0.25
    %v3066 = vmul.f32 %v2981, 0.25
    %v3067 = vmul.f32 %v2871, 0.25
    %v3068 = vmul.f32 %v2984, 0.25
    %v3069 = vmul.f32 %v2874, 0.25
    %v3070 = vmul.f32 %v2987, 0.25
    %v3071 = vmul.f32 %v2877, 0.25
    %v3072 = vmul.f32 %v2990, 0.25
    %v3073 = vmul.f32 %v2880, 0.25
    %v3074 = vmul.f32 %v2993, 0.25
    %v3075 = vmul.f32 %v2883, 0.25
    %v3076 = vmul.f32 %v2996, 0.25
    %v3077 = vmul.f32 %v2886, 0.25
    %v3078 = vmul.f32 %v2999, 0.25
    %v3079 = vmul.f32 %v2889, 0.25
    %v3080 = vmul.f32 %v3002, 0.25
    %v3081 = vmul.f32 %v2892, 0.25
    %v3082 = vmul.f32 %v3005, 0.25
    %v3083 = vmul.f32 %v2895, 0.25
    %v3084 = vmul.f32 %v3008, 0.25
    %v3085 = vmul.f32 %v2898, 0.25
    %v3086 = vmul.f32 %v3011, 0.25
    %v3087 = vmul.f32 %v2901, 0.25
    %v3088 = vmul.f32 %v3014, 0.25
    %v3089 = vmul.f32 %v2904, 0.25
    %v3090 = vmul.f32 %v3017, 0.25
    %v3091 = vmul.f32 %v2907, 0.25
    %v3092 = vmul.f32 %v3020, 0.25
    %v3093 = vmul.f32 %v2910, 0.25
    %v3094 = vmul.f32 %v3023, 0.25
    %v3095 = vmul.f32 %v2913, 0.25
    %v3096 = vmul.f32 %v3026, 0.25
    %v3097 = vmul.f32 %v2916, 0.25
    %v3098 = vmul.f32 %v3029, 0.25
    %v3099 = vmul.f32 %v2919, 0.25
    %v3100 = vmul.f32 %v3032, 0.25
    %v3101 = vmul.f32 %v2922, 0.25
    %v3102 = vmul.f32 %v3035, 0.25
    %v3103 = vmul.f32 %v2925, 0.25
    %v3104 = vmul.f32 %v3038, 0.25
    %v3105 = vmul.f32 %v2928, 0.25
    %v3106 = vmul.f32 %v3041, 0.25
    %v3107 = vmax.f32 %v3043, 0.0
    %v3108 = vmax.f32 %v3044, 0.0
    %v3109 = vmax.f32 %v3045, 0.0
    %v3110 = vmax.f32 %v3046, 0.0
    %v3111 = vmax.f32 %v3047, 0.0
    %v3112 = vmax.f32 %v3048, 0.0
    %v3113 = vmax.f32 %v3049, 0.0
    %v3114 = vmax.f32 %v3050, 0.0
    %v3115 = vmax.f32 %v3051, 0.0
    %v3116 = vmax.f32 %v3052, 0.0
    %v3117 = vmax.f32 %v3053, 0.0
    %v3118 = vmax.f32 %v3054, 0.0
    %v3119 = vmax.f32 %v3055, 0.0
    %v3120 = vmax.f32 %v3056, 0.0
    %v3121 = vmax.f32 %v3057, 0.0
    %v3122 = vmax.f32 %v3058, 0.0
    %v3123 = vmax.f32 %v3059, 0.0
    %v3124 = vmax.f32 %v3060, 0.0
    %v3125 = vmax.f32 %v3061, 0.0
    %v3126 = vmax.f32 %v3062, 0.0
    %v3127 = vmax.f32 %v3063, 0.0
    %v3128 = vmax.f32 %v3064, 0.0
    %v3129 = vmax.f32 %v3065, 0.0
    %v3130 = vmax.f32 %v3066, 0.0
    %v3131 = vmax.f32 %v3067, 0.0
    %v3132 = vmax.f32 %v3068, 0.0
    %v3133 = vmax.f32 %v3069, 0.0
    %v3134 = vmax.f32 %v3070, 0.0
    %v3135 = vmax.f32 %v3071, 0.0
    %v3136 = vmax.f32 %v3072, 0.0
    %v3137 = vmax.f32 %v3073, 0.0
    %v3138 = vmax.f32 %v3074, 0.0
    %v3139 = vmax.f32 %v3075, 0.0
    %v3140 = vmax.f32 %v3076, 0.0
    %v3141 = vmax.f32 %v3077, 0.0
    %v3142 = vmax.f32 %v3078, 0.0
    %v3143 = vmax.f32 %v3079, 0.0
    %v3144 = vmax.f32 %v3080, 0.0
    %v3145 = vmax.f32 %v3081, 0.0
    %v3146 = vmax.f32 %v3082, 0.0
    %v3147 = vmax.f32 %v3083, 0.0
    %v3148 = vmax.f32 %v3084, 0.0
    %v3149 = vmax.f32 %v3085, 0.0
    %v3150 = vmax.f32 %v3086, 0.0
    %v3151 = vmax.f32 %v3087, 0.0
    %v3152 = vmax.f32 %v3088, 0.0
    %v3153 = vmax.f32 %v3089, 0.0
    %v3154 = vmax.f32 %v3090, 0.0
    %v3155 = vmax.f32 %v3091, 0.0
    %v3156 = vmax.f32 %v3092, 0.0
    %v3157 = vmax.f32 %v3093, 0.0
    %v3158 = vmax.f32 %v3094, 0.0
    %v3159 = vmax.f32 %v3095, 0.0
    %v3160 = vmax.f32 %v3096, 0.0
    %v3161 = vmax.f32 %v3097, 0.0
    %v3162 = vmax.f32 %v3098, 0.0
    %v3163 = vmax.f32 %v3099, 0.0
    %v3164 = vmax.f32 %v3100, 0.0
    %v3165 = vmax.f32 %v3101, 0.0
    %v3166 = vmax.f32 %v3102, 0.0
    %v3167 = vmax.f32 %v3103, 0.0
    %v3168 = vmax.f32 %v3104, 0.0
    %v3169 = vmax.f32 %v3105, 0.0
    %v3170 = vmax.f32 %v3106, 0.0
    %v3171 = vmul.f32 %v3107, %v1285
    %v3172 = vmul.f32 %v3108, %v1286
    %v3173 = vmul.f32 %v3109, %v1287
    %v3174 = vmul.f32 %v3110, %v1288
    %v3175 = vmul.f32 %v3111, %v1289
    %v3176 = vmul.f32 %v3112, %v1290
    %v3177 = vmul.f32 %v3113, %v1291
    %v3178 = vmul.f32 %v3114, %v1292
    %v3179 = vmul.f32 %v3115, %v1293
    %v3180 = vmul.f32 %v3116, %v1294
    %v3181 = vmul.f32 %v3117, %v1295
    %v3182 = vmul.f32 %v3118, %v1296
    %v3183 = vmul.f32 %v3119, %v1297
    %v3184 = vmul.f32 %v3120, %v1298
    %v3185 = vmul.f32 %v3121, %v1299
    %v3186 = vmul.f32 %v3122, %v1300
    %v3187 = vmul.f32 %v3123, %v1301
    %v3188 = vmul.f32 %v3124, %v1302
    %v3189 = vmul.f32 %v3125, %v1303
    %v3190 = vmul.f32 %v3126, %v1304
    %v3191 = vmul.f32 %v3127, %v1305
    %v3192 = vmul.f32 %v3128, %v1306
    %v3193 = vmul.f32 %v3129, %v1307
    %v3194 = vmul.f32 %v3130, %v1308
    %v3195 = vmul.f32 %v3131, %v1309
    %v3196 = vmul.f32 %v3132, %v1310
    %v3197 = vmul.f32 %v3133, %v1311
    %v3198 = vmul.f32 %v3134, %v1312
    %v3199 = vmul.f32 %v3135, %v1313
    %v3200 = vmul.f32 %v3136, %v1314
    %v3201 = vmul.f32 %v3137, %v1315
    %v3202 = vmul.f32 %v3138, %v1316
    %v3203 = vmul.f32 %v3139, %v1317
    %v3204 = vmul.f32 %v3140, %v1318
    %v3205 = vmul.f32 %v3141, %v1319
    %v3206 = vmul.f32 %v3142, %v1320
    %v3207 = vmul.f32 %v3143, %v1321
    %v3208 = vmul.f32 %v3144, %v1322
    %v3209 = vmul.f32 %v3145, %v1323
    %v3210 = vmul.f32 %v3146, %v1324
    %v3211 = vmul.f32 %v3147, %v1325
    %v3212 = vmul.f32 %v3148, %v1326
    %v3213 = vmul.f32 %v3149, %v1327
    %v3214 = vmul.f32 %v3150, %v1328
    %v3215 = vmul.f32 %v3151, %v1329
    %v3216 = vmul.f32 %v3152, %v1330
    %v3217 = vmul.f32 %v3153, %v1331
    %v3218 = vmul.f32 %v3154, %v1332
    %v3219 = vmul.f32 %v3155, %v1333
    %v3220 = vmul.f32 %v3156, %v1334
    %v3221 = vmul.f32 %v3157, %v1335
    %v3222 = vmul.f32 %v3158, %v1336
    %v3223 = vmul.f32 %v3159, %v1337
    %v3224 = vmul.f32 %v3160, %v1338
    %v3225 = vmul.f32 %v3161, %v1339
    %v3226 = vmul.f32 %v3162, %v1340
    %v3227 = vmul.f32 %v3163, %v1341
    %v3228 = vmul.f32 %v3164, %v1342
    %v3229 = vmul.f32 %v3165, %v1343
    %v3230 = vmul.f32 %v3166, %v1344
    %v3231 = vmul.f32 %v3167, %v1345
    %v3232 = vmul.f32 %v3168, %v1346
    %v3233 = vmul.f32 %v3169, %v1347
    %v3234 = vmul.f32 %v3170, %v1348
    %3235 = vrot.lane.b32.xlu0 %v1253, 48
    %v3236 = vpop.permute.xlu0 %3235
    %3237 = vrot.lane.b32.xlu0 %v1254, 48
    %v3238 = vpop.permute.xlu0 %3237
    %3239 = vrot.lane.b32.xlu0 %v1255, 48
    %v3240 = vpop.permute.xlu0 %3239
    %3241 = vrot.lane.b32.xlu0 %v1256, 48
    %v3242 = vpop.permute.xlu0 %3241
    %3243 = vrot.lane.b32.xlu0 %v1257, 48
    %v3244 = vpop.permute.xlu0 %3243
    %3245 = vrot.lane.b32.xlu0 %v1258, 48
    %v3246 = vpop.permute.xlu0 %3245
    %3247 = vrot.lane.b32.xlu0 %v1259, 48
    %v3248 = vpop.permute.xlu0 %3247
    %3249 = vrot.lane.b32.xlu0 %v1260, 48
    %v3250 = vpop.permute.xlu0 %3249
    %3251 = vrot.lane.b32.xlu0 %v1261, 48
    %v3252 = vpop.permute.xlu0 %3251
    %3253 = vrot.lane.b32.xlu0 %v1262, 48
    %v3254 = vpop.permute.xlu0 %3253
    %3255 = vrot.lane.b32.xlu0 %v1263, 48
    %v3256 = vpop.permute.xlu0 %3255
    %3257 = vrot.lane.b32.xlu0 %v1264, 48
    %v3258 = vpop.permute.xlu0 %3257
    %3259 = vrot.lane.b32.xlu0 %v1265, 48
    %v3260 = vpop.permute.xlu0 %3259
    %3261 = vrot.lane.b32.xlu0 %v1266, 48
    %v3262 = vpop.permute.xlu0 %3261
    %3263 = vrot.lane.b32.xlu0 %v1267, 48
    %v3264 = vpop.permute.xlu0 %3263
    %3265 = vrot.lane.b32.xlu0 %v1268, 48
    %v3266 = vpop.permute.xlu0 %3265
    %3267 = vrot.lane.b32.xlu0 %v1269, 48
    %v3268 = vpop.permute.xlu0 %3267
    %3269 = vrot.lane.b32.xlu0 %v1270, 48
    %v3270 = vpop.permute.xlu0 %3269
    %3271 = vrot.lane.b32.xlu0 %v1271, 48
    %v3272 = vpop.permute.xlu0 %3271
    %3273 = vrot.lane.b32.xlu0 %v1272, 48
    %v3274 = vpop.permute.xlu0 %3273
    %3275 = vrot.lane.b32.xlu0 %v1273, 48
    %v3276 = vpop.permute.xlu0 %3275
    %3277 = vrot.lane.b32.xlu0 %v1274, 48
    %v3278 = vpop.permute.xlu0 %3277
    %3279 = vrot.lane.b32.xlu0 %v1275, 48
    %v3280 = vpop.permute.xlu0 %3279
    %3281 = vrot.lane.b32.xlu0 %v1276, 48
    %v3282 = vpop.permute.xlu0 %3281
    %3283 = vrot.lane.b32.xlu0 %v1277, 48
    %v3284 = vpop.permute.xlu0 %3283
    %3285 = vrot.lane.b32.xlu0 %v1278, 48
    %v3286 = vpop.permute.xlu0 %3285
    %3287 = vrot.lane.b32.xlu0 %v1279, 48
    %v3288 = vpop.permute.xlu0 %3287
    %3289 = vrot.lane.b32.xlu0 %v1280, 48
    %v3290 = vpop.permute.xlu0 %3289
    %3291 = vrot.lane.b32.xlu0 %v1281, 48
    %v3292 = vpop.permute.xlu0 %3291
    %3293 = vrot.lane.b32.xlu0 %v1282, 48
    %v3294 = vpop.permute.xlu0 %3293
    %3295 = vrot.lane.b32.xlu0 %v1283, 48
    %v3296 = vpop.permute.xlu0 %3295
    %3297 = vrot.lane.b32.xlu0 %v1284, 48
    %v3298 = vpop.permute.xlu0 %3297
    %3331 = vmatpush.msra.mxu0 %v3266
    %3332 = vmatpush.msra.mxu0 %v3264
    %3333 = vmatpush.msra.mxu0 %v3262
    %3334 = vmatpush.msra.mxu0 %v3260
    %3335 = vmatpush.msra.mxu0 %v3258
    %3336 = vmatpush.msra.mxu0 %v3256
    %3337 = vmatpush.msra.mxu0 %v3254
    %3338 = vmatpush.msra.mxu0 %v3252
    %3339 = vmatpush.msra.mxu0 %v3250
    %3340 = vmatpush.msra.mxu0 %v3248
    %3341 = vmatpush.msra.mxu0 %v3246
    %3342 = vmatpush.msra.mxu0 %v3244
    %3343 = vmatpush.msra.mxu0 %v3242
    %3344 = vmatpush.msra.mxu0 %v3240
    %3345 = vmatpush.msra.mxu0 %v3238
    %3346 = vmatpush.msra.mxu0 %v3236
    %3347 = vmatmul.f32.gmra.mxu0 %v3171
    %v3348 = vpop.f32.mrf.mxu0
    %v3349 = vadd.f32 0.0, %v3348
    %3350 = vmatmul.f32.gmra.mxu0 %v3173
    %v3351 = vpop.f32.mrf.mxu0
    %v3352 = vadd.f32 0.0, %v3351
    %3353 = vmatmul.f32.gmra.mxu0 %v3175
    %v3354 = vpop.f32.mrf.mxu0
    %v3355 = vadd.f32 0.0, %v3354
    %3356 = vmatmul.f32.gmra.mxu0 %v3177
    %v3357 = vpop.f32.mrf.mxu0
    %v3358 = vadd.f32 0.0, %v3357
    %3359 = vmatmul.f32.gmra.mxu0 %v3179
    %v3360 = vpop.f32.mrf.mxu0
    %v3361 = vadd.f32 0.0, %v3360
    %3362 = vmatmul.f32.gmra.mxu0 %v3181
    %v3363 = vpop.f32.mrf.mxu0
    %v3364 = vadd.f32 0.0, %v3363
    %3365 = vmatmul.f32.gmra.mxu0 %v3183
    %v3366 = vpop.f32.mrf.mxu0
    %v3367 = vadd.f32 0.0, %v3366
    %3368 = vmatmul.f32.gmra.mxu0 %v3185
    %v3369 = vpop.f32.mrf.mxu0
    %v3370 = vadd.f32 0.0, %v3369
    %3371 = vmatmul.f32.gmra.mxu0 %v3187
    %v3372 = vpop.f32.mrf.mxu0
    %v3373 = vadd.f32 0.0, %v3372
    %3374 = vmatmul.f32.gmra.mxu0 %v3189
    %v3375 = vpop.f32.mrf.mxu0
    %v3376 = vadd.f32 0.0, %v3375
    %3377 = vmatmul.f32.gmra.mxu0 %v3191
    %v3378 = vpop.f32.mrf.mxu0
    %v3379 = vadd.f32 0.0, %v3378
    %3380 = vmatmul.f32.gmra.mxu0 %v3193
    %v3381 = vpop.f32.mrf.mxu0
    %v3382 = vadd.f32 0.0, %v3381
    %3383 = vmatmul.f32.gmra.mxu0 %v3195
    %v3384 = vpop.f32.mrf.mxu0
    %v3385 = vadd.f32 0.0, %v3384
    %3386 = vmatmul.f32.gmra.mxu0 %v3197
    %v3387 = vpop.f32.mrf.mxu0
    %v3388 = vadd.f32 0.0, %v3387
    %3389 = vmatmul.f32.gmra.mxu0 %v3199
    %v3390 = vpop.f32.mrf.mxu0
    %v3391 = vadd.f32 0.0, %v3390
    %3392 = vmatmul.f32.gmra.mxu0 %v3201
    %v3393 = vpop.f32.mrf.mxu0
    %v3394 = vadd.f32 0.0, %v3393
    %3395 = vmatmul.f32.gmra.mxu0 %v3203
    %v3396 = vpop.f32.mrf.mxu0
    %v3397 = vadd.f32 0.0, %v3396
    %3398 = vmatmul.f32.gmra.mxu0 %v3205
    %v3399 = vpop.f32.mrf.mxu0
    %v3400 = vadd.f32 0.0, %v3399
    %3401 = vmatmul.f32.gmra.mxu0 %v3207
    %v3402 = vpop.f32.mrf.mxu0
    %v3403 = vadd.f32 0.0, %v3402
    %3404 = vmatmul.f32.gmra.mxu0 %v3209
    %v3405 = vpop.f32.mrf.mxu0
    %v3406 = vadd.f32 0.0, %v3405
    %3407 = vmatmul.f32.gmra.mxu0 %v3211
    %v3408 = vpop.f32.mrf.mxu0
    %v3409 = vadd.f32 0.0, %v3408
    %3410 = vmatmul.f32.gmra.mxu0 %v3213
    %v3411 = vpop.f32.mrf.mxu0
    %v3412 = vadd.f32 0.0, %v3411
    %3413 = vmatmul.f32.gmra.mxu0 %v3215
    %v3414 = vpop.f32.mrf.mxu0
    %v3415 = vadd.f32 0.0, %v3414
    %3416 = vmatmul.f32.gmra.mxu0 %v3217
    %v3417 = vpop.f32.mrf.mxu0
    %v3418 = vadd.f32 0.0, %v3417
    %3419 = vmatmul.f32.gmra.mxu0 %v3219
    %v3420 = vpop.f32.mrf.mxu0
    %v3421 = vadd.f32 0.0, %v3420
    %3422 = vmatmul.f32.gmra.mxu0 %v3221
    %v3423 = vpop.f32.mrf.mxu0
    %v3424 = vadd.f32 0.0, %v3423
    %3425 = vmatmul.f32.gmra.mxu0 %v3223
    %v3426 = vpop.f32.mrf.mxu0
    %v3427 = vadd.f32 0.0, %v3426
    %3428 = vmatmul.f32.gmra.mxu0 %v3225
    %v3429 = vpop.f32.mrf.mxu0
    %v3430 = vadd.f32 0.0, %v3429
    %3431 = vmatmul.f32.gmra.mxu0 %v3227
    %v3432 = vpop.f32.mrf.mxu0
    %v3433 = vadd.f32 0.0, %v3432
    %3434 = vmatmul.f32.gmra.mxu0 %v3229
    %v3435 = vpop.f32.mrf.mxu0
    %v3436 = vadd.f32 0.0, %v3435
    %3437 = vmatmul.f32.gmra.mxu0 %v3231
    %v3438 = vpop.f32.mrf.mxu0
    %v3439 = vadd.f32 0.0, %v3438
    %3440 = vmatmul.f32.gmra.mxu0 %v3233
    %v3441 = vpop.f32.mrf.mxu0
    %v3442 = vadd.f32 0.0, %v3441
    %3443 = vdwg.mxu0
    %3444 = vmatpush.msra.mxu0 %v3298
    %3445 = vmatpush.msra.mxu0 %v3296
    %3446 = vmatpush.msra.mxu0 %v3294
    %3447 = vmatpush.msra.mxu0 %v3292
    %3448 = vmatpush.msra.mxu0 %v3290
    %3449 = vmatpush.msra.mxu0 %v3288
    %3450 = vmatpush.msra.mxu0 %v3286
    %3451 = vmatpush.msra.mxu0 %v3284
    %3452 = vmatpush.msra.mxu0 %v3282
    %3453 = vmatpush.msra.mxu0 %v3280
    %3454 = vmatpush.msra.mxu0 %v3278
    %3455 = vmatpush.msra.mxu0 %v3276
    %3456 = vmatpush.msra.mxu0 %v3274
    %3457 = vmatpush.msra.mxu0 %v3272
    %3458 = vmatpush.msra.mxu0 %v3270
    %3459 = vmatpush.msra.mxu0 %v3268
    %3460 = vmatmul.f32.gmra.mxu0 %v3172
    %v3461 = vpop.f32.mrf.mxu0
    %v3462 = vadd.f32 %v3349, %v3461
    %3463 = vmatmul.f32.gmra.mxu0 %v3174
    %v3464 = vpop.f32.mrf.mxu0
    %v3465 = vadd.f32 %v3352, %v3464
    %3466 = vmatmul.f32.gmra.mxu0 %v3176
    %v3467 = vpop.f32.mrf.mxu0
    %v3468 = vadd.f32 %v3355, %v3467
    %3469 = vmatmul.f32.gmra.mxu0 %v3178
    %v3470 = vpop.f32.mrf.mxu0
    %v3471 = vadd.f32 %v3358, %v3470
    %3472 = vmatmul.f32.gmra.mxu0 %v3180
    %v3473 = vpop.f32.mrf.mxu0
    %v3474 = vadd.f32 %v3361, %v3473
    %3475 = vmatmul.f32.gmra.mxu0 %v3182
    %v3476 = vpop.f32.mrf.mxu0
    %v3477 = vadd.f32 %v3364, %v3476
    %3478 = vmatmul.f32.gmra.mxu0 %v3184
    %v3479 = vpop.f32.mrf.mxu0
    %v3480 = vadd.f32 %v3367, %v3479
    %3481 = vmatmul.f32.gmra.mxu0 %v3186
    %v3482 = vpop.f32.mrf.mxu0
    %v3483 = vadd.f32 %v3370, %v3482
    %3484 = vmatmul.f32.gmra.mxu0 %v3188
    %v3485 = vpop.f32.mrf.mxu0
    %v3486 = vadd.f32 %v3373, %v3485
    %3487 = vmatmul.f32.gmra.mxu0 %v3190
    %v3488 = vpop.f32.mrf.mxu0
    %v3489 = vadd.f32 %v3376, %v3488
    %3490 = vmatmul.f32.gmra.mxu0 %v3192
    %v3491 = vpop.f32.mrf.mxu0
    %v3492 = vadd.f32 %v3379, %v3491
    %3493 = vmatmul.f32.gmra.mxu0 %v3194
    %v3494 = vpop.f32.mrf.mxu0
    %v3495 = vadd.f32 %v3382, %v3494
    %3496 = vmatmul.f32.gmra.mxu0 %v3196
    %v3497 = vpop.f32.mrf.mxu0
    %v3498 = vadd.f32 %v3385, %v3497
    %3499 = vmatmul.f32.gmra.mxu0 %v3198
    %v3500 = vpop.f32.mrf.mxu0
    %v3501 = vadd.f32 %v3388, %v3500
    %3502 = vmatmul.f32.gmra.mxu0 %v3200
    %v3503 = vpop.f32.mrf.mxu0
    %v3504 = vadd.f32 %v3391, %v3503
    %3505 = vmatmul.f32.gmra.mxu0 %v3202
    %v3506 = vpop.f32.mrf.mxu0
    %v3507 = vadd.f32 %v3394, %v3506
    %3508 = vmatmul.f32.gmra.mxu0 %v3204
    %v3509 = vpop.f32.mrf.mxu0
    %v3510 = vadd.f32 %v3397, %v3509
    %3511 = vmatmul.f32.gmra.mxu0 %v3206
    %v3512 = vpop.f32.mrf.mxu0
    %v3513 = vadd.f32 %v3400, %v3512
    %3514 = vmatmul.f32.gmra.mxu0 %v3208
    %v3515 = vpop.f32.mrf.mxu0
    %v3516 = vadd.f32 %v3403, %v3515
    %3517 = vmatmul.f32.gmra.mxu0 %v3210
    %v3518 = vpop.f32.mrf.mxu0
    %v3519 = vadd.f32 %v3406, %v3518
    %3520 = vmatmul.f32.gmra.mxu0 %v3212
    %v3521 = vpop.f32.mrf.mxu0
    %v3522 = vadd.f32 %v3409, %v3521
    %3523 = vmatmul.f32.gmra.mxu0 %v3214
    %v3524 = vpop.f32.mrf.mxu0
    %v3525 = vadd.f32 %v3412, %v3524
    %3526 = vmatmul.f32.gmra.mxu0 %v3216
    %v3527 = vpop.f32.mrf.mxu0
    %v3528 = vadd.f32 %v3415, %v3527
    %3529 = vmatmul.f32.gmra.mxu0 %v3218
    %v3530 = vpop.f32.mrf.mxu0
    %v3531 = vadd.f32 %v3418, %v3530
    %3532 = vmatmul.f32.gmra.mxu0 %v3220
    %v3533 = vpop.f32.mrf.mxu0
    %v3534 = vadd.f32 %v3421, %v3533
    %3535 = vmatmul.f32.gmra.mxu0 %v3222
    %v3536 = vpop.f32.mrf.mxu0
    %v3537 = vadd.f32 %v3424, %v3536
    %3538 = vmatmul.f32.gmra.mxu0 %v3224
    %v3539 = vpop.f32.mrf.mxu0
    %v3540 = vadd.f32 %v3427, %v3539
    %3541 = vmatmul.f32.gmra.mxu0 %v3226
    %v3542 = vpop.f32.mrf.mxu0
    %v3543 = vadd.f32 %v3430, %v3542
    %3544 = vmatmul.f32.gmra.mxu0 %v3228
    %v3545 = vpop.f32.mrf.mxu0
    %v3546 = vadd.f32 %v3433, %v3545
    %3547 = vmatmul.f32.gmra.mxu0 %v3230
    %v3548 = vpop.f32.mrf.mxu0
    %v3549 = vadd.f32 %v3436, %v3548
    %3550 = vmatmul.f32.gmra.mxu0 %v3232
    %v3551 = vpop.f32.mrf.mxu0
    %v3552 = vadd.f32 %v3439, %v3551
    %3553 = vmatmul.f32.gmra.mxu0 %v3234
    %v3554 = vpop.f32.mrf.mxu0
    %v3555 = vadd.f32 %v3442, %v3554
    %3556 = vdwg.mxu0
    %s3557 = scalar_lea.vmem %s7, 16
    %v3558 = vld [vmem:[%s3557] sm:$0xff]
    %v3559 = vld [vmem:[%s3557 + $0x8] sm:$0xff]
    %v3561 = vsel %vm1446, %v3462, 0
    %v3564 = vsel %vm1446, %v3465, 0
    %v3567 = vsel %vm1446, %v3468, 0
    %v3570 = vsel %vm1446, %v3471, 0
    %v3573 = vsel %vm1446, %v3474, 0
    %v3576 = vsel %vm1446, %v3477, 0
    %v3579 = vsel %vm1446, %v3480, 0
    %v3582 = vsel %vm1446, %v3483, 0
    %v3585 = vsel %vm1446, %v3486, 0
    %v3588 = vsel %vm1446, %v3489, 0
    %v3591 = vsel %vm1446, %v3492, 0
    %v3594 = vsel %vm1446, %v3495, 0
    %v3597 = vsel %vm1446, %v3498, 0
    %v3600 = vsel %vm1446, %v3501, 0
    %v3603 = vsel %vm1446, %v3504, 0
    %v3606 = vsel %vm1446, %v3507, 0
    %v3609 = vsel %vm1446, %v3510, 0
    %v3612 = vsel %vm1446, %v3513, 0
    %v3615 = vsel %vm1446, %v3516, 0
    %v3618 = vsel %vm1446, %v3519, 0
    %v3621 = vsel %vm1446, %v3522, 0
    %v3624 = vsel %vm1446, %v3525, 0
    %v3627 = vsel %vm1446, %v3528, 0
    %v3630 = vsel %vm1446, %v3531, 0
    %v3633 = vsel %vm1446, %v3534, 0
    %v3636 = vsel %vm1446, %v3537, 0
    %v3639 = vsel %vm1446, %v3540, 0
    %v3642 = vsel %vm1446, %v3543, 0
    %v3645 = vsel %vm1446, %v3546, 0
    %v3648 = vsel %vm1446, %v3549, 0
    %v3651 = vsel %vm1446, %v3552, 0
    %v3654 = vsel %vm1446, %v3555, 0
    %3656 = vmatpush.msra.mxu0 0.0
    %3657 = vmatpush.msra.mxu0 0.0
    %3658 = vmatpush.msra.mxu0 0.0
    %3659 = vmatpush.msra.mxu0 0.0
    %3660 = vmatpush.msra.mxu0 0.0
    %3661 = vmatpush.msra.mxu0 0.0
    %3662 = vmatpush.msra.mxu0 0.0
    %3663 = vmatpush.msra.mxu0 0.0
    %3664 = vmatpush.msra.mxu0 0.0
    %3665 = vmatpush.msra.mxu0 0.0
    %3666 = vmatpush.msra.mxu0 0.0
    %3667 = vmatpush.msra.mxu0 0.0
    %3668 = vmatpush.msra.mxu0 0.0
    %3669 = vmatpush.msra.mxu0 0.0
    %3670 = vmatpush.msra.mxu0 %v3559
    %3671 = vmatpush.msra.mxu0 %v3558
    %3672 = vmatmul.f32.gmra.mxu0 %v3561
    %v3673 = vpop.f32.mrf.mxu0
    %v3674 = vadd.f32 0.0, %v3673
    %3675 = vmatmul.f32.gmra.mxu0 %v3564
    %v3676 = vpop.f32.mrf.mxu0
    %v3677 = vadd.f32 0.0, %v3676
    %3678 = vmatmul.f32.gmra.mxu0 %v3567
    %v3679 = vpop.f32.mrf.mxu0
    %v3680 = vadd.f32 0.0, %v3679
    %3681 = vmatmul.f32.gmra.mxu0 %v3570
    %v3682 = vpop.f32.mrf.mxu0
    %v3683 = vadd.f32 0.0, %v3682
    %3684 = vmatmul.f32.gmra.mxu0 %v3573
    %v3685 = vpop.f32.mrf.mxu0
    %v3686 = vadd.f32 0.0, %v3685
    %3687 = vmatmul.f32.gmra.mxu0 %v3576
    %v3688 = vpop.f32.mrf.mxu0
    %v3689 = vadd.f32 0.0, %v3688
    %3690 = vmatmul.f32.gmra.mxu0 %v3579
    %v3691 = vpop.f32.mrf.mxu0
    %v3692 = vadd.f32 0.0, %v3691
    %3693 = vmatmul.f32.gmra.mxu0 %v3582
    %v3694 = vpop.f32.mrf.mxu0
    %v3695 = vadd.f32 0.0, %v3694
    %3696 = vmatmul.f32.gmra.mxu0 %v3585
    %v3697 = vpop.f32.mrf.mxu0
    %v3698 = vadd.f32 0.0, %v3697
    %3699 = vmatmul.f32.gmra.mxu0 %v3588
    %v3700 = vpop.f32.mrf.mxu0
    %v3701 = vadd.f32 0.0, %v3700
    %3702 = vmatmul.f32.gmra.mxu0 %v3591
    %v3703 = vpop.f32.mrf.mxu0
    %v3704 = vadd.f32 0.0, %v3703
    %3705 = vmatmul.f32.gmra.mxu0 %v3594
    %v3706 = vpop.f32.mrf.mxu0
    %v3707 = vadd.f32 0.0, %v3706
    %3708 = vmatmul.f32.gmra.mxu0 %v3597
    %v3709 = vpop.f32.mrf.mxu0
    %v3710 = vadd.f32 0.0, %v3709
    %3711 = vmatmul.f32.gmra.mxu0 %v3600
    %v3712 = vpop.f32.mrf.mxu0
    %v3713 = vadd.f32 0.0, %v3712
    %3714 = vmatmul.f32.gmra.mxu0 %v3603
    %v3715 = vpop.f32.mrf.mxu0
    %v3716 = vadd.f32 0.0, %v3715
    %3717 = vmatmul.f32.gmra.mxu0 %v3606
    %v3718 = vpop.f32.mrf.mxu0
    %v3719 = vadd.f32 0.0, %v3718
    %3720 = vmatmul.f32.gmra.mxu0 %v3609
    %v3721 = vpop.f32.mrf.mxu0
    %v3722 = vadd.f32 0.0, %v3721
    %3723 = vmatmul.f32.gmra.mxu0 %v3612
    %v3724 = vpop.f32.mrf.mxu0
    %v3725 = vadd.f32 0.0, %v3724
    %3726 = vmatmul.f32.gmra.mxu0 %v3615
    %v3727 = vpop.f32.mrf.mxu0
    %v3728 = vadd.f32 0.0, %v3727
    %3729 = vmatmul.f32.gmra.mxu0 %v3618
    %v3730 = vpop.f32.mrf.mxu0
    %v3731 = vadd.f32 0.0, %v3730
    %3732 = vmatmul.f32.gmra.mxu0 %v3621
    %v3733 = vpop.f32.mrf.mxu0
    %v3734 = vadd.f32 0.0, %v3733
    %3735 = vmatmul.f32.gmra.mxu0 %v3624
    %v3736 = vpop.f32.mrf.mxu0
    %v3737 = vadd.f32 0.0, %v3736
    %3738 = vmatmul.f32.gmra.mxu0 %v3627
    %v3739 = vpop.f32.mrf.mxu0
    %v3740 = vadd.f32 0.0, %v3739
    %3741 = vmatmul.f32.gmra.mxu0 %v3630
    %v3742 = vpop.f32.mrf.mxu0
    %v3743 = vadd.f32 0.0, %v3742
    %3744 = vmatmul.f32.gmra.mxu0 %v3633
    %v3745 = vpop.f32.mrf.mxu0
    %v3746 = vadd.f32 0.0, %v3745
    %3747 = vmatmul.f32.gmra.mxu0 %v3636
    %v3748 = vpop.f32.mrf.mxu0
    %v3749 = vadd.f32 0.0, %v3748
    %3750 = vmatmul.f32.gmra.mxu0 %v3639
    %v3751 = vpop.f32.mrf.mxu0
    %v3752 = vadd.f32 0.0, %v3751
    %3753 = vmatmul.f32.gmra.mxu0 %v3642
    %v3754 = vpop.f32.mrf.mxu0
    %v3755 = vadd.f32 0.0, %v3754
    %3756 = vmatmul.f32.gmra.mxu0 %v3645
    %v3757 = vpop.f32.mrf.mxu0
    %v3758 = vadd.f32 0.0, %v3757
    %3759 = vmatmul.f32.gmra.mxu0 %v3648
    %v3760 = vpop.f32.mrf.mxu0
    %v3761 = vadd.f32 0.0, %v3760
    %3762 = vmatmul.f32.gmra.mxu0 %v3651
    %v3763 = vpop.f32.mrf.mxu0
    %v3764 = vadd.f32 0.0, %v3763
    %3765 = vmatmul.f32.gmra.mxu0 %v3654
    %v3766 = vpop.f32.mrf.mxu0
    %v3767 = vadd.f32 0.0, %v3766
    %3768 = vdwg.mxu0
    %v3769 = vadd.f32 %v2529, %v3674
    %v3770 = vadd.f32 %v2530, %v3677
    %v3771 = vadd.f32 %v2531, %v3680
    %v3772 = vadd.f32 %v2532, %v3683
    %v3773 = vadd.f32 %v2533, %v3686
    %v3774 = vadd.f32 %v2534, %v3689
    %v3775 = vadd.f32 %v2535, %v3692
    %v3776 = vadd.f32 %v2536, %v3695
    %v3777 = vadd.f32 %v2537, %v3698
    %v3778 = vadd.f32 %v2538, %v3701
    %v3779 = vadd.f32 %v2539, %v3704
    %v3780 = vadd.f32 %v2540, %v3707
    %v3781 = vadd.f32 %v2541, %v3710
    %v3782 = vadd.f32 %v2542, %v3713
    %v3783 = vadd.f32 %v2543, %v3716
    %v3784 = vadd.f32 %v2544, %v3719
    %v3785 = vadd.f32 %v2545, %v3722
    %v3786 = vadd.f32 %v2546, %v3725
    %v3787 = vadd.f32 %v2547, %v3728
    %v3788 = vadd.f32 %v2548, %v3731
    %v3789 = vadd.f32 %v2549, %v3734
    %v3790 = vadd.f32 %v2550, %v3737
    %v3791 = vadd.f32 %v2551, %v3740
    %v3792 = vadd.f32 %v2552, %v3743
    %v3793 = vadd.f32 %v2553, %v3746
    %v3794 = vadd.f32 %v2554, %v3749
    %v3795 = vadd.f32 %v2555, %v3752
    %v3796 = vadd.f32 %v2556, %v3755
    %v3797 = vadd.f32 %v2557, %v3758
    %v3798 = vadd.f32 %v2558, %v3761
    %v3799 = vadd.f32 %v2559, %v3764
    %v3800 = vadd.f32 %v2560, %v3767
    %v3801 = vadd.f32 %v163, %v3769
    %v3802 = vadd.f32 %v164, %v3770
    %v3803 = vadd.f32 %v165, %v3771
    %v3804 = vadd.f32 %v166, %v3772
    %v3805 = vadd.f32 %v167, %v3773
    %v3806 = vadd.f32 %v168, %v3774
    %v3807 = vadd.f32 %v169, %v3775
    %v3808 = vadd.f32 %v170, %v3776
    %v3809 = vadd.f32 %v171, %v3777
    %v3810 = vadd.f32 %v172, %v3778
    %v3811 = vadd.f32 %v173, %v3779
    %v3812 = vadd.f32 %v174, %v3780
    %v3813 = vadd.f32 %v175, %v3781
    %v3814 = vadd.f32 %v176, %v3782
    %v3815 = vadd.f32 %v177, %v3783
    %v3816 = vadd.f32 %v178, %v3784
    %v3817 = vadd.f32 %v179, %v3785
    %v3818 = vadd.f32 %v180, %v3786
    %v3819 = vadd.f32 %v181, %v3787
    %v3820 = vadd.f32 %v182, %v3788
    %v3821 = vadd.f32 %v183, %v3789
    %v3822 = vadd.f32 %v184, %v3790
    %v3823 = vadd.f32 %v185, %v3791
    %v3824 = vadd.f32 %v186, %v3792
    %v3825 = vadd.f32 %v187, %v3793
    %v3826 = vadd.f32 %v188, %v3794
    %v3827 = vadd.f32 %v189, %v3795
    %v3828 = vadd.f32 %v190, %v3796
    %v3829 = vadd.f32 %v191, %v3797
    %v3830 = vadd.f32 %v192, %v3798
    %v3831 = vadd.f32 %v193, %v3799
    %v3832 = vadd.f32 %v194, %v3800
    %v3833 = vld [vmem:[%s9] sm:$0x1]
    %v3834 = vld [vmem:[%s10] sm:$0x1]
    %v3835 = vsel %vm197, %v3801, 0.0
    %3836 = vadd.xlane.f32.xlu0 %v3835
    %v3837 = vpop.xlane.xlu0 %3836
    %v3838 = vsel %vm197, %v3802, 0.0
    %3839 = vadd.xlane.f32.xlu0 %v3838
    %v3840 = vpop.xlane.xlu0 %3839
    %v3841 = vsel %vm197, %v3803, 0.0
    %3842 = vadd.xlane.f32.xlu0 %v3841
    %v3843 = vpop.xlane.xlu0 %3842
    %v3844 = vsel %vm197, %v3804, 0.0
    %3845 = vadd.xlane.f32.xlu0 %v3844
    %v3846 = vpop.xlane.xlu0 %3845
    %v3847 = vsel %vm197, %v3805, 0.0
    %3848 = vadd.xlane.f32.xlu0 %v3847
    %v3849 = vpop.xlane.xlu0 %3848
    %v3850 = vsel %vm197, %v3806, 0.0
    %3851 = vadd.xlane.f32.xlu0 %v3850
    %v3852 = vpop.xlane.xlu0 %3851
    %v3853 = vsel %vm197, %v3807, 0.0
    %3854 = vadd.xlane.f32.xlu0 %v3853
    %v3855 = vpop.xlane.xlu0 %3854
    %v3856 = vsel %vm197, %v3808, 0.0
    %3857 = vadd.xlane.f32.xlu0 %v3856
    %v3858 = vpop.xlane.xlu0 %3857
    %v3859 = vsel %vm197, %v3809, 0.0
    %3860 = vadd.xlane.f32.xlu0 %v3859
    %v3861 = vpop.xlane.xlu0 %3860
    %v3862 = vsel %vm197, %v3810, 0.0
    %3863 = vadd.xlane.f32.xlu0 %v3862
    %v3864 = vpop.xlane.xlu0 %3863
    %v3865 = vsel %vm197, %v3811, 0.0
    %3866 = vadd.xlane.f32.xlu0 %v3865
    %v3867 = vpop.xlane.xlu0 %3866
    %v3868 = vsel %vm197, %v3812, 0.0
    %3869 = vadd.xlane.f32.xlu0 %v3868
    %v3870 = vpop.xlane.xlu0 %3869
    %v3871 = vsel %vm197, %v3813, 0.0
    %3872 = vadd.xlane.f32.xlu0 %v3871
    %v3873 = vpop.xlane.xlu0 %3872
    %v3874 = vsel %vm197, %v3814, 0.0
    %3875 = vadd.xlane.f32.xlu0 %v3874
    %v3876 = vpop.xlane.xlu0 %3875
    %v3877 = vsel %vm197, %v3815, 0.0
    %3878 = vadd.xlane.f32.xlu0 %v3877
    %v3879 = vpop.xlane.xlu0 %3878
    %v3880 = vsel %vm197, %v3816, 0.0
    %3881 = vadd.xlane.f32.xlu0 %v3880
    %v3882 = vpop.xlane.xlu0 %3881
    %v3883 = vsel %vm197, %v3817, 0.0
    %3884 = vadd.xlane.f32.xlu0 %v3883
    %v3885 = vpop.xlane.xlu0 %3884
    %v3886 = vsel %vm197, %v3818, 0.0
    %3887 = vadd.xlane.f32.xlu0 %v3886
    %v3888 = vpop.xlane.xlu0 %3887
    %v3889 = vsel %vm197, %v3819, 0.0
    %3890 = vadd.xlane.f32.xlu0 %v3889
    %v3891 = vpop.xlane.xlu0 %3890
    %v3892 = vsel %vm197, %v3820, 0.0
    %3893 = vadd.xlane.f32.xlu0 %v3892
    %v3894 = vpop.xlane.xlu0 %3893
    %v3895 = vsel %vm197, %v3821, 0.0
    %3896 = vadd.xlane.f32.xlu0 %v3895
    %v3897 = vpop.xlane.xlu0 %3896
    %v3898 = vsel %vm197, %v3822, 0.0
    %3899 = vadd.xlane.f32.xlu0 %v3898
    %v3900 = vpop.xlane.xlu0 %3899
    %v3901 = vsel %vm197, %v3823, 0.0
    %3902 = vadd.xlane.f32.xlu0 %v3901
    %v3903 = vpop.xlane.xlu0 %3902
    %v3904 = vsel %vm197, %v3824, 0.0
    %3905 = vadd.xlane.f32.xlu0 %v3904
    %v3906 = vpop.xlane.xlu0 %3905
    %v3907 = vsel %vm197, %v3825, 0.0
    %3908 = vadd.xlane.f32.xlu0 %v3907
    %v3909 = vpop.xlane.xlu0 %3908
    %v3910 = vsel %vm197, %v3826, 0.0
    %3911 = vadd.xlane.f32.xlu0 %v3910
    %v3912 = vpop.xlane.xlu0 %3911
    %v3913 = vsel %vm197, %v3827, 0.0
    %3914 = vadd.xlane.f32.xlu0 %v3913
    %v3915 = vpop.xlane.xlu0 %3914
    %v3916 = vsel %vm197, %v3828, 0.0
    %3917 = vadd.xlane.f32.xlu0 %v3916
    %v3918 = vpop.xlane.xlu0 %3917
    %v3919 = vsel %vm197, %v3829, 0.0
    %3920 = vadd.xlane.f32.xlu0 %v3919
    %v3921 = vpop.xlane.xlu0 %3920
    %v3922 = vsel %vm197, %v3830, 0.0
    %3923 = vadd.xlane.f32.xlu0 %v3922
    %v3924 = vpop.xlane.xlu0 %3923
    %v3925 = vsel %vm197, %v3831, 0.0
    %3926 = vadd.xlane.f32.xlu0 %v3925
    %v3927 = vpop.xlane.xlu0 %3926
    %v3928 = vsel %vm197, %v3832, 0.0
    %3929 = vadd.xlane.f32.xlu0 %v3928
    %v3930 = vpop.xlane.xlu0 %3929
    %v3931 = vmul.f32 %v3837, 0.03125
    %v3932 = vmul.f32 %v3840, 0.03125
    %v3933 = vmul.f32 %v3843, 0.03125
    %v3934 = vmul.f32 %v3846, 0.03125
    %v3935 = vmul.f32 %v3849, 0.03125
    %v3936 = vmul.f32 %v3852, 0.03125
    %v3937 = vmul.f32 %v3855, 0.03125
    %v3938 = vmul.f32 %v3858, 0.03125
    %v3939 = vmul.f32 %v3861, 0.03125
    %v3940 = vmul.f32 %v3864, 0.03125
    %v3941 = vmul.f32 %v3867, 0.03125
    %v3942 = vmul.f32 %v3870, 0.03125
    %v3943 = vmul.f32 %v3873, 0.03125
    %v3944 = vmul.f32 %v3876, 0.03125
    %v3945 = vmul.f32 %v3879, 0.03125
    %v3946 = vmul.f32 %v3882, 0.03125
    %v3947 = vmul.f32 %v3885, 0.03125
    %v3948 = vmul.f32 %v3888, 0.03125
    %v3949 = vmul.f32 %v3891, 0.03125
    %v3950 = vmul.f32 %v3894, 0.03125
    %v3951 = vmul.f32 %v3897, 0.03125
    %v3952 = vmul.f32 %v3900, 0.03125
    %v3953 = vmul.f32 %v3903, 0.03125
    %v3954 = vmul.f32 %v3906, 0.03125
    %v3955 = vmul.f32 %v3909, 0.03125
    %v3956 = vmul.f32 %v3912, 0.03125
    %v3957 = vmul.f32 %v3915, 0.03125
    %v3958 = vmul.f32 %v3918, 0.03125
    %v3959 = vmul.f32 %v3921, 0.03125
    %v3960 = vmul.f32 %v3924, 0.03125
    %v3961 = vmul.f32 %v3927, 0.03125
    %v3962 = vmul.f32 %v3930, 0.03125
    %v3963 = vmul.f32 %v3801, %v3801
    %v3964 = vmul.f32 %v3802, %v3802
    %v3965 = vmul.f32 %v3803, %v3803
    %v3966 = vmul.f32 %v3804, %v3804
    %v3967 = vmul.f32 %v3805, %v3805
    %v3968 = vmul.f32 %v3806, %v3806
    %v3969 = vmul.f32 %v3807, %v3807
    %v3970 = vmul.f32 %v3808, %v3808
    %v3971 = vmul.f32 %v3809, %v3809
    %v3972 = vmul.f32 %v3810, %v3810
    %v3973 = vmul.f32 %v3811, %v3811
    %v3974 = vmul.f32 %v3812, %v3812
    %v3975 = vmul.f32 %v3813, %v3813
    %v3976 = vmul.f32 %v3814, %v3814
    %v3977 = vmul.f32 %v3815, %v3815
    %v3978 = vmul.f32 %v3816, %v3816
    %v3979 = vmul.f32 %v3817, %v3817
    %v3980 = vmul.f32 %v3818, %v3818
    %v3981 = vmul.f32 %v3819, %v3819
    %v3982 = vmul.f32 %v3820, %v3820
    %v3983 = vmul.f32 %v3821, %v3821
    %v3984 = vmul.f32 %v3822, %v3822
    %v3985 = vmul.f32 %v3823, %v3823
    %v3986 = vmul.f32 %v3824, %v3824
    %v3987 = vmul.f32 %v3825, %v3825
    %v3988 = vmul.f32 %v3826, %v3826
    %v3989 = vmul.f32 %v3827, %v3827
    %v3990 = vmul.f32 %v3828, %v3828
    %v3991 = vmul.f32 %v3829, %v3829
    %v3992 = vmul.f32 %v3830, %v3830
    %v3993 = vmul.f32 %v3831, %v3831
    %v3994 = vmul.f32 %v3832, %v3832
    %v3995 = vsel %vm197, %v3963, 0.0
    %3996 = vadd.xlane.f32.xlu0 %v3995
    %v3997 = vpop.xlane.xlu0 %3996
    %v3998 = vsel %vm197, %v3964, 0.0
    %3999 = vadd.xlane.f32.xlu0 %v3998
    %v4000 = vpop.xlane.xlu0 %3999
    %v4001 = vsel %vm197, %v3965, 0.0
    %4002 = vadd.xlane.f32.xlu0 %v4001
    %v4003 = vpop.xlane.xlu0 %4002
    %v4004 = vsel %vm197, %v3966, 0.0
    %4005 = vadd.xlane.f32.xlu0 %v4004
    %v4006 = vpop.xlane.xlu0 %4005
    %v4007 = vsel %vm197, %v3967, 0.0
    %4008 = vadd.xlane.f32.xlu0 %v4007
    %v4009 = vpop.xlane.xlu0 %4008
    %v4010 = vsel %vm197, %v3968, 0.0
    %4011 = vadd.xlane.f32.xlu0 %v4010
    %v4012 = vpop.xlane.xlu0 %4011
    %v4013 = vsel %vm197, %v3969, 0.0
    %4014 = vadd.xlane.f32.xlu0 %v4013
    %v4015 = vpop.xlane.xlu0 %4014
    %v4016 = vsel %vm197, %v3970, 0.0
    %4017 = vadd.xlane.f32.xlu0 %v4016
    %v4018 = vpop.xlane.xlu0 %4017
    %v4019 = vsel %vm197, %v3971, 0.0
    %4020 = vadd.xlane.f32.xlu0 %v4019
    %v4021 = vpop.xlane.xlu0 %4020
    %v4022 = vsel %vm197, %v3972, 0.0
    %4023 = vadd.xlane.f32.xlu0 %v4022
    %v4024 = vpop.xlane.xlu0 %4023
    %v4025 = vsel %vm197, %v3973, 0.0
    %4026 = vadd.xlane.f32.xlu0 %v4025
    %v4027 = vpop.xlane.xlu0 %4026
    %v4028 = vsel %vm197, %v3974, 0.0
    %4029 = vadd.xlane.f32.xlu0 %v4028
    %v4030 = vpop.xlane.xlu0 %4029
    %v4031 = vsel %vm197, %v3975, 0.0
    %4032 = vadd.xlane.f32.xlu0 %v4031
    %v4033 = vpop.xlane.xlu0 %4032
    %v4034 = vsel %vm197, %v3976, 0.0
    %4035 = vadd.xlane.f32.xlu0 %v4034
    %v4036 = vpop.xlane.xlu0 %4035
    %v4037 = vsel %vm197, %v3977, 0.0
    %4038 = vadd.xlane.f32.xlu0 %v4037
    %v4039 = vpop.xlane.xlu0 %4038
    %v4040 = vsel %vm197, %v3978, 0.0
    %4041 = vadd.xlane.f32.xlu0 %v4040
    %v4042 = vpop.xlane.xlu0 %4041
    %v4043 = vsel %vm197, %v3979, 0.0
    %4044 = vadd.xlane.f32.xlu0 %v4043
    %v4045 = vpop.xlane.xlu0 %4044
    %v4046 = vsel %vm197, %v3980, 0.0
    %4047 = vadd.xlane.f32.xlu0 %v4046
    %v4048 = vpop.xlane.xlu0 %4047
    %v4049 = vsel %vm197, %v3981, 0.0
    %4050 = vadd.xlane.f32.xlu0 %v4049
    %v4051 = vpop.xlane.xlu0 %4050
    %v4052 = vsel %vm197, %v3982, 0.0
    %4053 = vadd.xlane.f32.xlu0 %v4052
    %v4054 = vpop.xlane.xlu0 %4053
    %v4055 = vsel %vm197, %v3983, 0.0
    %4056 = vadd.xlane.f32.xlu0 %v4055
    %v4057 = vpop.xlane.xlu0 %4056
    %v4058 = vsel %vm197, %v3984, 0.0
    %4059 = vadd.xlane.f32.xlu0 %v4058
    %v4060 = vpop.xlane.xlu0 %4059
    %v4061 = vsel %vm197, %v3985, 0.0
    %4062 = vadd.xlane.f32.xlu0 %v4061
    %v4063 = vpop.xlane.xlu0 %4062
    %v4064 = vsel %vm197, %v3986, 0.0
    %4065 = vadd.xlane.f32.xlu0 %v4064
    %v4066 = vpop.xlane.xlu0 %4065
    %v4067 = vsel %vm197, %v3987, 0.0
    %4068 = vadd.xlane.f32.xlu0 %v4067
    %v4069 = vpop.xlane.xlu0 %4068
    %v4070 = vsel %vm197, %v3988, 0.0
    %4071 = vadd.xlane.f32.xlu0 %v4070
    %v4072 = vpop.xlane.xlu0 %4071
    %v4073 = vsel %vm197, %v3989, 0.0
    %4074 = vadd.xlane.f32.xlu0 %v4073
    %v4075 = vpop.xlane.xlu0 %4074
    %v4076 = vsel %vm197, %v3990, 0.0
    %4077 = vadd.xlane.f32.xlu0 %v4076
    %v4078 = vpop.xlane.xlu0 %4077
    %v4079 = vsel %vm197, %v3991, 0.0
    %4080 = vadd.xlane.f32.xlu0 %v4079
    %v4081 = vpop.xlane.xlu0 %4080
    %v4082 = vsel %vm197, %v3992, 0.0
    %4083 = vadd.xlane.f32.xlu0 %v4082
    %v4084 = vpop.xlane.xlu0 %4083
    %v4085 = vsel %vm197, %v3993, 0.0
    %4086 = vadd.xlane.f32.xlu0 %v4085
    %v4087 = vpop.xlane.xlu0 %4086
    %v4088 = vsel %vm197, %v3994, 0.0
    %4089 = vadd.xlane.f32.xlu0 %v4088
    %v4090 = vpop.xlane.xlu0 %4089
    %v4091 = vmul.f32 %v3997, 0.03125
    %v4092 = vmul.f32 %v4000, 0.03125
    %v4093 = vmul.f32 %v4003, 0.03125
    %v4094 = vmul.f32 %v4006, 0.03125
    %v4095 = vmul.f32 %v4009, 0.03125
    %v4096 = vmul.f32 %v4012, 0.03125
    %v4097 = vmul.f32 %v4015, 0.03125
    %v4098 = vmul.f32 %v4018, 0.03125
    %v4099 = vmul.f32 %v4021, 0.03125
    %v4100 = vmul.f32 %v4024, 0.03125
    %v4101 = vmul.f32 %v4027, 0.03125
    %v4102 = vmul.f32 %v4030, 0.03125
    %v4103 = vmul.f32 %v4033, 0.03125
    %v4104 = vmul.f32 %v4036, 0.03125
    %v4105 = vmul.f32 %v4039, 0.03125
    %v4106 = vmul.f32 %v4042, 0.03125
    %v4107 = vmul.f32 %v4045, 0.03125
    %v4108 = vmul.f32 %v4048, 0.03125
    %v4109 = vmul.f32 %v4051, 0.03125
    %v4110 = vmul.f32 %v4054, 0.03125
    %v4111 = vmul.f32 %v4057, 0.03125
    %v4112 = vmul.f32 %v4060, 0.03125
    %v4113 = vmul.f32 %v4063, 0.03125
    %v4114 = vmul.f32 %v4066, 0.03125
    %v4115 = vmul.f32 %v4069, 0.03125
    %v4116 = vmul.f32 %v4072, 0.03125
    %v4117 = vmul.f32 %v4075, 0.03125
    %v4118 = vmul.f32 %v4078, 0.03125
    %v4119 = vmul.f32 %v4081, 0.03125
    %v4120 = vmul.f32 %v4084, 0.03125
    %v4121 = vmul.f32 %v4087, 0.03125
    %v4122 = vmul.f32 %v4090, 0.03125
    %v4123 = vmul.f32 %v3931, %v3931
    %v4124 = vmul.f32 %v3932, %v3932
    %v4125 = vmul.f32 %v3933, %v3933
    %v4126 = vmul.f32 %v3934, %v3934
    %v4127 = vmul.f32 %v3935, %v3935
    %v4128 = vmul.f32 %v3936, %v3936
    %v4129 = vmul.f32 %v3937, %v3937
    %v4130 = vmul.f32 %v3938, %v3938
    %v4131 = vmul.f32 %v3939, %v3939
    %v4132 = vmul.f32 %v3940, %v3940
    %v4133 = vmul.f32 %v3941, %v3941
    %v4134 = vmul.f32 %v3942, %v3942
    %v4135 = vmul.f32 %v3943, %v3943
    %v4136 = vmul.f32 %v3944, %v3944
    %v4137 = vmul.f32 %v3945, %v3945
    %v4138 = vmul.f32 %v3946, %v3946
    %v4139 = vmul.f32 %v3947, %v3947
    %v4140 = vmul.f32 %v3948, %v3948
    %v4141 = vmul.f32 %v3949, %v3949
    %v4142 = vmul.f32 %v3950, %v3950
    %v4143 = vmul.f32 %v3951, %v3951
    %v4144 = vmul.f32 %v3952, %v3952
    %v4145 = vmul.f32 %v3953, %v3953
    %v4146 = vmul.f32 %v3954, %v3954
    %v4147 = vmul.f32 %v3955, %v3955
    %v4148 = vmul.f32 %v3956, %v3956
    %v4149 = vmul.f32 %v3957, %v3957
    %v4150 = vmul.f32 %v3958, %v3958
    %v4151 = vmul.f32 %v3959, %v3959
    %v4152 = vmul.f32 %v3960, %v3960
    %v4153 = vmul.f32 %v3961, %v3961
    %v4154 = vmul.f32 %v3962, %v3962
    %v4155 = vsub.f32 %v4091, %v4123
    %v4156 = vsub.f32 %v4092, %v4124
    %v4157 = vsub.f32 %v4093, %v4125
    %v4158 = vsub.f32 %v4094, %v4126
    %v4159 = vsub.f32 %v4095, %v4127
    %v4160 = vsub.f32 %v4096, %v4128
    %v4161 = vsub.f32 %v4097, %v4129
    %v4162 = vsub.f32 %v4098, %v4130
    %v4163 = vsub.f32 %v4099, %v4131
    %v4164 = vsub.f32 %v4100, %v4132
    %v4165 = vsub.f32 %v4101, %v4133
    %v4166 = vsub.f32 %v4102, %v4134
    %v4167 = vsub.f32 %v4103, %v4135
    %v4168 = vsub.f32 %v4104, %v4136
    %v4169 = vsub.f32 %v4105, %v4137
    %v4170 = vsub.f32 %v4106, %v4138
    %v4171 = vsub.f32 %v4107, %v4139
    %v4172 = vsub.f32 %v4108, %v4140
    %v4173 = vsub.f32 %v4109, %v4141
    %v4174 = vsub.f32 %v4110, %v4142
    %v4175 = vsub.f32 %v4111, %v4143
    %v4176 = vsub.f32 %v4112, %v4144
    %v4177 = vsub.f32 %v4113, %v4145
    %v4178 = vsub.f32 %v4114, %v4146
    %v4179 = vsub.f32 %v4115, %v4147
    %v4180 = vsub.f32 %v4116, %v4148
    %v4181 = vsub.f32 %v4117, %v4149
    %v4182 = vsub.f32 %v4118, %v4150
    %v4183 = vsub.f32 %v4119, %v4151
    %v4184 = vsub.f32 %v4120, %v4152
    %v4185 = vsub.f32 %v4121, %v4153
    %v4186 = vsub.f32 %v4122, %v4154
    %v4187 = vsub.f32 %v3801, %v3931
    %v4188 = vsub.f32 %v3802, %v3932
    %v4189 = vsub.f32 %v3803, %v3933
    %v4190 = vsub.f32 %v3804, %v3934
    %v4191 = vsub.f32 %v3805, %v3935
    %v4192 = vsub.f32 %v3806, %v3936
    %v4193 = vsub.f32 %v3807, %v3937
    %v4194 = vsub.f32 %v3808, %v3938
    %v4195 = vsub.f32 %v3809, %v3939
    %v4196 = vsub.f32 %v3810, %v3940
    %v4197 = vsub.f32 %v3811, %v3941
    %v4198 = vsub.f32 %v3812, %v3942
    %v4199 = vsub.f32 %v3813, %v3943
    %v4200 = vsub.f32 %v3814, %v3944
    %v4201 = vsub.f32 %v3815, %v3945
    %v4202 = vsub.f32 %v3816, %v3946
    %v4203 = vsub.f32 %v3817, %v3947
    %v4204 = vsub.f32 %v3818, %v3948
    %v4205 = vsub.f32 %v3819, %v3949
    %v4206 = vsub.f32 %v3820, %v3950
    %v4207 = vsub.f32 %v3821, %v3951
    %v4208 = vsub.f32 %v3822, %v3952
    %v4209 = vsub.f32 %v3823, %v3953
    %v4210 = vsub.f32 %v3824, %v3954
    %v4211 = vsub.f32 %v3825, %v3955
    %v4212 = vsub.f32 %v3826, %v3956
    %v4213 = vsub.f32 %v3827, %v3957
    %v4214 = vsub.f32 %v3828, %v3958
    %v4215 = vsub.f32 %v3829, %v3959
    %v4216 = vsub.f32 %v3830, %v3960
    %v4217 = vsub.f32 %v3831, %v3961
    %v4218 = vsub.f32 %v3832, %v3962
    %v4219 = vadd.f32 %v4155, 1e-05
    %v4220 = vadd.f32 %v4156, 1e-05
    %v4221 = vadd.f32 %v4157, 1e-05
    %v4222 = vadd.f32 %v4158, 1e-05
    %v4223 = vadd.f32 %v4159, 1e-05
    %v4224 = vadd.f32 %v4160, 1e-05
    %v4225 = vadd.f32 %v4161, 1e-05
    %v4226 = vadd.f32 %v4162, 1e-05
    %v4227 = vadd.f32 %v4163, 1e-05
    %v4228 = vadd.f32 %v4164, 1e-05
    %v4229 = vadd.f32 %v4165, 1e-05
    %v4230 = vadd.f32 %v4166, 1e-05
    %v4231 = vadd.f32 %v4167, 1e-05
    %v4232 = vadd.f32 %v4168, 1e-05
    %v4233 = vadd.f32 %v4169, 1e-05
    %v4234 = vadd.f32 %v4170, 1e-05
    %v4235 = vadd.f32 %v4171, 1e-05
    %v4236 = vadd.f32 %v4172, 1e-05
    %v4237 = vadd.f32 %v4173, 1e-05
    %v4238 = vadd.f32 %v4174, 1e-05
    %v4239 = vadd.f32 %v4175, 1e-05
    %v4240 = vadd.f32 %v4176, 1e-05
    %v4241 = vadd.f32 %v4177, 1e-05
    %v4242 = vadd.f32 %v4178, 1e-05
    %v4243 = vadd.f32 %v4179, 1e-05
    %v4244 = vadd.f32 %v4180, 1e-05
    %v4245 = vadd.f32 %v4181, 1e-05
    %v4246 = vadd.f32 %v4182, 1e-05
    %v4247 = vadd.f32 %v4183, 1e-05
    %v4248 = vadd.f32 %v4184, 1e-05
    %v4249 = vadd.f32 %v4185, 1e-05
    %v4250 = vadd.f32 %v4186, 1e-05
    %v4251 = vrsqrt.pop %v4219
    %v4252 = vmul.f32 %v4251, %v4219
    %v4253 = vmul.f32 %v4252, %v4251
    %v4254 = vmul.f32 0.5, %v4253
    %v4255 = vsub.f32 1.5, %v4254
    %v4256 = vmul.f32 %v4251, %v4255
    %vm4257 = vweird.f32 %v4219
    %vm4258 = vweird.f32 %v4251
    %vm4259 = vmor %vm4257, %vm4258
    %v4260 = vsel %vm4259, %v4251, %v4256
    %v4261 = vrsqrt.pop %v4220
    %v4262 = vmul.f32 %v4261, %v4220
    %v4263 = vmul.f32 %v4262, %v4261
    %v4264 = vmul.f32 0.5, %v4263
    %v4265 = vsub.f32 1.5, %v4264
    %v4266 = vmul.f32 %v4261, %v4265
    %vm4267 = vweird.f32 %v4220
    %vm4268 = vweird.f32 %v4261
    %vm4269 = vmor %vm4267, %vm4268
    %v4270 = vsel %vm4269, %v4261, %v4266
    %v4271 = vrsqrt.pop %v4221
    %v4272 = vmul.f32 %v4271, %v4221
    %v4273 = vmul.f32 %v4272, %v4271
    %v4274 = vmul.f32 0.5, %v4273
    %v4275 = vsub.f32 1.5, %v4274
    %v4276 = vmul.f32 %v4271, %v4275
    %vm4277 = vweird.f32 %v4221
    %vm4278 = vweird.f32 %v4271
    %vm4279 = vmor %vm4277, %vm4278
    %v4280 = vsel %vm4279, %v4271, %v4276
    %v4281 = vrsqrt.pop %v4222
    %v4282 = vmul.f32 %v4281, %v4222
    %v4283 = vmul.f32 %v4282, %v4281
    %v4284 = vmul.f32 0.5, %v4283
    %v4285 = vsub.f32 1.5, %v4284
    %v4286 = vmul.f32 %v4281, %v4285
    %vm4287 = vweird.f32 %v4222
    %vm4288 = vweird.f32 %v4281
    %vm4289 = vmor %vm4287, %vm4288
    %v4290 = vsel %vm4289, %v4281, %v4286
    %v4291 = vrsqrt.pop %v4223
    %v4292 = vmul.f32 %v4291, %v4223
    %v4293 = vmul.f32 %v4292, %v4291
    %v4294 = vmul.f32 0.5, %v4293
    %v4295 = vsub.f32 1.5, %v4294
    %v4296 = vmul.f32 %v4291, %v4295
    %vm4297 = vweird.f32 %v4223
    %vm4298 = vweird.f32 %v4291
    %vm4299 = vmor %vm4297, %vm4298
    %v4300 = vsel %vm4299, %v4291, %v4296
    %v4301 = vrsqrt.pop %v4224
    %v4302 = vmul.f32 %v4301, %v4224
    %v4303 = vmul.f32 %v4302, %v4301
    %v4304 = vmul.f32 0.5, %v4303
    %v4305 = vsub.f32 1.5, %v4304
    %v4306 = vmul.f32 %v4301, %v4305
    %vm4307 = vweird.f32 %v4224
    %vm4308 = vweird.f32 %v4301
    %vm4309 = vmor %vm4307, %vm4308
    %v4310 = vsel %vm4309, %v4301, %v4306
    %v4311 = vrsqrt.pop %v4225
    %v4312 = vmul.f32 %v4311, %v4225
    %v4313 = vmul.f32 %v4312, %v4311
    %v4314 = vmul.f32 0.5, %v4313
    %v4315 = vsub.f32 1.5, %v4314
    %v4316 = vmul.f32 %v4311, %v4315
    %vm4317 = vweird.f32 %v4225
    %vm4318 = vweird.f32 %v4311
    %vm4319 = vmor %vm4317, %vm4318
    %v4320 = vsel %vm4319, %v4311, %v4316
    %v4321 = vrsqrt.pop %v4226
    %v4322 = vmul.f32 %v4321, %v4226
    %v4323 = vmul.f32 %v4322, %v4321
    %v4324 = vmul.f32 0.5, %v4323
    %v4325 = vsub.f32 1.5, %v4324
    %v4326 = vmul.f32 %v4321, %v4325
    %vm4327 = vweird.f32 %v4226
    %vm4328 = vweird.f32 %v4321
    %vm4329 = vmor %vm4327, %vm4328
    %v4330 = vsel %vm4329, %v4321, %v4326
    %v4331 = vrsqrt.pop %v4227
    %v4332 = vmul.f32 %v4331, %v4227
    %v4333 = vmul.f32 %v4332, %v4331
    %v4334 = vmul.f32 0.5, %v4333
    %v4335 = vsub.f32 1.5, %v4334
    %v4336 = vmul.f32 %v4331, %v4335
    %vm4337 = vweird.f32 %v4227
    %vm4338 = vweird.f32 %v4331
    %vm4339 = vmor %vm4337, %vm4338
    %v4340 = vsel %vm4339, %v4331, %v4336
    %v4341 = vrsqrt.pop %v4228
    %v4342 = vmul.f32 %v4341, %v4228
    %v4343 = vmul.f32 %v4342, %v4341
    %v4344 = vmul.f32 0.5, %v4343
    %v4345 = vsub.f32 1.5, %v4344
    %v4346 = vmul.f32 %v4341, %v4345
    %vm4347 = vweird.f32 %v4228
    %vm4348 = vweird.f32 %v4341
    %vm4349 = vmor %vm4347, %vm4348
    %v4350 = vsel %vm4349, %v4341, %v4346
    %v4351 = vrsqrt.pop %v4229
    %v4352 = vmul.f32 %v4351, %v4229
    %v4353 = vmul.f32 %v4352, %v4351
    %v4354 = vmul.f32 0.5, %v4353
    %v4355 = vsub.f32 1.5, %v4354
    %v4356 = vmul.f32 %v4351, %v4355
    %vm4357 = vweird.f32 %v4229
    %vm4358 = vweird.f32 %v4351
    %vm4359 = vmor %vm4357, %vm4358
    %v4360 = vsel %vm4359, %v4351, %v4356
    %v4361 = vrsqrt.pop %v4230
    %v4362 = vmul.f32 %v4361, %v4230
    %v4363 = vmul.f32 %v4362, %v4361
    %v4364 = vmul.f32 0.5, %v4363
    %v4365 = vsub.f32 1.5, %v4364
    %v4366 = vmul.f32 %v4361, %v4365
    %vm4367 = vweird.f32 %v4230
    %vm4368 = vweird.f32 %v4361
    %vm4369 = vmor %vm4367, %vm4368
    %v4370 = vsel %vm4369, %v4361, %v4366
    %v4371 = vrsqrt.pop %v4231
    %v4372 = vmul.f32 %v4371, %v4231
    %v4373 = vmul.f32 %v4372, %v4371
    %v4374 = vmul.f32 0.5, %v4373
    %v4375 = vsub.f32 1.5, %v4374
    %v4376 = vmul.f32 %v4371, %v4375
    %vm4377 = vweird.f32 %v4231
    %vm4378 = vweird.f32 %v4371
    %vm4379 = vmor %vm4377, %vm4378
    %v4380 = vsel %vm4379, %v4371, %v4376
    %v4381 = vrsqrt.pop %v4232
    %v4382 = vmul.f32 %v4381, %v4232
    %v4383 = vmul.f32 %v4382, %v4381
    %v4384 = vmul.f32 0.5, %v4383
    %v4385 = vsub.f32 1.5, %v4384
    %v4386 = vmul.f32 %v4381, %v4385
    %vm4387 = vweird.f32 %v4232
    %vm4388 = vweird.f32 %v4381
    %vm4389 = vmor %vm4387, %vm4388
    %v4390 = vsel %vm4389, %v4381, %v4386
    %v4391 = vrsqrt.pop %v4233
    %v4392 = vmul.f32 %v4391, %v4233
    %v4393 = vmul.f32 %v4392, %v4391
    %v4394 = vmul.f32 0.5, %v4393
    %v4395 = vsub.f32 1.5, %v4394
    %v4396 = vmul.f32 %v4391, %v4395
    %vm4397 = vweird.f32 %v4233
    %vm4398 = vweird.f32 %v4391
    %vm4399 = vmor %vm4397, %vm4398
    %v4400 = vsel %vm4399, %v4391, %v4396
    %v4401 = vrsqrt.pop %v4234
    %v4402 = vmul.f32 %v4401, %v4234
    %v4403 = vmul.f32 %v4402, %v4401
    %v4404 = vmul.f32 0.5, %v4403
    %v4405 = vsub.f32 1.5, %v4404
    %v4406 = vmul.f32 %v4401, %v4405
    %vm4407 = vweird.f32 %v4234
    %vm4408 = vweird.f32 %v4401
    %vm4409 = vmor %vm4407, %vm4408
    %v4410 = vsel %vm4409, %v4401, %v4406
    %v4411 = vrsqrt.pop %v4235
    %v4412 = vmul.f32 %v4411, %v4235
    %v4413 = vmul.f32 %v4412, %v4411
    %v4414 = vmul.f32 0.5, %v4413
    %v4415 = vsub.f32 1.5, %v4414
    %v4416 = vmul.f32 %v4411, %v4415
    %vm4417 = vweird.f32 %v4235
    %vm4418 = vweird.f32 %v4411
    %vm4419 = vmor %vm4417, %vm4418
    %v4420 = vsel %vm4419, %v4411, %v4416
    %v4421 = vrsqrt.pop %v4236
    %v4422 = vmul.f32 %v4421, %v4236
    %v4423 = vmul.f32 %v4422, %v4421
    %v4424 = vmul.f32 0.5, %v4423
    %v4425 = vsub.f32 1.5, %v4424
    %v4426 = vmul.f32 %v4421, %v4425
    %vm4427 = vweird.f32 %v4236
    %vm4428 = vweird.f32 %v4421
    %vm4429 = vmor %vm4427, %vm4428
    %v4430 = vsel %vm4429, %v4421, %v4426
    %v4431 = vrsqrt.pop %v4237
    %v4432 = vmul.f32 %v4431, %v4237
    %v4433 = vmul.f32 %v4432, %v4431
    %v4434 = vmul.f32 0.5, %v4433
    %v4435 = vsub.f32 1.5, %v4434
    %v4436 = vmul.f32 %v4431, %v4435
    %vm4437 = vweird.f32 %v4237
    %vm4438 = vweird.f32 %v4431
    %vm4439 = vmor %vm4437, %vm4438
    %v4440 = vsel %vm4439, %v4431, %v4436
    %v4441 = vrsqrt.pop %v4238
    %v4442 = vmul.f32 %v4441, %v4238
    %v4443 = vmul.f32 %v4442, %v4441
    %v4444 = vmul.f32 0.5, %v4443
    %v4445 = vsub.f32 1.5, %v4444
    %v4446 = vmul.f32 %v4441, %v4445
    %vm4447 = vweird.f32 %v4238
    %vm4448 = vweird.f32 %v4441
    %vm4449 = vmor %vm4447, %vm4448
    %v4450 = vsel %vm4449, %v4441, %v4446
    %v4451 = vrsqrt.pop %v4239
    %v4452 = vmul.f32 %v4451, %v4239
    %v4453 = vmul.f32 %v4452, %v4451
    %v4454 = vmul.f32 0.5, %v4453
    %v4455 = vsub.f32 1.5, %v4454
    %v4456 = vmul.f32 %v4451, %v4455
    %vm4457 = vweird.f32 %v4239
    %vm4458 = vweird.f32 %v4451
    %vm4459 = vmor %vm4457, %vm4458
    %v4460 = vsel %vm4459, %v4451, %v4456
    %v4461 = vrsqrt.pop %v4240
    %v4462 = vmul.f32 %v4461, %v4240
    %v4463 = vmul.f32 %v4462, %v4461
    %v4464 = vmul.f32 0.5, %v4463
    %v4465 = vsub.f32 1.5, %v4464
    %v4466 = vmul.f32 %v4461, %v4465
    %vm4467 = vweird.f32 %v4240
    %vm4468 = vweird.f32 %v4461
    %vm4469 = vmor %vm4467, %vm4468
    %v4470 = vsel %vm4469, %v4461, %v4466
    %v4471 = vrsqrt.pop %v4241
    %v4472 = vmul.f32 %v4471, %v4241
    %v4473 = vmul.f32 %v4472, %v4471
    %v4474 = vmul.f32 0.5, %v4473
    %v4475 = vsub.f32 1.5, %v4474
    %v4476 = vmul.f32 %v4471, %v4475
    %vm4477 = vweird.f32 %v4241
    %vm4478 = vweird.f32 %v4471
    %vm4479 = vmor %vm4477, %vm4478
    %v4480 = vsel %vm4479, %v4471, %v4476
    %v4481 = vrsqrt.pop %v4242
    %v4482 = vmul.f32 %v4481, %v4242
    %v4483 = vmul.f32 %v4482, %v4481
    %v4484 = vmul.f32 0.5, %v4483
    %v4485 = vsub.f32 1.5, %v4484
    %v4486 = vmul.f32 %v4481, %v4485
    %vm4487 = vweird.f32 %v4242
    %vm4488 = vweird.f32 %v4481
    %vm4489 = vmor %vm4487, %vm4488
    %v4490 = vsel %vm4489, %v4481, %v4486
    %v4491 = vrsqrt.pop %v4243
    %v4492 = vmul.f32 %v4491, %v4243
    %v4493 = vmul.f32 %v4492, %v4491
    %v4494 = vmul.f32 0.5, %v4493
    %v4495 = vsub.f32 1.5, %v4494
    %v4496 = vmul.f32 %v4491, %v4495
    %vm4497 = vweird.f32 %v4243
    %vm4498 = vweird.f32 %v4491
    %vm4499 = vmor %vm4497, %vm4498
    %v4500 = vsel %vm4499, %v4491, %v4496
    %v4501 = vrsqrt.pop %v4244
    %v4502 = vmul.f32 %v4501, %v4244
    %v4503 = vmul.f32 %v4502, %v4501
    %v4504 = vmul.f32 0.5, %v4503
    %v4505 = vsub.f32 1.5, %v4504
    %v4506 = vmul.f32 %v4501, %v4505
    %vm4507 = vweird.f32 %v4244
    %vm4508 = vweird.f32 %v4501
    %vm4509 = vmor %vm4507, %vm4508
    %v4510 = vsel %vm4509, %v4501, %v4506
    %v4511 = vrsqrt.pop %v4245
    %v4512 = vmul.f32 %v4511, %v4245
    %v4513 = vmul.f32 %v4512, %v4511
    %v4514 = vmul.f32 0.5, %v4513
    %v4515 = vsub.f32 1.5, %v4514
    %v4516 = vmul.f32 %v4511, %v4515
    %vm4517 = vweird.f32 %v4245
    %vm4518 = vweird.f32 %v4511
    %vm4519 = vmor %vm4517, %vm4518
    %v4520 = vsel %vm4519, %v4511, %v4516
    %v4521 = vrsqrt.pop %v4246
    %v4522 = vmul.f32 %v4521, %v4246
    %v4523 = vmul.f32 %v4522, %v4521
    %v4524 = vmul.f32 0.5, %v4523
    %v4525 = vsub.f32 1.5, %v4524
    %v4526 = vmul.f32 %v4521, %v4525
    %vm4527 = vweird.f32 %v4246
    %vm4528 = vweird.f32 %v4521
    %vm4529 = vmor %vm4527, %vm4528
    %v4530 = vsel %vm4529, %v4521, %v4526
    %v4531 = vrsqrt.pop %v4247
    %v4532 = vmul.f32 %v4531, %v4247
    %v4533 = vmul.f32 %v4532, %v4531
    %v4534 = vmul.f32 0.5, %v4533
    %v4535 = vsub.f32 1.5, %v4534
    %v4536 = vmul.f32 %v4531, %v4535
    %vm4537 = vweird.f32 %v4247
    %vm4538 = vweird.f32 %v4531
    %vm4539 = vmor %vm4537, %vm4538
    %v4540 = vsel %vm4539, %v4531, %v4536
    %v4541 = vrsqrt.pop %v4248
    %v4542 = vmul.f32 %v4541, %v4248
    %v4543 = vmul.f32 %v4542, %v4541
    %v4544 = vmul.f32 0.5, %v4543
    %v4545 = vsub.f32 1.5, %v4544
    %v4546 = vmul.f32 %v4541, %v4545
    %vm4547 = vweird.f32 %v4248
    %vm4548 = vweird.f32 %v4541
    %vm4549 = vmor %vm4547, %vm4548
    %v4550 = vsel %vm4549, %v4541, %v4546
    %v4551 = vrsqrt.pop %v4249
    %v4552 = vmul.f32 %v4551, %v4249
    %v4553 = vmul.f32 %v4552, %v4551
    %v4554 = vmul.f32 0.5, %v4553
    %v4555 = vsub.f32 1.5, %v4554
    %v4556 = vmul.f32 %v4551, %v4555
    %vm4557 = vweird.f32 %v4249
    %vm4558 = vweird.f32 %v4551
    %vm4559 = vmor %vm4557, %vm4558
    %v4560 = vsel %vm4559, %v4551, %v4556
    %v4561 = vrsqrt.pop %v4250
    %v4562 = vmul.f32 %v4561, %v4250
    %v4563 = vmul.f32 %v4562, %v4561
    %v4564 = vmul.f32 0.5, %v4563
    %v4565 = vsub.f32 1.5, %v4564
    %v4566 = vmul.f32 %v4561, %v4565
    %vm4567 = vweird.f32 %v4250
    %vm4568 = vweird.f32 %v4561
    %vm4569 = vmor %vm4567, %vm4568
    %v4570 = vsel %vm4569, %v4561, %v4566
    %v4571 = vmul.f32 %v4187, %v4260
    %v4572 = vmul.f32 %v4188, %v4270
    %v4573 = vmul.f32 %v4189, %v4280
    %v4574 = vmul.f32 %v4190, %v4290
    %v4575 = vmul.f32 %v4191, %v4300
    %v4576 = vmul.f32 %v4192, %v4310
    %v4577 = vmul.f32 %v4193, %v4320
    %v4578 = vmul.f32 %v4194, %v4330
    %v4579 = vmul.f32 %v4195, %v4340
    %v4580 = vmul.f32 %v4196, %v4350
    %v4581 = vmul.f32 %v4197, %v4360
    %v4582 = vmul.f32 %v4198, %v4370
    %v4583 = vmul.f32 %v4199, %v4380
    %v4584 = vmul.f32 %v4200, %v4390
    %v4585 = vmul.f32 %v4201, %v4400
    %v4586 = vmul.f32 %v4202, %v4410
    %v4587 = vmul.f32 %v4203, %v4420
    %v4588 = vmul.f32 %v4204, %v4430
    %v4589 = vmul.f32 %v4205, %v4440
    %v4590 = vmul.f32 %v4206, %v4450
    %v4591 = vmul.f32 %v4207, %v4460
    %v4592 = vmul.f32 %v4208, %v4470
    %v4593 = vmul.f32 %v4209, %v4480
    %v4594 = vmul.f32 %v4210, %v4490
    %v4595 = vmul.f32 %v4211, %v4500
    %v4596 = vmul.f32 %v4212, %v4510
    %v4597 = vmul.f32 %v4213, %v4520
    %v4598 = vmul.f32 %v4214, %v4530
    %v4599 = vmul.f32 %v4215, %v4540
    %v4600 = vmul.f32 %v4216, %v4550
    %v4601 = vmul.f32 %v4217, %v4560
    %v4602 = vmul.f32 %v4218, %v4570
    %v4604 = vperm.slane %v3833, 0
    %v4606 = vmul.f32 %v4571, %v4604
    %v4607 = vmul.f32 %v4572, %v4604
    %v4608 = vmul.f32 %v4573, %v4604
    %v4609 = vmul.f32 %v4574, %v4604
    %v4610 = vmul.f32 %v4575, %v4604
    %v4611 = vmul.f32 %v4576, %v4604
    %v4612 = vmul.f32 %v4577, %v4604
    %v4613 = vmul.f32 %v4578, %v4604
    %v4614 = vmul.f32 %v4579, %v4604
    %v4615 = vmul.f32 %v4580, %v4604
    %v4616 = vmul.f32 %v4581, %v4604
    %v4617 = vmul.f32 %v4582, %v4604
    %v4618 = vmul.f32 %v4583, %v4604
    %v4619 = vmul.f32 %v4584, %v4604
    %v4620 = vmul.f32 %v4585, %v4604
    %v4621 = vmul.f32 %v4586, %v4604
    %v4622 = vmul.f32 %v4587, %v4604
    %v4623 = vmul.f32 %v4588, %v4604
    %v4624 = vmul.f32 %v4589, %v4604
    %v4625 = vmul.f32 %v4590, %v4604
    %v4626 = vmul.f32 %v4591, %v4604
    %v4627 = vmul.f32 %v4592, %v4604
    %v4628 = vmul.f32 %v4593, %v4604
    %v4629 = vmul.f32 %v4594, %v4604
    %v4630 = vmul.f32 %v4595, %v4604
    %v4631 = vmul.f32 %v4596, %v4604
    %v4632 = vmul.f32 %v4597, %v4604
    %v4633 = vmul.f32 %v4598, %v4604
    %v4634 = vmul.f32 %v4599, %v4604
    %v4635 = vmul.f32 %v4600, %v4604
    %v4636 = vmul.f32 %v4601, %v4604
    %v4637 = vmul.f32 %v4602, %v4604
    %v4639 = vperm.slane %v3834, 0
    %v4641 = vadd.f32 %v4606, %v4639
    %v4642 = vadd.f32 %v4607, %v4639
    %v4643 = vadd.f32 %v4608, %v4639
    %v4644 = vadd.f32 %v4609, %v4639
    %v4645 = vadd.f32 %v4610, %v4639
    %v4646 = vadd.f32 %v4611, %v4639
    %v4647 = vadd.f32 %v4612, %v4639
    %v4648 = vadd.f32 %v4613, %v4639
    %v4649 = vadd.f32 %v4614, %v4639
    %v4650 = vadd.f32 %v4615, %v4639
    %v4651 = vadd.f32 %v4616, %v4639
    %v4652 = vadd.f32 %v4617, %v4639
    %v4653 = vadd.f32 %v4618, %v4639
    %v4654 = vadd.f32 %v4619, %v4639
    %v4655 = vadd.f32 %v4620, %v4639
    %v4656 = vadd.f32 %v4621, %v4639
    %v4657 = vadd.f32 %v4622, %v4639
    %v4658 = vadd.f32 %v4623, %v4639
    %v4659 = vadd.f32 %v4624, %v4639
    %v4660 = vadd.f32 %v4625, %v4639
    %v4661 = vadd.f32 %v4626, %v4639
    %v4662 = vadd.f32 %v4627, %v4639
    %v4663 = vadd.f32 %v4628, %v4639
    %v4664 = vadd.f32 %v4629, %v4639
    %v4665 = vadd.f32 %v4630, %v4639
    %v4666 = vadd.f32 %v4631, %v4639
    %v4667 = vadd.f32 %v4632, %v4639
    %v4668 = vadd.f32 %v4633, %v4639
    %v4669 = vadd.f32 %v4634, %v4639
    %v4670 = vadd.f32 %v4635, %v4639
    %v4671 = vadd.f32 %v4636, %v4639
    %v4672 = vadd.f32 %v4637, %v4639
    %v4673 = vld [vmem:[%s11] sm:$0xff]
    %v4674 = vld [vmem:[%s11 + $0x8] sm:$0xff]
    %v4675 = vld [vmem:[%s11 + $0x10] sm:$0xff]
    %v4676 = vld [vmem:[%s11 + $0x18] sm:$0xff]
    %v4677 = vld [vmem:[%s12] sm:$0x1]
    %v4679 = vperm.slane %v4677, 0
    %v4682 = vsel %vm197, %v4641, 0
    %v4685 = vsel %vm197, %v4642, 0
    %v4688 = vsel %vm197, %v4643, 0
    %v4691 = vsel %vm197, %v4644, 0
    %v4694 = vsel %vm197, %v4645, 0
    %v4697 = vsel %vm197, %v4646, 0
    %v4700 = vsel %vm197, %v4647, 0
    %v4703 = vsel %vm197, %v4648, 0
    %v4706 = vsel %vm197, %v4649, 0
    %v4709 = vsel %vm197, %v4650, 0
    %v4712 = vsel %vm197, %v4651, 0
    %v4715 = vsel %vm197, %v4652, 0
    %v4718 = vsel %vm197, %v4653, 0
    %v4721 = vsel %vm197, %v4654, 0
    %v4724 = vsel %vm197, %v4655, 0
    %v4727 = vsel %vm197, %v4656, 0
    %v4730 = vsel %vm197, %v4657, 0
    %v4733 = vsel %vm197, %v4658, 0
    %v4736 = vsel %vm197, %v4659, 0
    %v4739 = vsel %vm197, %v4660, 0
    %v4742 = vsel %vm197, %v4661, 0
    %v4745 = vsel %vm197, %v4662, 0
    %v4748 = vsel %vm197, %v4663, 0
    %v4751 = vsel %vm197, %v4664, 0
    %v4754 = vsel %vm197, %v4665, 0
    %v4757 = vsel %vm197, %v4666, 0
    %v4760 = vsel %vm197, %v4667, 0
    %v4763 = vsel %vm197, %v4668, 0
    %v4766 = vsel %vm197, %v4669, 0
    %v4769 = vsel %vm197, %v4670, 0
    %v4772 = vsel %vm197, %v4671, 0
    %v4775 = vsel %vm197, %v4672, 0
    %4777 = vmatpush.msra.mxu0 0.0
    %4778 = vmatpush.msra.mxu0 0.0
    %4779 = vmatpush.msra.mxu0 0.0
    %4780 = vmatpush.msra.mxu0 0.0
    %4781 = vmatpush.msra.mxu0 0.0
    %4782 = vmatpush.msra.mxu0 0.0
    %4783 = vmatpush.msra.mxu0 0.0
    %4784 = vmatpush.msra.mxu0 0.0
    %4785 = vmatpush.msra.mxu0 0.0
    %4786 = vmatpush.msra.mxu0 0.0
    %4787 = vmatpush.msra.mxu0 0.0
    %4788 = vmatpush.msra.mxu0 0.0
    %4789 = vmatpush.msra.mxu0 %v4676
    %4790 = vmatpush.msra.mxu0 %v4675
    %4791 = vmatpush.msra.mxu0 %v4674
    %4792 = vmatpush.msra.mxu0 %v4673
    %4793 = vmatmul.f32.gmra.mxu0 %v4682
    %v4794 = vpop.f32.mrf.mxu0
    %v4795 = vadd.f32 %v4679, %v4794
    %4796 = vmatmul.f32.gmra.mxu0 %v4685
    %v4797 = vpop.f32.mrf.mxu0
    %v4798 = vadd.f32 %v4679, %v4797
    %4799 = vmatmul.f32.gmra.mxu0 %v4688
    %v4800 = vpop.f32.mrf.mxu0
    %v4801 = vadd.f32 %v4679, %v4800
    %4802 = vmatmul.f32.gmra.mxu0 %v4691
    %v4803 = vpop.f32.mrf.mxu0
    %v4804 = vadd.f32 %v4679, %v4803
    %4805 = vmatmul.f32.gmra.mxu0 %v4694
    %v4806 = vpop.f32.mrf.mxu0
    %v4807 = vadd.f32 %v4679, %v4806
    %4808 = vmatmul.f32.gmra.mxu0 %v4697
    %v4809 = vpop.f32.mrf.mxu0
    %v4810 = vadd.f32 %v4679, %v4809
    %4811 = vmatmul.f32.gmra.mxu0 %v4700
    %v4812 = vpop.f32.mrf.mxu0
    %v4813 = vadd.f32 %v4679, %v4812
    %4814 = vmatmul.f32.gmra.mxu0 %v4703
    %v4815 = vpop.f32.mrf.mxu0
    %v4816 = vadd.f32 %v4679, %v4815
    %4817 = vmatmul.f32.gmra.mxu0 %v4706
    %v4818 = vpop.f32.mrf.mxu0
    %v4819 = vadd.f32 %v4679, %v4818
    %4820 = vmatmul.f32.gmra.mxu0 %v4709
    %v4821 = vpop.f32.mrf.mxu0
    %v4822 = vadd.f32 %v4679, %v4821
    %4823 = vmatmul.f32.gmra.mxu0 %v4712
    %v4824 = vpop.f32.mrf.mxu0
    %v4825 = vadd.f32 %v4679, %v4824
    %4826 = vmatmul.f32.gmra.mxu0 %v4715
    %v4827 = vpop.f32.mrf.mxu0
    %v4828 = vadd.f32 %v4679, %v4827
    %4829 = vmatmul.f32.gmra.mxu0 %v4718
    %v4830 = vpop.f32.mrf.mxu0
    %v4831 = vadd.f32 %v4679, %v4830
    %4832 = vmatmul.f32.gmra.mxu0 %v4721
    %v4833 = vpop.f32.mrf.mxu0
    %v4834 = vadd.f32 %v4679, %v4833
    %4835 = vmatmul.f32.gmra.mxu0 %v4724
    %v4836 = vpop.f32.mrf.mxu0
    %v4837 = vadd.f32 %v4679, %v4836
    %4838 = vmatmul.f32.gmra.mxu0 %v4727
    %v4839 = vpop.f32.mrf.mxu0
    %v4840 = vadd.f32 %v4679, %v4839
    %4841 = vmatmul.f32.gmra.mxu0 %v4730
    %v4842 = vpop.f32.mrf.mxu0
    %v4843 = vadd.f32 %v4679, %v4842
    %4844 = vmatmul.f32.gmra.mxu0 %v4733
    %v4845 = vpop.f32.mrf.mxu0
    %v4846 = vadd.f32 %v4679, %v4845
    %4847 = vmatmul.f32.gmra.mxu0 %v4736
    %v4848 = vpop.f32.mrf.mxu0
    %v4849 = vadd.f32 %v4679, %v4848
    %4850 = vmatmul.f32.gmra.mxu0 %v4739
    %v4851 = vpop.f32.mrf.mxu0
    %v4852 = vadd.f32 %v4679, %v4851
    %4853 = vmatmul.f32.gmra.mxu0 %v4742
    %v4854 = vpop.f32.mrf.mxu0
    %v4855 = vadd.f32 %v4679, %v4854
    %4856 = vmatmul.f32.gmra.mxu0 %v4745
    %v4857 = vpop.f32.mrf.mxu0
    %v4858 = vadd.f32 %v4679, %v4857
    %4859 = vmatmul.f32.gmra.mxu0 %v4748
    %v4860 = vpop.f32.mrf.mxu0
    %v4861 = vadd.f32 %v4679, %v4860
    %4862 = vmatmul.f32.gmra.mxu0 %v4751
    %v4863 = vpop.f32.mrf.mxu0
    %v4864 = vadd.f32 %v4679, %v4863
    %4865 = vmatmul.f32.gmra.mxu0 %v4754
    %v4866 = vpop.f32.mrf.mxu0
    %v4867 = vadd.f32 %v4679, %v4866
    %4868 = vmatmul.f32.gmra.mxu0 %v4757
    %v4869 = vpop.f32.mrf.mxu0
    %v4870 = vadd.f32 %v4679, %v4869
    %4871 = vmatmul.f32.gmra.mxu0 %v4760
    %v4872 = vpop.f32.mrf.mxu0
    %v4873 = vadd.f32 %v4679, %v4872
    %4874 = vmatmul.f32.gmra.mxu0 %v4763
    %v4875 = vpop.f32.mrf.mxu0
    %v4876 = vadd.f32 %v4679, %v4875
    %4877 = vmatmul.f32.gmra.mxu0 %v4766
    %v4878 = vpop.f32.mrf.mxu0
    %v4879 = vadd.f32 %v4679, %v4878
    %4880 = vmatmul.f32.gmra.mxu0 %v4769
    %v4881 = vpop.f32.mrf.mxu0
    %v4882 = vadd.f32 %v4679, %v4881
    %4883 = vmatmul.f32.gmra.mxu0 %v4772
    %v4884 = vpop.f32.mrf.mxu0
    %v4885 = vadd.f32 %v4679, %v4884
    %4886 = vmatmul.f32.gmra.mxu0 %v4775
    %v4887 = vpop.f32.mrf.mxu0
    %v4888 = vadd.f32 %v4679, %v4887
    %4889 = vdwg.mxu0
    %v4890 = vmax.f32 %v4795, 0.0
    %v4891 = vmax.f32 %v4798, 0.0
    %v4892 = vmax.f32 %v4801, 0.0
    %v4893 = vmax.f32 %v4804, 0.0
    %v4894 = vmax.f32 %v4807, 0.0
    %v4895 = vmax.f32 %v4810, 0.0
    %v4896 = vmax.f32 %v4813, 0.0
    %v4897 = vmax.f32 %v4816, 0.0
    %v4898 = vmax.f32 %v4819, 0.0
    %v4899 = vmax.f32 %v4822, 0.0
    %v4900 = vmax.f32 %v4825, 0.0
    %v4901 = vmax.f32 %v4828, 0.0
    %v4902 = vmax.f32 %v4831, 0.0
    %v4903 = vmax.f32 %v4834, 0.0
    %v4904 = vmax.f32 %v4837, 0.0
    %v4905 = vmax.f32 %v4840, 0.0
    %v4906 = vmax.f32 %v4843, 0.0
    %v4907 = vmax.f32 %v4846, 0.0
    %v4908 = vmax.f32 %v4849, 0.0
    %v4909 = vmax.f32 %v4852, 0.0
    %v4910 = vmax.f32 %v4855, 0.0
    %v4911 = vmax.f32 %v4858, 0.0
    %v4912 = vmax.f32 %v4861, 0.0
    %v4913 = vmax.f32 %v4864, 0.0
    %v4914 = vmax.f32 %v4867, 0.0
    %v4915 = vmax.f32 %v4870, 0.0
    %v4916 = vmax.f32 %v4873, 0.0
    %v4917 = vmax.f32 %v4876, 0.0
    %v4918 = vmax.f32 %v4879, 0.0
    %v4919 = vmax.f32 %v4882, 0.0
    %v4920 = vmax.f32 %v4885, 0.0
    %v4921 = vmax.f32 %v4888, 0.0
    %v4922 = vld [vmem:[%s13] sm:$0xff]
    %v4923 = vld [vmem:[%s13 + $0x8] sm:$0xff]
    %v4924 = vld [vmem:[%s13 + $0x10] sm:$0xff]
    %v4925 = vld [vmem:[%s13 + $0x18] sm:$0xff]
    %v4926 = vld [vmem:[%s13 + $0x20] sm:$0xff]
    %v4927 = vld [vmem:[%s13 + $0x28] sm:$0xff]
    %v4928 = vld [vmem:[%s13 + $0x30] sm:$0xff]
    %v4929 = vld [vmem:[%s13 + $0x38] sm:$0xff]
    %vm4930 = vcmask 523264
    %v4932 = vsel %vm4930, %v4890, 0
    %v4935 = vsel %vm4930, %v4891, 0
    %v4938 = vsel %vm4930, %v4892, 0
    %v4941 = vsel %vm4930, %v4893, 0
    %v4944 = vsel %vm4930, %v4894, 0
    %v4947 = vsel %vm4930, %v4895, 0
    %v4950 = vsel %vm4930, %v4896, 0
    %v4953 = vsel %vm4930, %v4897, 0
    %v4956 = vsel %vm4930, %v4898, 0
    %v4959 = vsel %vm4930, %v4899, 0
    %v4962 = vsel %vm4930, %v4900, 0
    %v4965 = vsel %vm4930, %v4901, 0
    %v4968 = vsel %vm4930, %v4902, 0
    %v4971 = vsel %vm4930, %v4903, 0
    %v4974 = vsel %vm4930, %v4904, 0
    %v4977 = vsel %vm4930, %v4905, 0
    %v4980 = vsel %vm4930, %v4906, 0
    %v4983 = vsel %vm4930, %v4907, 0
    %v4986 = vsel %vm4930, %v4908, 0
    %v4989 = vsel %vm4930, %v4909, 0
    %v4992 = vsel %vm4930, %v4910, 0
    %v4995 = vsel %vm4930, %v4911, 0
    %v4998 = vsel %vm4930, %v4912, 0
    %v5001 = vsel %vm4930, %v4913, 0
    %v5004 = vsel %vm4930, %v4914, 0
    %v5007 = vsel %vm4930, %v4915, 0
    %v5010 = vsel %vm4930, %v4916, 0
    %v5013 = vsel %vm4930, %v4917, 0
    %v5016 = vsel %vm4930, %v4918, 0
    %v5019 = vsel %vm4930, %v4919, 0
    %v5022 = vsel %vm4930, %v4920, 0
    %v5025 = vsel %vm4930, %v4921, 0
    %5027 = vmatpush.msra.mxu0 0.0
    %5028 = vmatpush.msra.mxu0 0.0
    %5029 = vmatpush.msra.mxu0 0.0
    %5030 = vmatpush.msra.mxu0 0.0
    %5031 = vmatpush.msra.mxu0 0.0
    %5032 = vmatpush.msra.mxu0 0.0
    %5033 = vmatpush.msra.mxu0 0.0
    %5034 = vmatpush.msra.mxu0 0.0
    %5035 = vmatpush.msra.mxu0 %v4929
    %5036 = vmatpush.msra.mxu0 %v4928
    %5037 = vmatpush.msra.mxu0 %v4927
    %5038 = vmatpush.msra.mxu0 %v4926
    %5039 = vmatpush.msra.mxu0 %v4925
    %5040 = vmatpush.msra.mxu0 %v4924
    %5041 = vmatpush.msra.mxu0 %v4923
    %5042 = vmatpush.msra.mxu0 %v4922
    %5043 = vmatmul.f32.gmra.mxu0 %v4932
    %v5044 = vpop.f32.mrf.mxu0
    %v5045 = vadd.f32 0.0, %v5044
    %5046 = vmatmul.f32.gmra.mxu0 %v4935
    %v5047 = vpop.f32.mrf.mxu0
    %v5048 = vadd.f32 0.0, %v5047
    %5049 = vmatmul.f32.gmra.mxu0 %v4938
    %v5050 = vpop.f32.mrf.mxu0
    %v5051 = vadd.f32 0.0, %v5050
    %5052 = vmatmul.f32.gmra.mxu0 %v4941
    %v5053 = vpop.f32.mrf.mxu0
    %v5054 = vadd.f32 0.0, %v5053
    %5055 = vmatmul.f32.gmra.mxu0 %v4944
    %v5056 = vpop.f32.mrf.mxu0
    %v5057 = vadd.f32 0.0, %v5056
    %5058 = vmatmul.f32.gmra.mxu0 %v4947
    %v5059 = vpop.f32.mrf.mxu0
    %v5060 = vadd.f32 0.0, %v5059
    %5061 = vmatmul.f32.gmra.mxu0 %v4950
    %v5062 = vpop.f32.mrf.mxu0
    %v5063 = vadd.f32 0.0, %v5062
    %5064 = vmatmul.f32.gmra.mxu0 %v4953
    %v5065 = vpop.f32.mrf.mxu0
    %v5066 = vadd.f32 0.0, %v5065
    %5067 = vmatmul.f32.gmra.mxu0 %v4956
    %v5068 = vpop.f32.mrf.mxu0
    %v5069 = vadd.f32 0.0, %v5068
    %5070 = vmatmul.f32.gmra.mxu0 %v4959
    %v5071 = vpop.f32.mrf.mxu0
    %v5072 = vadd.f32 0.0, %v5071
    %5073 = vmatmul.f32.gmra.mxu0 %v4962
    %v5074 = vpop.f32.mrf.mxu0
    %v5075 = vadd.f32 0.0, %v5074
    %5076 = vmatmul.f32.gmra.mxu0 %v4965
    %v5077 = vpop.f32.mrf.mxu0
    %v5078 = vadd.f32 0.0, %v5077
    %5079 = vmatmul.f32.gmra.mxu0 %v4968
    %v5080 = vpop.f32.mrf.mxu0
    %v5081 = vadd.f32 0.0, %v5080
    %5082 = vmatmul.f32.gmra.mxu0 %v4971
    %v5083 = vpop.f32.mrf.mxu0
    %v5084 = vadd.f32 0.0, %v5083
    %5085 = vmatmul.f32.gmra.mxu0 %v4974
    %v5086 = vpop.f32.mrf.mxu0
    %v5087 = vadd.f32 0.0, %v5086
    %5088 = vmatmul.f32.gmra.mxu0 %v4977
    %v5089 = vpop.f32.mrf.mxu0
    %v5090 = vadd.f32 0.0, %v5089
    %5091 = vmatmul.f32.gmra.mxu0 %v4980
    %v5092 = vpop.f32.mrf.mxu0
    %v5093 = vadd.f32 0.0, %v5092
    %5094 = vmatmul.f32.gmra.mxu0 %v4983
    %v5095 = vpop.f32.mrf.mxu0
    %v5096 = vadd.f32 0.0, %v5095
    %5097 = vmatmul.f32.gmra.mxu0 %v4986
    %v5098 = vpop.f32.mrf.mxu0
    %v5099 = vadd.f32 0.0, %v5098
    %5100 = vmatmul.f32.gmra.mxu0 %v4989
    %v5101 = vpop.f32.mrf.mxu0
    %v5102 = vadd.f32 0.0, %v5101
    %5103 = vmatmul.f32.gmra.mxu0 %v4992
    %v5104 = vpop.f32.mrf.mxu0
    %v5105 = vadd.f32 0.0, %v5104
    %5106 = vmatmul.f32.gmra.mxu0 %v4995
    %v5107 = vpop.f32.mrf.mxu0
    %v5108 = vadd.f32 0.0, %v5107
    %5109 = vmatmul.f32.gmra.mxu0 %v4998
    %v5110 = vpop.f32.mrf.mxu0
    %v5111 = vadd.f32 0.0, %v5110
    %5112 = vmatmul.f32.gmra.mxu0 %v5001
    %v5113 = vpop.f32.mrf.mxu0
    %v5114 = vadd.f32 0.0, %v5113
    %5115 = vmatmul.f32.gmra.mxu0 %v5004
    %v5116 = vpop.f32.mrf.mxu0
    %v5117 = vadd.f32 0.0, %v5116
    %5118 = vmatmul.f32.gmra.mxu0 %v5007
    %v5119 = vpop.f32.mrf.mxu0
    %v5120 = vadd.f32 0.0, %v5119
    %5121 = vmatmul.f32.gmra.mxu0 %v5010
    %v5122 = vpop.f32.mrf.mxu0
    %v5123 = vadd.f32 0.0, %v5122
    %5124 = vmatmul.f32.gmra.mxu0 %v5013
    %v5125 = vpop.f32.mrf.mxu0
    %v5126 = vadd.f32 0.0, %v5125
    %5127 = vmatmul.f32.gmra.mxu0 %v5016
    %v5128 = vpop.f32.mrf.mxu0
    %v5129 = vadd.f32 0.0, %v5128
    %5130 = vmatmul.f32.gmra.mxu0 %v5019
    %v5131 = vpop.f32.mrf.mxu0
    %v5132 = vadd.f32 0.0, %v5131
    %5133 = vmatmul.f32.gmra.mxu0 %v5022
    %v5134 = vpop.f32.mrf.mxu0
    %v5135 = vadd.f32 0.0, %v5134
    %5136 = vmatmul.f32.gmra.mxu0 %v5025
    %v5137 = vpop.f32.mrf.mxu0
    %v5138 = vadd.f32 0.0, %v5137
    %5139 = vdwg.mxu0
    %v5140 = vadd.f32 %v3801, %v5045
    %v5141 = vadd.f32 %v3802, %v5048
    %v5142 = vadd.f32 %v3803, %v5051
    %v5143 = vadd.f32 %v3804, %v5054
    %v5144 = vadd.f32 %v3805, %v5057
    %v5145 = vadd.f32 %v3806, %v5060
    %v5146 = vadd.f32 %v3807, %v5063
    %v5147 = vadd.f32 %v3808, %v5066
    %v5148 = vadd.f32 %v3809, %v5069
    %v5149 = vadd.f32 %v3810, %v5072
    %v5150 = vadd.f32 %v3811, %v5075
    %v5151 = vadd.f32 %v3812, %v5078
    %v5152 = vadd.f32 %v3813, %v5081
    %v5153 = vadd.f32 %v3814, %v5084
    %v5154 = vadd.f32 %v3815, %v5087
    %v5155 = vadd.f32 %v3816, %v5090
    %v5156 = vadd.f32 %v3817, %v5093
    %v5157 = vadd.f32 %v3818, %v5096
    %v5158 = vadd.f32 %v3819, %v5099
    %v5159 = vadd.f32 %v3820, %v5102
    %v5160 = vadd.f32 %v3821, %v5105
    %v5161 = vadd.f32 %v3822, %v5108
    %v5162 = vadd.f32 %v3823, %v5111
    %v5163 = vadd.f32 %v3824, %v5114
    %v5164 = vadd.f32 %v3825, %v5117
    %v5165 = vadd.f32 %v3826, %v5120
    %v5166 = vadd.f32 %v3827, %v5123
    %v5167 = vadd.f32 %v3828, %v5126
    %v5168 = vadd.f32 %v3829, %v5129
    %v5169 = vadd.f32 %v3830, %v5132
    %v5170 = vadd.f32 %v3831, %v5135
    %v5171 = vadd.f32 %v3832, %v5138
    %v5172 = vld [vmem:[%s14] sm:$0x1]
    %v5174 = vperm.slane %v5172, 0
    %v5176 = vadd.f32 %v5140, %v5174
    %v5177 = vadd.f32 %v5141, %v5174
    %v5178 = vadd.f32 %v5142, %v5174
    %v5179 = vadd.f32 %v5143, %v5174
    %v5180 = vadd.f32 %v5144, %v5174
    %v5181 = vadd.f32 %v5145, %v5174
    %v5182 = vadd.f32 %v5146, %v5174
    %v5183 = vadd.f32 %v5147, %v5174
    %v5184 = vadd.f32 %v5148, %v5174
    %v5185 = vadd.f32 %v5149, %v5174
    %v5186 = vadd.f32 %v5150, %v5174
    %v5187 = vadd.f32 %v5151, %v5174
    %v5188 = vadd.f32 %v5152, %v5174
    %v5189 = vadd.f32 %v5153, %v5174
    %v5190 = vadd.f32 %v5154, %v5174
    %v5191 = vadd.f32 %v5155, %v5174
    %v5192 = vadd.f32 %v5156, %v5174
    %v5193 = vadd.f32 %v5157, %v5174
    %v5194 = vadd.f32 %v5158, %v5174
    %v5195 = vadd.f32 %v5159, %v5174
    %v5196 = vadd.f32 %v5160, %v5174
    %v5197 = vadd.f32 %v5161, %v5174
    %v5198 = vadd.f32 %v5162, %v5174
    %v5199 = vadd.f32 %v5163, %v5174
    %v5200 = vadd.f32 %v5164, %v5174
    %v5201 = vadd.f32 %v5165, %v5174
    %v5202 = vadd.f32 %v5166, %v5174
    %v5203 = vadd.f32 %v5167, %v5174
    %v5204 = vadd.f32 %v5168, %v5174
    %v5205 = vadd.f32 %v5169, %v5174
    %v5206 = vadd.f32 %v5170, %v5174
    %v5207 = vadd.f32 %v5171, %v5174
    %v5208 = vmax.f32 %v5176, 0.0
    %v5209 = vmax.f32 %v5177, 0.0
    %v5210 = vmax.f32 %v5178, 0.0
    %v5211 = vmax.f32 %v5179, 0.0
    %v5212 = vmax.f32 %v5180, 0.0
    %v5213 = vmax.f32 %v5181, 0.0
    %v5214 = vmax.f32 %v5182, 0.0
    %v5215 = vmax.f32 %v5183, 0.0
    %v5216 = vmax.f32 %v5184, 0.0
    %v5217 = vmax.f32 %v5185, 0.0
    %v5218 = vmax.f32 %v5186, 0.0
    %v5219 = vmax.f32 %v5187, 0.0
    %v5220 = vmax.f32 %v5188, 0.0
    %v5221 = vmax.f32 %v5189, 0.0
    %v5222 = vmax.f32 %v5190, 0.0
    %v5223 = vmax.f32 %v5191, 0.0
    %v5224 = vmax.f32 %v5192, 0.0
    %v5225 = vmax.f32 %v5193, 0.0
    %v5226 = vmax.f32 %v5194, 0.0
    %v5227 = vmax.f32 %v5195, 0.0
    %v5228 = vmax.f32 %v5196, 0.0
    %v5229 = vmax.f32 %v5197, 0.0
    %v5230 = vmax.f32 %v5198, 0.0
    %v5231 = vmax.f32 %v5199, 0.0
    %v5232 = vmax.f32 %v5200, 0.0
    %v5233 = vmax.f32 %v5201, 0.0
    %v5234 = vmax.f32 %v5202, 0.0
    %v5235 = vmax.f32 %v5203, 0.0
    %v5236 = vmax.f32 %v5204, 0.0
    %v5237 = vmax.f32 %v5205, 0.0
    %v5238 = vmax.f32 %v5206, 0.0
    %v5239 = vmax.f32 %v5207, 0.0
    %v5240 = vld [vmem:[%s15] sm:$0x1]
    %v5241 = vld [vmem:[%s16] sm:$0x1]
    %v5242 = vsel %vm197, %v5208, 0.0
    %5243 = vadd.xlane.f32.xlu0 %v5242
    %v5244 = vpop.xlane.xlu0 %5243
    %v5245 = vsel %vm197, %v5209, 0.0
    %5246 = vadd.xlane.f32.xlu0 %v5245
    %v5247 = vpop.xlane.xlu0 %5246
    %v5248 = vsel %vm197, %v5210, 0.0
    %5249 = vadd.xlane.f32.xlu0 %v5248
    %v5250 = vpop.xlane.xlu0 %5249
    %v5251 = vsel %vm197, %v5211, 0.0
    %5252 = vadd.xlane.f32.xlu0 %v5251
    %v5253 = vpop.xlane.xlu0 %5252
    %v5254 = vsel %vm197, %v5212, 0.0
    %5255 = vadd.xlane.f32.xlu0 %v5254
    %v5256 = vpop.xlane.xlu0 %5255
    %v5257 = vsel %vm197, %v5213, 0.0
    %5258 = vadd.xlane.f32.xlu0 %v5257
    %v5259 = vpop.xlane.xlu0 %5258
    %v5260 = vsel %vm197, %v5214, 0.0
    %5261 = vadd.xlane.f32.xlu0 %v5260
    %v5262 = vpop.xlane.xlu0 %5261
    %v5263 = vsel %vm197, %v5215, 0.0
    %5264 = vadd.xlane.f32.xlu0 %v5263
    %v5265 = vpop.xlane.xlu0 %5264
    %v5266 = vsel %vm197, %v5216, 0.0
    %5267 = vadd.xlane.f32.xlu0 %v5266
    %v5268 = vpop.xlane.xlu0 %5267
    %v5269 = vsel %vm197, %v5217, 0.0
    %5270 = vadd.xlane.f32.xlu0 %v5269
    %v5271 = vpop.xlane.xlu0 %5270
    %v5272 = vsel %vm197, %v5218, 0.0
    %5273 = vadd.xlane.f32.xlu0 %v5272
    %v5274 = vpop.xlane.xlu0 %5273
    %v5275 = vsel %vm197, %v5219, 0.0
    %5276 = vadd.xlane.f32.xlu0 %v5275
    %v5277 = vpop.xlane.xlu0 %5276
    %v5278 = vsel %vm197, %v5220, 0.0
    %5279 = vadd.xlane.f32.xlu0 %v5278
    %v5280 = vpop.xlane.xlu0 %5279
    %v5281 = vsel %vm197, %v5221, 0.0
    %5282 = vadd.xlane.f32.xlu0 %v5281
    %v5283 = vpop.xlane.xlu0 %5282
    %v5284 = vsel %vm197, %v5222, 0.0
    %5285 = vadd.xlane.f32.xlu0 %v5284
    %v5286 = vpop.xlane.xlu0 %5285
    %v5287 = vsel %vm197, %v5223, 0.0
    %5288 = vadd.xlane.f32.xlu0 %v5287
    %v5289 = vpop.xlane.xlu0 %5288
    %v5290 = vsel %vm197, %v5224, 0.0
    %5291 = vadd.xlane.f32.xlu0 %v5290
    %v5292 = vpop.xlane.xlu0 %5291
    %v5293 = vsel %vm197, %v5225, 0.0
    %5294 = vadd.xlane.f32.xlu0 %v5293
    %v5295 = vpop.xlane.xlu0 %5294
    %v5296 = vsel %vm197, %v5226, 0.0
    %5297 = vadd.xlane.f32.xlu0 %v5296
    %v5298 = vpop.xlane.xlu0 %5297
    %v5299 = vsel %vm197, %v5227, 0.0
    %5300 = vadd.xlane.f32.xlu0 %v5299
    %v5301 = vpop.xlane.xlu0 %5300
    %v5302 = vsel %vm197, %v5228, 0.0
    %5303 = vadd.xlane.f32.xlu0 %v5302
    %v5304 = vpop.xlane.xlu0 %5303
    %v5305 = vsel %vm197, %v5229, 0.0
    %5306 = vadd.xlane.f32.xlu0 %v5305
    %v5307 = vpop.xlane.xlu0 %5306
    %v5308 = vsel %vm197, %v5230, 0.0
    %5309 = vadd.xlane.f32.xlu0 %v5308
    %v5310 = vpop.xlane.xlu0 %5309
    %v5311 = vsel %vm197, %v5231, 0.0
    %5312 = vadd.xlane.f32.xlu0 %v5311
    %v5313 = vpop.xlane.xlu0 %5312
    %v5314 = vsel %vm197, %v5232, 0.0
    %5315 = vadd.xlane.f32.xlu0 %v5314
    %v5316 = vpop.xlane.xlu0 %5315
    %v5317 = vsel %vm197, %v5233, 0.0
    %5318 = vadd.xlane.f32.xlu0 %v5317
    %v5319 = vpop.xlane.xlu0 %5318
    %v5320 = vsel %vm197, %v5234, 0.0
    %5321 = vadd.xlane.f32.xlu0 %v5320
    %v5322 = vpop.xlane.xlu0 %5321
    %v5323 = vsel %vm197, %v5235, 0.0
    %5324 = vadd.xlane.f32.xlu0 %v5323
    %v5325 = vpop.xlane.xlu0 %5324
    %v5326 = vsel %vm197, %v5236, 0.0
    %5327 = vadd.xlane.f32.xlu0 %v5326
    %v5328 = vpop.xlane.xlu0 %5327
    %v5329 = vsel %vm197, %v5237, 0.0
    %5330 = vadd.xlane.f32.xlu0 %v5329
    %v5331 = vpop.xlane.xlu0 %5330
    %v5332 = vsel %vm197, %v5238, 0.0
    %5333 = vadd.xlane.f32.xlu0 %v5332
    %v5334 = vpop.xlane.xlu0 %5333
    %v5335 = vsel %vm197, %v5239, 0.0
    %5336 = vadd.xlane.f32.xlu0 %v5335
    %v5337 = vpop.xlane.xlu0 %5336
    %v5338 = vmul.f32 %v5244, 0.03125
    %v5339 = vmul.f32 %v5247, 0.03125
    %v5340 = vmul.f32 %v5250, 0.03125
    %v5341 = vmul.f32 %v5253, 0.03125
    %v5342 = vmul.f32 %v5256, 0.03125
    %v5343 = vmul.f32 %v5259, 0.03125
    %v5344 = vmul.f32 %v5262, 0.03125
    %v5345 = vmul.f32 %v5265, 0.03125
    %v5346 = vmul.f32 %v5268, 0.03125
    %v5347 = vmul.f32 %v5271, 0.03125
    %v5348 = vmul.f32 %v5274, 0.03125
    %v5349 = vmul.f32 %v5277, 0.03125
    %v5350 = vmul.f32 %v5280, 0.03125
    %v5351 = vmul.f32 %v5283, 0.03125
    %v5352 = vmul.f32 %v5286, 0.03125
    %v5353 = vmul.f32 %v5289, 0.03125
    %v5354 = vmul.f32 %v5292, 0.03125
    %v5355 = vmul.f32 %v5295, 0.03125
    %v5356 = vmul.f32 %v5298, 0.03125
    %v5357 = vmul.f32 %v5301, 0.03125
    %v5358 = vmul.f32 %v5304, 0.03125
    %v5359 = vmul.f32 %v5307, 0.03125
    %v5360 = vmul.f32 %v5310, 0.03125
    %v5361 = vmul.f32 %v5313, 0.03125
    %v5362 = vmul.f32 %v5316, 0.03125
    %v5363 = vmul.f32 %v5319, 0.03125
    %v5364 = vmul.f32 %v5322, 0.03125
    %v5365 = vmul.f32 %v5325, 0.03125
    %v5366 = vmul.f32 %v5328, 0.03125
    %v5367 = vmul.f32 %v5331, 0.03125
    %v5368 = vmul.f32 %v5334, 0.03125
    %v5369 = vmul.f32 %v5337, 0.03125
    %v5370 = vmul.f32 %v5208, %v5208
    %v5371 = vmul.f32 %v5209, %v5209
    %v5372 = vmul.f32 %v5210, %v5210
    %v5373 = vmul.f32 %v5211, %v5211
    %v5374 = vmul.f32 %v5212, %v5212
    %v5375 = vmul.f32 %v5213, %v5213
    %v5376 = vmul.f32 %v5214, %v5214
    %v5377 = vmul.f32 %v5215, %v5215
    %v5378 = vmul.f32 %v5216, %v5216
    %v5379 = vmul.f32 %v5217, %v5217
    %v5380 = vmul.f32 %v5218, %v5218
    %v5381 = vmul.f32 %v5219, %v5219
    %v5382 = vmul.f32 %v5220, %v5220
    %v5383 = vmul.f32 %v5221, %v5221
    %v5384 = vmul.f32 %v5222, %v5222
    %v5385 = vmul.f32 %v5223, %v5223
    %v5386 = vmul.f32 %v5224, %v5224
    %v5387 = vmul.f32 %v5225, %v5225
    %v5388 = vmul.f32 %v5226, %v5226
    %v5389 = vmul.f32 %v5227, %v5227
    %v5390 = vmul.f32 %v5228, %v5228
    %v5391 = vmul.f32 %v5229, %v5229
    %v5392 = vmul.f32 %v5230, %v5230
    %v5393 = vmul.f32 %v5231, %v5231
    %v5394 = vmul.f32 %v5232, %v5232
    %v5395 = vmul.f32 %v5233, %v5233
    %v5396 = vmul.f32 %v5234, %v5234
    %v5397 = vmul.f32 %v5235, %v5235
    %v5398 = vmul.f32 %v5236, %v5236
    %v5399 = vmul.f32 %v5237, %v5237
    %v5400 = vmul.f32 %v5238, %v5238
    %v5401 = vmul.f32 %v5239, %v5239
    %v5402 = vsel %vm197, %v5370, 0.0
    %5403 = vadd.xlane.f32.xlu0 %v5402
    %v5404 = vpop.xlane.xlu0 %5403
    %v5405 = vsel %vm197, %v5371, 0.0
    %5406 = vadd.xlane.f32.xlu0 %v5405
    %v5407 = vpop.xlane.xlu0 %5406
    %v5408 = vsel %vm197, %v5372, 0.0
    %5409 = vadd.xlane.f32.xlu0 %v5408
    %v5410 = vpop.xlane.xlu0 %5409
    %v5411 = vsel %vm197, %v5373, 0.0
    %5412 = vadd.xlane.f32.xlu0 %v5411
    %v5413 = vpop.xlane.xlu0 %5412
    %v5414 = vsel %vm197, %v5374, 0.0
    %5415 = vadd.xlane.f32.xlu0 %v5414
    %v5416 = vpop.xlane.xlu0 %5415
    %v5417 = vsel %vm197, %v5375, 0.0
    %5418 = vadd.xlane.f32.xlu0 %v5417
    %v5419 = vpop.xlane.xlu0 %5418
    %v5420 = vsel %vm197, %v5376, 0.0
    %5421 = vadd.xlane.f32.xlu0 %v5420
    %v5422 = vpop.xlane.xlu0 %5421
    %v5423 = vsel %vm197, %v5377, 0.0
    %5424 = vadd.xlane.f32.xlu0 %v5423
    %v5425 = vpop.xlane.xlu0 %5424
    %v5426 = vsel %vm197, %v5378, 0.0
    %5427 = vadd.xlane.f32.xlu0 %v5426
    %v5428 = vpop.xlane.xlu0 %5427
    %v5429 = vsel %vm197, %v5379, 0.0
    %5430 = vadd.xlane.f32.xlu0 %v5429
    %v5431 = vpop.xlane.xlu0 %5430
    %v5432 = vsel %vm197, %v5380, 0.0
    %5433 = vadd.xlane.f32.xlu0 %v5432
    %v5434 = vpop.xlane.xlu0 %5433
    %v5435 = vsel %vm197, %v5381, 0.0
    %5436 = vadd.xlane.f32.xlu0 %v5435
    %v5437 = vpop.xlane.xlu0 %5436
    %v5438 = vsel %vm197, %v5382, 0.0
    %5439 = vadd.xlane.f32.xlu0 %v5438
    %v5440 = vpop.xlane.xlu0 %5439
    %v5441 = vsel %vm197, %v5383, 0.0
    %5442 = vadd.xlane.f32.xlu0 %v5441
    %v5443 = vpop.xlane.xlu0 %5442
    %v5444 = vsel %vm197, %v5384, 0.0
    %5445 = vadd.xlane.f32.xlu0 %v5444
    %v5446 = vpop.xlane.xlu0 %5445
    %v5447 = vsel %vm197, %v5385, 0.0
    %5448 = vadd.xlane.f32.xlu0 %v5447
    %v5449 = vpop.xlane.xlu0 %5448
    %v5450 = vsel %vm197, %v5386, 0.0
    %5451 = vadd.xlane.f32.xlu0 %v5450
    %v5452 = vpop.xlane.xlu0 %5451
    %v5453 = vsel %vm197, %v5387, 0.0
    %5454 = vadd.xlane.f32.xlu0 %v5453
    %v5455 = vpop.xlane.xlu0 %5454
    %v5456 = vsel %vm197, %v5388, 0.0
    %5457 = vadd.xlane.f32.xlu0 %v5456
    %v5458 = vpop.xlane.xlu0 %5457
    %v5459 = vsel %vm197, %v5389, 0.0
    %5460 = vadd.xlane.f32.xlu0 %v5459
    %v5461 = vpop.xlane.xlu0 %5460
    %v5462 = vsel %vm197, %v5390, 0.0
    %5463 = vadd.xlane.f32.xlu0 %v5462
    %v5464 = vpop.xlane.xlu0 %5463
    %v5465 = vsel %vm197, %v5391, 0.0
    %5466 = vadd.xlane.f32.xlu0 %v5465
    %v5467 = vpop.xlane.xlu0 %5466
    %v5468 = vsel %vm197, %v5392, 0.0
    %5469 = vadd.xlane.f32.xlu0 %v5468
    %v5470 = vpop.xlane.xlu0 %5469
    %v5471 = vsel %vm197, %v5393, 0.0
    %5472 = vadd.xlane.f32.xlu0 %v5471
    %v5473 = vpop.xlane.xlu0 %5472
    %v5474 = vsel %vm197, %v5394, 0.0
    %5475 = vadd.xlane.f32.xlu0 %v5474
    %v5476 = vpop.xlane.xlu0 %5475
    %v5477 = vsel %vm197, %v5395, 0.0
    %5478 = vadd.xlane.f32.xlu0 %v5477
    %v5479 = vpop.xlane.xlu0 %5478
    %v5480 = vsel %vm197, %v5396, 0.0
    %5481 = vadd.xlane.f32.xlu0 %v5480
    %v5482 = vpop.xlane.xlu0 %5481
    %v5483 = vsel %vm197, %v5397, 0.0
    %5484 = vadd.xlane.f32.xlu0 %v5483
    %v5485 = vpop.xlane.xlu0 %5484
    %v5486 = vsel %vm197, %v5398, 0.0
    %5487 = vadd.xlane.f32.xlu0 %v5486
    %v5488 = vpop.xlane.xlu0 %5487
    %v5489 = vsel %vm197, %v5399, 0.0
    %5490 = vadd.xlane.f32.xlu0 %v5489
    %v5491 = vpop.xlane.xlu0 %5490
    %v5492 = vsel %vm197, %v5400, 0.0
    %5493 = vadd.xlane.f32.xlu0 %v5492
    %v5494 = vpop.xlane.xlu0 %5493
    %v5495 = vsel %vm197, %v5401, 0.0
    %5496 = vadd.xlane.f32.xlu0 %v5495
    %v5497 = vpop.xlane.xlu0 %5496
    %v5498 = vmul.f32 %v5404, 0.03125
    %v5499 = vmul.f32 %v5407, 0.03125
    %v5500 = vmul.f32 %v5410, 0.03125
    %v5501 = vmul.f32 %v5413, 0.03125
    %v5502 = vmul.f32 %v5416, 0.03125
    %v5503 = vmul.f32 %v5419, 0.03125
    %v5504 = vmul.f32 %v5422, 0.03125
    %v5505 = vmul.f32 %v5425, 0.03125
    %v5506 = vmul.f32 %v5428, 0.03125
    %v5507 = vmul.f32 %v5431, 0.03125
    %v5508 = vmul.f32 %v5434, 0.03125
    %v5509 = vmul.f32 %v5437, 0.03125
    %v5510 = vmul.f32 %v5440, 0.03125
    %v5511 = vmul.f32 %v5443, 0.03125
    %v5512 = vmul.f32 %v5446, 0.03125
    %v5513 = vmul.f32 %v5449, 0.03125
    %v5514 = vmul.f32 %v5452, 0.03125
    %v5515 = vmul.f32 %v5455, 0.03125
    %v5516 = vmul.f32 %v5458, 0.03125
    %v5517 = vmul.f32 %v5461, 0.03125
    %v5518 = vmul.f32 %v5464, 0.03125
    %v5519 = vmul.f32 %v5467, 0.03125
    %v5520 = vmul.f32 %v5470, 0.03125
    %v5521 = vmul.f32 %v5473, 0.03125
    %v5522 = vmul.f32 %v5476, 0.03125
    %v5523 = vmul.f32 %v5479, 0.03125
    %v5524 = vmul.f32 %v5482, 0.03125
    %v5525 = vmul.f32 %v5485, 0.03125
    %v5526 = vmul.f32 %v5488, 0.03125
    %v5527 = vmul.f32 %v5491, 0.03125
    %v5528 = vmul.f32 %v5494, 0.03125
    %v5529 = vmul.f32 %v5497, 0.03125
    %v5530 = vmul.f32 %v5338, %v5338
    %v5531 = vmul.f32 %v5339, %v5339
    %v5532 = vmul.f32 %v5340, %v5340
    %v5533 = vmul.f32 %v5341, %v5341
    %v5534 = vmul.f32 %v5342, %v5342
    %v5535 = vmul.f32 %v5343, %v5343
    %v5536 = vmul.f32 %v5344, %v5344
    %v5537 = vmul.f32 %v5345, %v5345
    %v5538 = vmul.f32 %v5346, %v5346
    %v5539 = vmul.f32 %v5347, %v5347
    %v5540 = vmul.f32 %v5348, %v5348
    %v5541 = vmul.f32 %v5349, %v5349
    %v5542 = vmul.f32 %v5350, %v5350
    %v5543 = vmul.f32 %v5351, %v5351
    %v5544 = vmul.f32 %v5352, %v5352
    %v5545 = vmul.f32 %v5353, %v5353
    %v5546 = vmul.f32 %v5354, %v5354
    %v5547 = vmul.f32 %v5355, %v5355
    %v5548 = vmul.f32 %v5356, %v5356
    %v5549 = vmul.f32 %v5357, %v5357
    %v5550 = vmul.f32 %v5358, %v5358
    %v5551 = vmul.f32 %v5359, %v5359
    %v5552 = vmul.f32 %v5360, %v5360
    %v5553 = vmul.f32 %v5361, %v5361
    %v5554 = vmul.f32 %v5362, %v5362
    %v5555 = vmul.f32 %v5363, %v5363
    %v5556 = vmul.f32 %v5364, %v5364
    %v5557 = vmul.f32 %v5365, %v5365
    %v5558 = vmul.f32 %v5366, %v5366
    %v5559 = vmul.f32 %v5367, %v5367
    %v5560 = vmul.f32 %v5368, %v5368
    %v5561 = vmul.f32 %v5369, %v5369
    %v5562 = vsub.f32 %v5498, %v5530
    %v5563 = vsub.f32 %v5499, %v5531
    %v5564 = vsub.f32 %v5500, %v5532
    %v5565 = vsub.f32 %v5501, %v5533
    %v5566 = vsub.f32 %v5502, %v5534
    %v5567 = vsub.f32 %v5503, %v5535
    %v5568 = vsub.f32 %v5504, %v5536
    %v5569 = vsub.f32 %v5505, %v5537
    %v5570 = vsub.f32 %v5506, %v5538
    %v5571 = vsub.f32 %v5507, %v5539
    %v5572 = vsub.f32 %v5508, %v5540
    %v5573 = vsub.f32 %v5509, %v5541
    %v5574 = vsub.f32 %v5510, %v5542
    %v5575 = vsub.f32 %v5511, %v5543
    %v5576 = vsub.f32 %v5512, %v5544
    %v5577 = vsub.f32 %v5513, %v5545
    %v5578 = vsub.f32 %v5514, %v5546
    %v5579 = vsub.f32 %v5515, %v5547
    %v5580 = vsub.f32 %v5516, %v5548
    %v5581 = vsub.f32 %v5517, %v5549
    %v5582 = vsub.f32 %v5518, %v5550
    %v5583 = vsub.f32 %v5519, %v5551
    %v5584 = vsub.f32 %v5520, %v5552
    %v5585 = vsub.f32 %v5521, %v5553
    %v5586 = vsub.f32 %v5522, %v5554
    %v5587 = vsub.f32 %v5523, %v5555
    %v5588 = vsub.f32 %v5524, %v5556
    %v5589 = vsub.f32 %v5525, %v5557
    %v5590 = vsub.f32 %v5526, %v5558
    %v5591 = vsub.f32 %v5527, %v5559
    %v5592 = vsub.f32 %v5528, %v5560
    %v5593 = vsub.f32 %v5529, %v5561
    %v5594 = vsub.f32 %v5208, %v5338
    %v5595 = vsub.f32 %v5209, %v5339
    %v5596 = vsub.f32 %v5210, %v5340
    %v5597 = vsub.f32 %v5211, %v5341
    %v5598 = vsub.f32 %v5212, %v5342
    %v5599 = vsub.f32 %v5213, %v5343
    %v5600 = vsub.f32 %v5214, %v5344
    %v5601 = vsub.f32 %v5215, %v5345
    %v5602 = vsub.f32 %v5216, %v5346
    %v5603 = vsub.f32 %v5217, %v5347
    %v5604 = vsub.f32 %v5218, %v5348
    %v5605 = vsub.f32 %v5219, %v5349
    %v5606 = vsub.f32 %v5220, %v5350
    %v5607 = vsub.f32 %v5221, %v5351
    %v5608 = vsub.f32 %v5222, %v5352
    %v5609 = vsub.f32 %v5223, %v5353
    %v5610 = vsub.f32 %v5224, %v5354
    %v5611 = vsub.f32 %v5225, %v5355
    %v5612 = vsub.f32 %v5226, %v5356
    %v5613 = vsub.f32 %v5227, %v5357
    %v5614 = vsub.f32 %v5228, %v5358
    %v5615 = vsub.f32 %v5229, %v5359
    %v5616 = vsub.f32 %v5230, %v5360
    %v5617 = vsub.f32 %v5231, %v5361
    %v5618 = vsub.f32 %v5232, %v5362
    %v5619 = vsub.f32 %v5233, %v5363
    %v5620 = vsub.f32 %v5234, %v5364
    %v5621 = vsub.f32 %v5235, %v5365
    %v5622 = vsub.f32 %v5236, %v5366
    %v5623 = vsub.f32 %v5237, %v5367
    %v5624 = vsub.f32 %v5238, %v5368
    %v5625 = vsub.f32 %v5239, %v5369
    %v5626 = vadd.f32 %v5562, 1e-05
    %v5627 = vadd.f32 %v5563, 1e-05
    %v5628 = vadd.f32 %v5564, 1e-05
    %v5629 = vadd.f32 %v5565, 1e-05
    %v5630 = vadd.f32 %v5566, 1e-05
    %v5631 = vadd.f32 %v5567, 1e-05
    %v5632 = vadd.f32 %v5568, 1e-05
    %v5633 = vadd.f32 %v5569, 1e-05
    %v5634 = vadd.f32 %v5570, 1e-05
    %v5635 = vadd.f32 %v5571, 1e-05
    %v5636 = vadd.f32 %v5572, 1e-05
    %v5637 = vadd.f32 %v5573, 1e-05
    %v5638 = vadd.f32 %v5574, 1e-05
    %v5639 = vadd.f32 %v5575, 1e-05
    %v5640 = vadd.f32 %v5576, 1e-05
    %v5641 = vadd.f32 %v5577, 1e-05
    %v5642 = vadd.f32 %v5578, 1e-05
    %v5643 = vadd.f32 %v5579, 1e-05
    %v5644 = vadd.f32 %v5580, 1e-05
    %v5645 = vadd.f32 %v5581, 1e-05
    %v5646 = vadd.f32 %v5582, 1e-05
    %v5647 = vadd.f32 %v5583, 1e-05
    %v5648 = vadd.f32 %v5584, 1e-05
    %v5649 = vadd.f32 %v5585, 1e-05
    %v5650 = vadd.f32 %v5586, 1e-05
    %v5651 = vadd.f32 %v5587, 1e-05
    %v5652 = vadd.f32 %v5588, 1e-05
    %v5653 = vadd.f32 %v5589, 1e-05
    %v5654 = vadd.f32 %v5590, 1e-05
    %v5655 = vadd.f32 %v5591, 1e-05
    %v5656 = vadd.f32 %v5592, 1e-05
    %v5657 = vadd.f32 %v5593, 1e-05
    %v5658 = vrsqrt.pop %v5626
    %v5659 = vmul.f32 %v5658, %v5626
    %v5660 = vmul.f32 %v5659, %v5658
    %v5661 = vmul.f32 0.5, %v5660
    %v5662 = vsub.f32 1.5, %v5661
    %v5663 = vmul.f32 %v5658, %v5662
    %vm5664 = vweird.f32 %v5626
    %vm5665 = vweird.f32 %v5658
    %vm5666 = vmor %vm5664, %vm5665
    %v5667 = vsel %vm5666, %v5658, %v5663
    %v5668 = vrsqrt.pop %v5627
    %v5669 = vmul.f32 %v5668, %v5627
    %v5670 = vmul.f32 %v5669, %v5668
    %v5671 = vmul.f32 0.5, %v5670
    %v5672 = vsub.f32 1.5, %v5671
    %v5673 = vmul.f32 %v5668, %v5672
    %vm5674 = vweird.f32 %v5627
    %vm5675 = vweird.f32 %v5668
    %vm5676 = vmor %vm5674, %vm5675
    %v5677 = vsel %vm5676, %v5668, %v5673
    %v5678 = vrsqrt.pop %v5628
    %v5679 = vmul.f32 %v5678, %v5628
    %v5680 = vmul.f32 %v5679, %v5678
    %v5681 = vmul.f32 0.5, %v5680
    %v5682 = vsub.f32 1.5, %v5681
    %v5683 = vmul.f32 %v5678, %v5682
    %vm5684 = vweird.f32 %v5628
    %vm5685 = vweird.f32 %v5678
    %vm5686 = vmor %vm5684, %vm5685
    %v5687 = vsel %vm5686, %v5678, %v5683
    %v5688 = vrsqrt.pop %v5629
    %v5689 = vmul.f32 %v5688, %v5629
    %v5690 = vmul.f32 %v5689, %v5688
    %v5691 = vmul.f32 0.5, %v5690
    %v5692 = vsub.f32 1.5, %v5691
    %v5693 = vmul.f32 %v5688, %v5692
    %vm5694 = vweird.f32 %v5629
    %vm5695 = vweird.f32 %v5688
    %vm5696 = vmor %vm5694, %vm5695
    %v5697 = vsel %vm5696, %v5688, %v5693
    %v5698 = vrsqrt.pop %v5630
    %v5699 = vmul.f32 %v5698, %v5630
    %v5700 = vmul.f32 %v5699, %v5698
    %v5701 = vmul.f32 0.5, %v5700
    %v5702 = vsub.f32 1.5, %v5701
    %v5703 = vmul.f32 %v5698, %v5702
    %vm5704 = vweird.f32 %v5630
    %vm5705 = vweird.f32 %v5698
    %vm5706 = vmor %vm5704, %vm5705
    %v5707 = vsel %vm5706, %v5698, %v5703
    %v5708 = vrsqrt.pop %v5631
    %v5709 = vmul.f32 %v5708, %v5631
    %v5710 = vmul.f32 %v5709, %v5708
    %v5711 = vmul.f32 0.5, %v5710
    %v5712 = vsub.f32 1.5, %v5711
    %v5713 = vmul.f32 %v5708, %v5712
    %vm5714 = vweird.f32 %v5631
    %vm5715 = vweird.f32 %v5708
    %vm5716 = vmor %vm5714, %vm5715
    %v5717 = vsel %vm5716, %v5708, %v5713
    %v5718 = vrsqrt.pop %v5632
    %v5719 = vmul.f32 %v5718, %v5632
    %v5720 = vmul.f32 %v5719, %v5718
    %v5721 = vmul.f32 0.5, %v5720
    %v5722 = vsub.f32 1.5, %v5721
    %v5723 = vmul.f32 %v5718, %v5722
    %vm5724 = vweird.f32 %v5632
    %vm5725 = vweird.f32 %v5718
    %vm5726 = vmor %vm5724, %vm5725
    %v5727 = vsel %vm5726, %v5718, %v5723
    %v5728 = vrsqrt.pop %v5633
    %v5729 = vmul.f32 %v5728, %v5633
    %v5730 = vmul.f32 %v5729, %v5728
    %v5731 = vmul.f32 0.5, %v5730
    %v5732 = vsub.f32 1.5, %v5731
    %v5733 = vmul.f32 %v5728, %v5732
    %vm5734 = vweird.f32 %v5633
    %vm5735 = vweird.f32 %v5728
    %vm5736 = vmor %vm5734, %vm5735
    %v5737 = vsel %vm5736, %v5728, %v5733
    %v5738 = vrsqrt.pop %v5634
    %v5739 = vmul.f32 %v5738, %v5634
    %v5740 = vmul.f32 %v5739, %v5738
    %v5741 = vmul.f32 0.5, %v5740
    %v5742 = vsub.f32 1.5, %v5741
    %v5743 = vmul.f32 %v5738, %v5742
    %vm5744 = vweird.f32 %v5634
    %vm5745 = vweird.f32 %v5738
    %vm5746 = vmor %vm5744, %vm5745
    %v5747 = vsel %vm5746, %v5738, %v5743
    %v5748 = vrsqrt.pop %v5635
    %v5749 = vmul.f32 %v5748, %v5635
    %v5750 = vmul.f32 %v5749, %v5748
    %v5751 = vmul.f32 0.5, %v5750
    %v5752 = vsub.f32 1.5, %v5751
    %v5753 = vmul.f32 %v5748, %v5752
    %vm5754 = vweird.f32 %v5635
    %vm5755 = vweird.f32 %v5748
    %vm5756 = vmor %vm5754, %vm5755
    %v5757 = vsel %vm5756, %v5748, %v5753
    %v5758 = vrsqrt.pop %v5636
    %v5759 = vmul.f32 %v5758, %v5636
    %v5760 = vmul.f32 %v5759, %v5758
    %v5761 = vmul.f32 0.5, %v5760
    %v5762 = vsub.f32 1.5, %v5761
    %v5763 = vmul.f32 %v5758, %v5762
    %vm5764 = vweird.f32 %v5636
    %vm5765 = vweird.f32 %v5758
    %vm5766 = vmor %vm5764, %vm5765
    %v5767 = vsel %vm5766, %v5758, %v5763
    %v5768 = vrsqrt.pop %v5637
    %v5769 = vmul.f32 %v5768, %v5637
    %v5770 = vmul.f32 %v5769, %v5768
    %v5771 = vmul.f32 0.5, %v5770
    %v5772 = vsub.f32 1.5, %v5771
    %v5773 = vmul.f32 %v5768, %v5772
    %vm5774 = vweird.f32 %v5637
    %vm5775 = vweird.f32 %v5768
    %vm5776 = vmor %vm5774, %vm5775
    %v5777 = vsel %vm5776, %v5768, %v5773
    %v5778 = vrsqrt.pop %v5638
    %v5779 = vmul.f32 %v5778, %v5638
    %v5780 = vmul.f32 %v5779, %v5778
    %v5781 = vmul.f32 0.5, %v5780
    %v5782 = vsub.f32 1.5, %v5781
    %v5783 = vmul.f32 %v5778, %v5782
    %vm5784 = vweird.f32 %v5638
    %vm5785 = vweird.f32 %v5778
    %vm5786 = vmor %vm5784, %vm5785
    %v5787 = vsel %vm5786, %v5778, %v5783
    %v5788 = vrsqrt.pop %v5639
    %v5789 = vmul.f32 %v5788, %v5639
    %v5790 = vmul.f32 %v5789, %v5788
    %v5791 = vmul.f32 0.5, %v5790
    %v5792 = vsub.f32 1.5, %v5791
    %v5793 = vmul.f32 %v5788, %v5792
    %vm5794 = vweird.f32 %v5639
    %vm5795 = vweird.f32 %v5788
    %vm5796 = vmor %vm5794, %vm5795
    %v5797 = vsel %vm5796, %v5788, %v5793
    %v5798 = vrsqrt.pop %v5640
    %v5799 = vmul.f32 %v5798, %v5640
    %v5800 = vmul.f32 %v5799, %v5798
    %v5801 = vmul.f32 0.5, %v5800
    %v5802 = vsub.f32 1.5, %v5801
    %v5803 = vmul.f32 %v5798, %v5802
    %vm5804 = vweird.f32 %v5640
    %vm5805 = vweird.f32 %v5798
    %vm5806 = vmor %vm5804, %vm5805
    %v5807 = vsel %vm5806, %v5798, %v5803
    %v5808 = vrsqrt.pop %v5641
    %v5809 = vmul.f32 %v5808, %v5641
    %v5810 = vmul.f32 %v5809, %v5808
    %v5811 = vmul.f32 0.5, %v5810
    %v5812 = vsub.f32 1.5, %v5811
    %v5813 = vmul.f32 %v5808, %v5812
    %vm5814 = vweird.f32 %v5641
    %vm5815 = vweird.f32 %v5808
    %vm5816 = vmor %vm5814, %vm5815
    %v5817 = vsel %vm5816, %v5808, %v5813
    %v5818 = vrsqrt.pop %v5642
    %v5819 = vmul.f32 %v5818, %v5642
    %v5820 = vmul.f32 %v5819, %v5818
    %v5821 = vmul.f32 0.5, %v5820
    %v5822 = vsub.f32 1.5, %v5821
    %v5823 = vmul.f32 %v5818, %v5822
    %vm5824 = vweird.f32 %v5642
    %vm5825 = vweird.f32 %v5818
    %vm5826 = vmor %vm5824, %vm5825
    %v5827 = vsel %vm5826, %v5818, %v5823
    %v5828 = vrsqrt.pop %v5643
    %v5829 = vmul.f32 %v5828, %v5643
    %v5830 = vmul.f32 %v5829, %v5828
    %v5831 = vmul.f32 0.5, %v5830
    %v5832 = vsub.f32 1.5, %v5831
    %v5833 = vmul.f32 %v5828, %v5832
    %vm5834 = vweird.f32 %v5643
    %vm5835 = vweird.f32 %v5828
    %vm5836 = vmor %vm5834, %vm5835
    %v5837 = vsel %vm5836, %v5828, %v5833
    %v5838 = vrsqrt.pop %v5644
    %v5839 = vmul.f32 %v5838, %v5644
    %v5840 = vmul.f32 %v5839, %v5838
    %v5841 = vmul.f32 0.5, %v5840
    %v5842 = vsub.f32 1.5, %v5841
    %v5843 = vmul.f32 %v5838, %v5842
    %vm5844 = vweird.f32 %v5644
    %vm5845 = vweird.f32 %v5838
    %vm5846 = vmor %vm5844, %vm5845
    %v5847 = vsel %vm5846, %v5838, %v5843
    %v5848 = vrsqrt.pop %v5645
    %v5849 = vmul.f32 %v5848, %v5645
    %v5850 = vmul.f32 %v5849, %v5848
    %v5851 = vmul.f32 0.5, %v5850
    %v5852 = vsub.f32 1.5, %v5851
    %v5853 = vmul.f32 %v5848, %v5852
    %vm5854 = vweird.f32 %v5645
    %vm5855 = vweird.f32 %v5848
    %vm5856 = vmor %vm5854, %vm5855
    %v5857 = vsel %vm5856, %v5848, %v5853
    %v5858 = vrsqrt.pop %v5646
    %v5859 = vmul.f32 %v5858, %v5646
    %v5860 = vmul.f32 %v5859, %v5858
    %v5861 = vmul.f32 0.5, %v5860
    %v5862 = vsub.f32 1.5, %v5861
    %v5863 = vmul.f32 %v5858, %v5862
    %vm5864 = vweird.f32 %v5646
    %vm5865 = vweird.f32 %v5858
    %vm5866 = vmor %vm5864, %vm5865
    %v5867 = vsel %vm5866, %v5858, %v5863
    %v5868 = vrsqrt.pop %v5647
    %v5869 = vmul.f32 %v5868, %v5647
    %v5870 = vmul.f32 %v5869, %v5868
    %v5871 = vmul.f32 0.5, %v5870
    %v5872 = vsub.f32 1.5, %v5871
    %v5873 = vmul.f32 %v5868, %v5872
    %vm5874 = vweird.f32 %v5647
    %vm5875 = vweird.f32 %v5868
    %vm5876 = vmor %vm5874, %vm5875
    %v5877 = vsel %vm5876, %v5868, %v5873
    %v5878 = vrsqrt.pop %v5648
    %v5879 = vmul.f32 %v5878, %v5648
    %v5880 = vmul.f32 %v5879, %v5878
    %v5881 = vmul.f32 0.5, %v5880
    %v5882 = vsub.f32 1.5, %v5881
    %v5883 = vmul.f32 %v5878, %v5882
    %vm5884 = vweird.f32 %v5648
    %vm5885 = vweird.f32 %v5878
    %vm5886 = vmor %vm5884, %vm5885
    %v5887 = vsel %vm5886, %v5878, %v5883
    %v5888 = vrsqrt.pop %v5649
    %v5889 = vmul.f32 %v5888, %v5649
    %v5890 = vmul.f32 %v5889, %v5888
    %v5891 = vmul.f32 0.5, %v5890
    %v5892 = vsub.f32 1.5, %v5891
    %v5893 = vmul.f32 %v5888, %v5892
    %vm5894 = vweird.f32 %v5649
    %vm5895 = vweird.f32 %v5888
    %vm5896 = vmor %vm5894, %vm5895
    %v5897 = vsel %vm5896, %v5888, %v5893
    %v5898 = vrsqrt.pop %v5650
    %v5899 = vmul.f32 %v5898, %v5650
    %v5900 = vmul.f32 %v5899, %v5898
    %v5901 = vmul.f32 0.5, %v5900
    %v5902 = vsub.f32 1.5, %v5901
    %v5903 = vmul.f32 %v5898, %v5902
    %vm5904 = vweird.f32 %v5650
    %vm5905 = vweird.f32 %v5898
    %vm5906 = vmor %vm5904, %vm5905
    %v5907 = vsel %vm5906, %v5898, %v5903
    %v5908 = vrsqrt.pop %v5651
    %v5909 = vmul.f32 %v5908, %v5651
    %v5910 = vmul.f32 %v5909, %v5908
    %v5911 = vmul.f32 0.5, %v5910
    %v5912 = vsub.f32 1.5, %v5911
    %v5913 = vmul.f32 %v5908, %v5912
    %vm5914 = vweird.f32 %v5651
    %vm5915 = vweird.f32 %v5908
    %vm5916 = vmor %vm5914, %vm5915
    %v5917 = vsel %vm5916, %v5908, %v5913
    %v5918 = vrsqrt.pop %v5652
    %v5919 = vmul.f32 %v5918, %v5652
    %v5920 = vmul.f32 %v5919, %v5918
    %v5921 = vmul.f32 0.5, %v5920
    %v5922 = vsub.f32 1.5, %v5921
    %v5923 = vmul.f32 %v5918, %v5922
    %vm5924 = vweird.f32 %v5652
    %vm5925 = vweird.f32 %v5918
    %vm5926 = vmor %vm5924, %vm5925
    %v5927 = vsel %vm5926, %v5918, %v5923
    %v5928 = vrsqrt.pop %v5653
    %v5929 = vmul.f32 %v5928, %v5653
    %v5930 = vmul.f32 %v5929, %v5928
    %v5931 = vmul.f32 0.5, %v5930
    %v5932 = vsub.f32 1.5, %v5931
    %v5933 = vmul.f32 %v5928, %v5932
    %vm5934 = vweird.f32 %v5653
    %vm5935 = vweird.f32 %v5928
    %vm5936 = vmor %vm5934, %vm5935
    %v5937 = vsel %vm5936, %v5928, %v5933
    %v5938 = vrsqrt.pop %v5654
    %v5939 = vmul.f32 %v5938, %v5654
    %v5940 = vmul.f32 %v5939, %v5938
    %v5941 = vmul.f32 0.5, %v5940
    %v5942 = vsub.f32 1.5, %v5941
    %v5943 = vmul.f32 %v5938, %v5942
    %vm5944 = vweird.f32 %v5654
    %vm5945 = vweird.f32 %v5938
    %vm5946 = vmor %vm5944, %vm5945
    %v5947 = vsel %vm5946, %v5938, %v5943
    %v5948 = vrsqrt.pop %v5655
    %v5949 = vmul.f32 %v5948, %v5655
    %v5950 = vmul.f32 %v5949, %v5948
    %v5951 = vmul.f32 0.5, %v5950
    %v5952 = vsub.f32 1.5, %v5951
    %v5953 = vmul.f32 %v5948, %v5952
    %vm5954 = vweird.f32 %v5655
    %vm5955 = vweird.f32 %v5948
    %vm5956 = vmor %vm5954, %vm5955
    %v5957 = vsel %vm5956, %v5948, %v5953
    %v5958 = vrsqrt.pop %v5656
    %v5959 = vmul.f32 %v5958, %v5656
    %v5960 = vmul.f32 %v5959, %v5958
    %v5961 = vmul.f32 0.5, %v5960
    %v5962 = vsub.f32 1.5, %v5961
    %v5963 = vmul.f32 %v5958, %v5962
    %vm5964 = vweird.f32 %v5656
    %vm5965 = vweird.f32 %v5958
    %vm5966 = vmor %vm5964, %vm5965
    %v5967 = vsel %vm5966, %v5958, %v5963
    %v5968 = vrsqrt.pop %v5657
    %v5969 = vmul.f32 %v5968, %v5657
    %v5970 = vmul.f32 %v5969, %v5968
    %v5971 = vmul.f32 0.5, %v5970
    %v5972 = vsub.f32 1.5, %v5971
    %v5973 = vmul.f32 %v5968, %v5972
    %vm5974 = vweird.f32 %v5657
    %vm5975 = vweird.f32 %v5968
    %vm5976 = vmor %vm5974, %vm5975
    %v5977 = vsel %vm5976, %v5968, %v5973
    %v5978 = vmul.f32 %v5594, %v5667
    %v5979 = vmul.f32 %v5595, %v5677
    %v5980 = vmul.f32 %v5596, %v5687
    %v5981 = vmul.f32 %v5597, %v5697
    %v5982 = vmul.f32 %v5598, %v5707
    %v5983 = vmul.f32 %v5599, %v5717
    %v5984 = vmul.f32 %v5600, %v5727
    %v5985 = vmul.f32 %v5601, %v5737
    %v5986 = vmul.f32 %v5602, %v5747
    %v5987 = vmul.f32 %v5603, %v5757
    %v5988 = vmul.f32 %v5604, %v5767
    %v5989 = vmul.f32 %v5605, %v5777
    %v5990 = vmul.f32 %v5606, %v5787
    %v5991 = vmul.f32 %v5607, %v5797
    %v5992 = vmul.f32 %v5608, %v5807
    %v5993 = vmul.f32 %v5609, %v5817
    %v5994 = vmul.f32 %v5610, %v5827
    %v5995 = vmul.f32 %v5611, %v5837
    %v5996 = vmul.f32 %v5612, %v5847
    %v5997 = vmul.f32 %v5613, %v5857
    %v5998 = vmul.f32 %v5614, %v5867
    %v5999 = vmul.f32 %v5615, %v5877
    %v6000 = vmul.f32 %v5616, %v5887
    %v6001 = vmul.f32 %v5617, %v5897
    %v6002 = vmul.f32 %v5618, %v5907
    %v6003 = vmul.f32 %v5619, %v5917
    %v6004 = vmul.f32 %v5620, %v5927
    %v6005 = vmul.f32 %v5621, %v5937
    %v6006 = vmul.f32 %v5622, %v5947
    %v6007 = vmul.f32 %v5623, %v5957
    %v6008 = vmul.f32 %v5624, %v5967
    %v6009 = vmul.f32 %v5625, %v5977
    %v6011 = vperm.slane %v5240, 0
    %v6013 = vmul.f32 %v5978, %v6011
    %v6014 = vmul.f32 %v5979, %v6011
    %v6015 = vmul.f32 %v5980, %v6011
    %v6016 = vmul.f32 %v5981, %v6011
    %v6017 = vmul.f32 %v5982, %v6011
    %v6018 = vmul.f32 %v5983, %v6011
    %v6019 = vmul.f32 %v5984, %v6011
    %v6020 = vmul.f32 %v5985, %v6011
    %v6021 = vmul.f32 %v5986, %v6011
    %v6022 = vmul.f32 %v5987, %v6011
    %v6023 = vmul.f32 %v5988, %v6011
    %v6024 = vmul.f32 %v5989, %v6011
    %v6025 = vmul.f32 %v5990, %v6011
    %v6026 = vmul.f32 %v5991, %v6011
    %v6027 = vmul.f32 %v5992, %v6011
    %v6028 = vmul.f32 %v5993, %v6011
    %v6029 = vmul.f32 %v5994, %v6011
    %v6030 = vmul.f32 %v5995, %v6011
    %v6031 = vmul.f32 %v5996, %v6011
    %v6032 = vmul.f32 %v5997, %v6011
    %v6033 = vmul.f32 %v5998, %v6011
    %v6034 = vmul.f32 %v5999, %v6011
    %v6035 = vmul.f32 %v6000, %v6011
    %v6036 = vmul.f32 %v6001, %v6011
    %v6037 = vmul.f32 %v6002, %v6011
    %v6038 = vmul.f32 %v6003, %v6011
    %v6039 = vmul.f32 %v6004, %v6011
    %v6040 = vmul.f32 %v6005, %v6011
    %v6041 = vmul.f32 %v6006, %v6011
    %v6042 = vmul.f32 %v6007, %v6011
    %v6043 = vmul.f32 %v6008, %v6011
    %v6044 = vmul.f32 %v6009, %v6011
    %v6046 = vperm.slane %v5241, 0
    %v6048 = vadd.f32 %v6013, %v6046
    %v6049 = vadd.f32 %v6014, %v6046
    %v6050 = vadd.f32 %v6015, %v6046
    %v6051 = vadd.f32 %v6016, %v6046
    %v6052 = vadd.f32 %v6017, %v6046
    %v6053 = vadd.f32 %v6018, %v6046
    %v6054 = vadd.f32 %v6019, %v6046
    %v6055 = vadd.f32 %v6020, %v6046
    %v6056 = vadd.f32 %v6021, %v6046
    %v6057 = vadd.f32 %v6022, %v6046
    %v6058 = vadd.f32 %v6023, %v6046
    %v6059 = vadd.f32 %v6024, %v6046
    %v6060 = vadd.f32 %v6025, %v6046
    %v6061 = vadd.f32 %v6026, %v6046
    %v6062 = vadd.f32 %v6027, %v6046
    %v6063 = vadd.f32 %v6028, %v6046
    %v6064 = vadd.f32 %v6029, %v6046
    %v6065 = vadd.f32 %v6030, %v6046
    %v6066 = vadd.f32 %v6031, %v6046
    %v6067 = vadd.f32 %v6032, %v6046
    %v6068 = vadd.f32 %v6033, %v6046
    %v6069 = vadd.f32 %v6034, %v6046
    %v6070 = vadd.f32 %v6035, %v6046
    %v6071 = vadd.f32 %v6036, %v6046
    %v6072 = vadd.f32 %v6037, %v6046
    %v6073 = vadd.f32 %v6038, %v6046
    %v6074 = vadd.f32 %v6039, %v6046
    %v6075 = vadd.f32 %v6040, %v6046
    %v6076 = vadd.f32 %v6041, %v6046
    %v6077 = vadd.f32 %v6042, %v6046
    %v6078 = vadd.f32 %v6043, %v6046
    %v6079 = vadd.f32 %v6044, %v6046
    %v6080 = vmax.f32 %v6048, 0.0
    %v6081 = vmax.f32 %v6049, 0.0
    %v6082 = vmax.f32 %v6050, 0.0
    %v6083 = vmax.f32 %v6051, 0.0
    %v6084 = vmax.f32 %v6052, 0.0
    %v6085 = vmax.f32 %v6053, 0.0
    %v6086 = vmax.f32 %v6054, 0.0
    %v6087 = vmax.f32 %v6055, 0.0
    %v6088 = vmax.f32 %v6056, 0.0
    %v6089 = vmax.f32 %v6057, 0.0
    %v6090 = vmax.f32 %v6058, 0.0
    %v6091 = vmax.f32 %v6059, 0.0
    %v6092 = vmax.f32 %v6060, 0.0
    %v6093 = vmax.f32 %v6061, 0.0
    %v6094 = vmax.f32 %v6062, 0.0
    %v6095 = vmax.f32 %v6063, 0.0
    %v6096 = vmax.f32 %v6064, 0.0
    %v6097 = vmax.f32 %v6065, 0.0
    %v6098 = vmax.f32 %v6066, 0.0
    %v6099 = vmax.f32 %v6067, 0.0
    %v6100 = vmax.f32 %v6068, 0.0
    %v6101 = vmax.f32 %v6069, 0.0
    %v6102 = vmax.f32 %v6070, 0.0
    %v6103 = vmax.f32 %v6071, 0.0
    %v6104 = vmax.f32 %v6072, 0.0
    %v6105 = vmax.f32 %v6073, 0.0
    %v6106 = vmax.f32 %v6074, 0.0
    %v6107 = vmax.f32 %v6075, 0.0
    %v6108 = vmax.f32 %v6076, 0.0
    %v6109 = vmax.f32 %v6077, 0.0
    %v6110 = vmax.f32 %v6078, 0.0
    %v6111 = vmax.f32 %v6079, 0.0
    %v6112 = vsel %vm197, %v6080, 0.0
    %v6113 = vrot.slane %v6112, 4
    %v6114 = vadd.f32 %v6112, %v6113
    %v6115 = vrot.slane %v6114, 2
    %v6116 = vadd.f32 %v6114, %v6115
    %v6117 = vrot.slane %v6116, 1
    %v6118 = vadd.f32 %v6116, %v6117
    %v6119 = vsel %vm197, %v6081, 0.0
    %v6120 = vrot.slane %v6119, 4
    %v6121 = vadd.f32 %v6119, %v6120
    %v6122 = vrot.slane %v6121, 2
    %v6123 = vadd.f32 %v6121, %v6122
    %v6124 = vrot.slane %v6123, 1
    %v6125 = vadd.f32 %v6123, %v6124
    %v6126 = vsel %vm197, %v6082, 0.0
    %v6127 = vrot.slane %v6126, 4
    %v6128 = vadd.f32 %v6126, %v6127
    %v6129 = vrot.slane %v6128, 2
    %v6130 = vadd.f32 %v6128, %v6129
    %v6131 = vrot.slane %v6130, 1
    %v6132 = vadd.f32 %v6130, %v6131
    %v6133 = vsel %vm197, %v6083, 0.0
    %v6134 = vrot.slane %v6133, 4
    %v6135 = vadd.f32 %v6133, %v6134
    %v6136 = vrot.slane %v6135, 2
    %v6137 = vadd.f32 %v6135, %v6136
    %v6138 = vrot.slane %v6137, 1
    %v6139 = vadd.f32 %v6137, %v6138
    %v6140 = vsel %vm197, %v6084, 0.0
    %v6141 = vrot.slane %v6140, 4
    %v6142 = vadd.f32 %v6140, %v6141
    %v6143 = vrot.slane %v6142, 2
    %v6144 = vadd.f32 %v6142, %v6143
    %v6145 = vrot.slane %v6144, 1
    %v6146 = vadd.f32 %v6144, %v6145
    %v6147 = vsel %vm197, %v6085, 0.0
    %v6148 = vrot.slane %v6147, 4
    %v6149 = vadd.f32 %v6147, %v6148
    %v6150 = vrot.slane %v6149, 2
    %v6151 = vadd.f32 %v6149, %v6150
    %v6152 = vrot.slane %v6151, 1
    %v6153 = vadd.f32 %v6151, %v6152
    %v6154 = vsel %vm197, %v6086, 0.0
    %v6155 = vrot.slane %v6154, 4
    %v6156 = vadd.f32 %v6154, %v6155
    %v6157 = vrot.slane %v6156, 2
    %v6158 = vadd.f32 %v6156, %v6157
    %v6159 = vrot.slane %v6158, 1
    %v6160 = vadd.f32 %v6158, %v6159
    %v6161 = vsel %vm197, %v6087, 0.0
    %v6162 = vrot.slane %v6161, 4
    %v6163 = vadd.f32 %v6161, %v6162
    %v6164 = vrot.slane %v6163, 2
    %v6165 = vadd.f32 %v6163, %v6164
    %v6166 = vrot.slane %v6165, 1
    %v6167 = vadd.f32 %v6165, %v6166
    %v6168 = vsel %vm197, %v6088, 0.0
    %v6169 = vrot.slane %v6168, 4
    %v6170 = vadd.f32 %v6168, %v6169
    %v6171 = vrot.slane %v6170, 2
    %v6172 = vadd.f32 %v6170, %v6171
    %v6173 = vrot.slane %v6172, 1
    %v6174 = vadd.f32 %v6172, %v6173
    %v6175 = vsel %vm197, %v6089, 0.0
    %v6176 = vrot.slane %v6175, 4
    %v6177 = vadd.f32 %v6175, %v6176
    %v6178 = vrot.slane %v6177, 2
    %v6179 = vadd.f32 %v6177, %v6178
    %v6180 = vrot.slane %v6179, 1
    %v6181 = vadd.f32 %v6179, %v6180
    %v6182 = vsel %vm197, %v6090, 0.0
    %v6183 = vrot.slane %v6182, 4
    %v6184 = vadd.f32 %v6182, %v6183
    %v6185 = vrot.slane %v6184, 2
    %v6186 = vadd.f32 %v6184, %v6185
    %v6187 = vrot.slane %v6186, 1
    %v6188 = vadd.f32 %v6186, %v6187
    %v6189 = vsel %vm197, %v6091, 0.0
    %v6190 = vrot.slane %v6189, 4
    %v6191 = vadd.f32 %v6189, %v6190
    %v6192 = vrot.slane %v6191, 2
    %v6193 = vadd.f32 %v6191, %v6192
    %v6194 = vrot.slane %v6193, 1
    %v6195 = vadd.f32 %v6193, %v6194
    %v6196 = vsel %vm197, %v6092, 0.0
    %v6197 = vrot.slane %v6196, 4
    %v6198 = vadd.f32 %v6196, %v6197
    %v6199 = vrot.slane %v6198, 2
    %v6200 = vadd.f32 %v6198, %v6199
    %v6201 = vrot.slane %v6200, 1
    %v6202 = vadd.f32 %v6200, %v6201
    %v6203 = vsel %vm197, %v6093, 0.0
    %v6204 = vrot.slane %v6203, 4
    %v6205 = vadd.f32 %v6203, %v6204
    %v6206 = vrot.slane %v6205, 2
    %v6207 = vadd.f32 %v6205, %v6206
    %v6208 = vrot.slane %v6207, 1
    %v6209 = vadd.f32 %v6207, %v6208
    %v6210 = vsel %vm197, %v6094, 0.0
    %v6211 = vrot.slane %v6210, 4
    %v6212 = vadd.f32 %v6210, %v6211
    %v6213 = vrot.slane %v6212, 2
    %v6214 = vadd.f32 %v6212, %v6213
    %v6215 = vrot.slane %v6214, 1
    %v6216 = vadd.f32 %v6214, %v6215
    %v6217 = vsel %vm197, %v6095, 0.0
    %v6218 = vrot.slane %v6217, 4
    %v6219 = vadd.f32 %v6217, %v6218
    %v6220 = vrot.slane %v6219, 2
    %v6221 = vadd.f32 %v6219, %v6220
    %v6222 = vrot.slane %v6221, 1
    %v6223 = vadd.f32 %v6221, %v6222
    %v6224 = vsel %vm197, %v6096, 0.0
    %v6225 = vrot.slane %v6224, 4
    %v6226 = vadd.f32 %v6224, %v6225
    %v6227 = vrot.slane %v6226, 2
    %v6228 = vadd.f32 %v6226, %v6227
    %v6229 = vrot.slane %v6228, 1
    %v6230 = vadd.f32 %v6228, %v6229
    %v6231 = vsel %vm197, %v6097, 0.0
    %v6232 = vrot.slane %v6231, 4
    %v6233 = vadd.f32 %v6231, %v6232
    %v6234 = vrot.slane %v6233, 2
    %v6235 = vadd.f32 %v6233, %v6234
    %v6236 = vrot.slane %v6235, 1
    %v6237 = vadd.f32 %v6235, %v6236
    %v6238 = vsel %vm197, %v6098, 0.0
    %v6239 = vrot.slane %v6238, 4
    %v6240 = vadd.f32 %v6238, %v6239
    %v6241 = vrot.slane %v6240, 2
    %v6242 = vadd.f32 %v6240, %v6241
    %v6243 = vrot.slane %v6242, 1
    %v6244 = vadd.f32 %v6242, %v6243
    %v6245 = vsel %vm197, %v6099, 0.0
    %v6246 = vrot.slane %v6245, 4
    %v6247 = vadd.f32 %v6245, %v6246
    %v6248 = vrot.slane %v6247, 2
    %v6249 = vadd.f32 %v6247, %v6248
    %v6250 = vrot.slane %v6249, 1
    %v6251 = vadd.f32 %v6249, %v6250
    %v6252 = vsel %vm197, %v6100, 0.0
    %v6253 = vrot.slane %v6252, 4
    %v6254 = vadd.f32 %v6252, %v6253
    %v6255 = vrot.slane %v6254, 2
    %v6256 = vadd.f32 %v6254, %v6255
    %v6257 = vrot.slane %v6256, 1
    %v6258 = vadd.f32 %v6256, %v6257
    %v6259 = vsel %vm197, %v6101, 0.0
    %v6260 = vrot.slane %v6259, 4
    %v6261 = vadd.f32 %v6259, %v6260
    %v6262 = vrot.slane %v6261, 2
    %v6263 = vadd.f32 %v6261, %v6262
    %v6264 = vrot.slane %v6263, 1
    %v6265 = vadd.f32 %v6263, %v6264
    %v6266 = vsel %vm197, %v6102, 0.0
    %v6267 = vrot.slane %v6266, 4
    %v6268 = vadd.f32 %v6266, %v6267
    %v6269 = vrot.slane %v6268, 2
    %v6270 = vadd.f32 %v6268, %v6269
    %v6271 = vrot.slane %v6270, 1
    %v6272 = vadd.f32 %v6270, %v6271
    %v6273 = vsel %vm197, %v6103, 0.0
    %v6274 = vrot.slane %v6273, 4
    %v6275 = vadd.f32 %v6273, %v6274
    %v6276 = vrot.slane %v6275, 2
    %v6277 = vadd.f32 %v6275, %v6276
    %v6278 = vrot.slane %v6277, 1
    %v6279 = vadd.f32 %v6277, %v6278
    %v6280 = vsel %vm197, %v6104, 0.0
    %v6281 = vrot.slane %v6280, 4
    %v6282 = vadd.f32 %v6280, %v6281
    %v6283 = vrot.slane %v6282, 2
    %v6284 = vadd.f32 %v6282, %v6283
    %v6285 = vrot.slane %v6284, 1
    %v6286 = vadd.f32 %v6284, %v6285
    %v6287 = vsel %vm197, %v6105, 0.0
    %v6288 = vrot.slane %v6287, 4
    %v6289 = vadd.f32 %v6287, %v6288
    %v6290 = vrot.slane %v6289, 2
    %v6291 = vadd.f32 %v6289, %v6290
    %v6292 = vrot.slane %v6291, 1
    %v6293 = vadd.f32 %v6291, %v6292
    %v6294 = vsel %vm197, %v6106, 0.0
    %v6295 = vrot.slane %v6294, 4
    %v6296 = vadd.f32 %v6294, %v6295
    %v6297 = vrot.slane %v6296, 2
    %v6298 = vadd.f32 %v6296, %v6297
    %v6299 = vrot.slane %v6298, 1
    %v6300 = vadd.f32 %v6298, %v6299
    %v6301 = vsel %vm197, %v6107, 0.0
    %v6302 = vrot.slane %v6301, 4
    %v6303 = vadd.f32 %v6301, %v6302
    %v6304 = vrot.slane %v6303, 2
    %v6305 = vadd.f32 %v6303, %v6304
    %v6306 = vrot.slane %v6305, 1
    %v6307 = vadd.f32 %v6305, %v6306
    %v6308 = vsel %vm197, %v6108, 0.0
    %v6309 = vrot.slane %v6308, 4
    %v6310 = vadd.f32 %v6308, %v6309
    %v6311 = vrot.slane %v6310, 2
    %v6312 = vadd.f32 %v6310, %v6311
    %v6313 = vrot.slane %v6312, 1
    %v6314 = vadd.f32 %v6312, %v6313
    %v6315 = vsel %vm197, %v6109, 0.0
    %v6316 = vrot.slane %v6315, 4
    %v6317 = vadd.f32 %v6315, %v6316
    %v6318 = vrot.slane %v6317, 2
    %v6319 = vadd.f32 %v6317, %v6318
    %v6320 = vrot.slane %v6319, 1
    %v6321 = vadd.f32 %v6319, %v6320
    %v6322 = vsel %vm197, %v6110, 0.0
    %v6323 = vrot.slane %v6322, 4
    %v6324 = vadd.f32 %v6322, %v6323
    %v6325 = vrot.slane %v6324, 2
    %v6326 = vadd.f32 %v6324, %v6325
    %v6327 = vrot.slane %v6326, 1
    %v6328 = vadd.f32 %v6326, %v6327
    %v6329 = vsel %vm197, %v6111, 0.0
    %v6330 = vrot.slane %v6329, 4
    %v6331 = vadd.f32 %v6329, %v6330
    %v6332 = vrot.slane %v6331, 2
    %v6333 = vadd.f32 %v6331, %v6332
    %v6334 = vrot.slane %v6333, 1
    %v6335 = vadd.f32 %v6333, %v6334
    %v6336 = vrcp.pop 8.0
    %v6337 = vmul.f32 8.0, %v6336
    %v6338 = vsub.f32 1.0, %v6337
    %v6339 = vmul.f32 %v6336, %v6338
    %v6340 = vadd.f32 %v6336, %v6339
    %vm6341 = vweird.f32 %v6336
    %v6342 = vsel %vm6341, %v6336, %v6340
    %v6343 = vmul.f32 %v6118, %v6342
    %v6344 = vmul.f32 %v6125, %v6342
    %v6345 = vmul.f32 %v6132, %v6342
    %v6346 = vmul.f32 %v6139, %v6342
    %v6347 = vmul.f32 %v6146, %v6342
    %v6348 = vmul.f32 %v6153, %v6342
    %v6349 = vmul.f32 %v6160, %v6342
    %v6350 = vmul.f32 %v6167, %v6342
    %v6351 = vmul.f32 %v6174, %v6342
    %v6352 = vmul.f32 %v6181, %v6342
    %v6353 = vmul.f32 %v6188, %v6342
    %v6354 = vmul.f32 %v6195, %v6342
    %v6355 = vmul.f32 %v6202, %v6342
    %v6356 = vmul.f32 %v6209, %v6342
    %v6357 = vmul.f32 %v6216, %v6342
    %v6358 = vmul.f32 %v6223, %v6342
    %v6359 = vmul.f32 %v6230, %v6342
    %v6360 = vmul.f32 %v6237, %v6342
    %v6361 = vmul.f32 %v6244, %v6342
    %v6362 = vmul.f32 %v6251, %v6342
    %v6363 = vmul.f32 %v6258, %v6342
    %v6364 = vmul.f32 %v6265, %v6342
    %v6365 = vmul.f32 %v6272, %v6342
    %v6366 = vmul.f32 %v6279, %v6342
    %v6367 = vmul.f32 %v6286, %v6342
    %v6368 = vmul.f32 %v6293, %v6342
    %v6369 = vmul.f32 %v6300, %v6342
    %v6370 = vmul.f32 %v6307, %v6342
    %v6371 = vmul.f32 %v6314, %v6342
    %v6372 = vmul.f32 %v6321, %v6342
    %v6373 = vmul.f32 %v6328, %v6342
    %v6374 = vmul.f32 %v6335, %v6342
    %v6375 = vld [vmem:[%s17] sm:$0xff]
    %v6376 = vld [vmem:[%s17 + $0x8] sm:$0xff]
    %v6377 = vld [vmem:[%s17 + $0x10] sm:$0xff]
    %v6378 = vld [vmem:[%s17 + $0x18] sm:$0xff]
    %v6379 = vld [vmem:[%s18] sm:$0x1]
    %v6381 = vperm.slane %v6379, 0
    %vm6415 = vcmask 1041409
    %v6416 = vsel %vm6415, %v6344, %v6343
    %vm6417 = vcmask 1042434
    %v6418 = vsel %vm6417, %v6345, %v6416
    %vm6419 = vcmask 1043459
    %v6420 = vsel %vm6419, %v6346, %v6418
    %vm6421 = vcmask 1044484
    %v6422 = vsel %vm6421, %v6347, %v6420
    %vm6423 = vcmask 1045509
    %v6424 = vsel %vm6423, %v6348, %v6422
    %vm6425 = vcmask 1046534
    %v6426 = vsel %vm6425, %v6349, %v6424
    %vm6427 = vcmask 1047559
    %v6428 = vsel %vm6427, %v6350, %v6426
    %v6429 = vsel %vm6415, %v6352, %v6351
    %v6430 = vsel %vm6417, %v6353, %v6429
    %v6431 = vsel %vm6419, %v6354, %v6430
    %v6432 = vsel %vm6421, %v6355, %v6431
    %v6433 = vsel %vm6423, %v6356, %v6432
    %v6434 = vsel %vm6425, %v6357, %v6433
    %v6435 = vsel %vm6427, %v6358, %v6434
    %v6436 = vsel %vm6415, %v6360, %v6359
    %v6437 = vsel %vm6417, %v6361, %v6436
    %v6438 = vsel %vm6419, %v6362, %v6437
    %v6439 = vsel %vm6421, %v6363, %v6438
    %v6440 = vsel %vm6423, %v6364, %v6439
    %v6441 = vsel %vm6425, %v6365, %v6440
    %v6442 = vsel %vm6427, %v6366, %v6441
    %v6443 = vsel %vm6415, %v6368, %v6367
    %v6444 = vsel %vm6417, %v6369, %v6443
    %v6445 = vsel %vm6419, %v6370, %v6444
    %v6446 = vsel %vm6421, %v6371, %v6445
    %v6447 = vsel %vm6423, %v6372, %v6446
    %v6448 = vsel %vm6425, %v6373, %v6447
    %v6449 = vsel %vm6427, %v6374, %v6448
    %v6450 = vsel %vm197, %v6428, 0
    %v6452 = vsel %vm197, %v6435, 0
    %v6454 = vsel %vm197, %v6442, 0
    %v6456 = vsel %vm197, %v6449, 0
    %6458 = vmatpush.msra.mxu0 0.0
    %6459 = vmatpush.msra.mxu0 0.0
    %6460 = vmatpush.msra.mxu0 0.0
    %6461 = vmatpush.msra.mxu0 0.0
    %6462 = vmatpush.msra.mxu0 0.0
    %6463 = vmatpush.msra.mxu0 0.0
    %6464 = vmatpush.msra.mxu0 0.0
    %6465 = vmatpush.msra.mxu0 0.0
    %6466 = vmatpush.msra.mxu0 0.0
    %6467 = vmatpush.msra.mxu0 0.0
    %6468 = vmatpush.msra.mxu0 0.0
    %6469 = vmatpush.msra.mxu0 0.0
    %6470 = vmatpush.msra.mxu0 %v6378
    %6471 = vmatpush.msra.mxu0 %v6377
    %6472 = vmatpush.msra.mxu0 %v6376
    %6473 = vmatpush.msra.mxu0 %v6375
    %6474 = vmatmul.f32.gmra.mxu0 %v6450
    %v6475 = vpop.f32.mrf.mxu0
    %v6476 = vadd.f32 %v6381, %v6475
    %6477 = vmatmul.f32.gmra.mxu0 %v6452
    %v6478 = vpop.f32.mrf.mxu0
    %v6479 = vadd.f32 %v6381, %v6478
    %6480 = vmatmul.f32.gmra.mxu0 %v6454
    %v6481 = vpop.f32.mrf.mxu0
    %v6482 = vadd.f32 %v6381, %v6481
    %6483 = vmatmul.f32.gmra.mxu0 %v6456
    %v6484 = vpop.f32.mrf.mxu0
    %v6485 = vadd.f32 %v6381, %v6484
    %6486 = vdwg.mxu0
    %v6487 = vmax.f32 %v6476, 0.0
    %v6488 = vmax.f32 %v6479, 0.0
    %v6489 = vmax.f32 %v6482, 0.0
    %v6490 = vmax.f32 %v6485, 0.0
    %v6491 = vld [vmem:[%s19] sm:$0xff]
    %v6492 = vld [vmem:[%s19 + $0x8] sm:$0xff]
    %v6493 = vld [vmem:[%s19 + $0x10] sm:$0xff]
    %v6494 = vld [vmem:[%s19 + $0x18] sm:$0xff]
    %v6495 = vsub.f32 %v6487, %v6491
    %v6496 = vsub.f32 %v6488, %v6492
    %v6497 = vsub.f32 %v6489, %v6493
    %v6498 = vsub.f32 %v6490, %v6494
    %v6499 = vmul.f32 %v6495, %v6495
    %v6500 = vmul.f32 %v6496, %v6496
    %v6501 = vmul.f32 %v6497, %v6497
    %v6502 = vmul.f32 %v6498, %v6498
    %v6503 = vsel %vm1446, %v6499, 0.0
    %6504 = vadd.xlane.f32.xlu0 %v6503
    %v6505 = vpop.xlane.xlu0 %6504
    %v6506 = vsel %vm1446, %v6500, 0.0
    %6507 = vadd.xlane.f32.xlu0 %v6506
    %v6508 = vpop.xlane.xlu0 %6507
    %v6509 = vsel %vm1446, %v6501, 0.0
    %6510 = vadd.xlane.f32.xlu0 %v6509
    %v6511 = vpop.xlane.xlu0 %6510
    %v6512 = vsel %vm1446, %v6502, 0.0
    %6513 = vadd.xlane.f32.xlu0 %v6512
    %v6514 = vpop.xlane.xlu0 %6513
    %6519 = vst.msk [vmem:[#allocation7] sm:$0xff] %vm197, %v6428
    %6520 = vst.msk [vmem:[#allocation7 + $0x8] sm:$0xff] %vm197, %v6435
    %6521 = vst.msk [vmem:[#allocation7 + $0x10] sm:$0xff] %vm197, %v6442
    %6522 = vst.msk [vmem:[#allocation7 + $0x18] sm:$0xff] %vm197, %v6449
    %6527 = vrot.lane.b32.xlu0 %v6487, 32
    %v6528 = vpop.permute.xlu0 %6527
    %6529 = vrot.lane.b32.xlu0 %v6488, 32
    %v6530 = vpop.permute.xlu0 %6529
    %6531 = vrot.lane.b32.xlu0 %v6489, 32
    %v6532 = vpop.permute.xlu0 %6531
    %6533 = vrot.lane.b32.xlu0 %v6490, 32
    %v6534 = vpop.permute.xlu0 %6533
    %vm6539 = vcmask 392448
    %6540 = vst.msk [vmem:[#allocation7] sm:$0xff] %vm6539, %v6528
    %6541 = vst.msk [vmem:[#allocation7 + $0x8] sm:$0xff] %vm6539, %v6530
    %6542 = vst.msk [vmem:[#allocation7 + $0x10] sm:$0xff] %vm6539, %v6532
    %6543 = vst.msk [vmem:[#allocation7 + $0x18] sm:$0xff] %vm6539, %v6534
    %vm6544 = vcmask 400768
    %6545 = vst.msk [vmem:[#allocation7] sm:$0xff] %vm6544, %v6505
    %6546 = vst.msk [vmem:[#allocation7 + $0x8] sm:$0xff] %vm6544, %v6508
    %6547 = vst.msk [vmem:[#allocation7 + $0x10] sm:$0xff] %vm6544, %v6511
    %6548 = vst.msk [vmem:[#allocation7 + $0x18] sm:$0xff] %vm6544, %v6514
    // Predicated region
    $region90: #{tpu_custom_call.1} parent=1 // pred_check
      _
    $region91: #{tpu_custom_call.1} parent=1 // pred_check_branch
      %6550 = sbr.rel (0) target = $region93
    $region92: #{tpu_custom_call.1} parent=1 // pred_region
      %6552 = vsyncadd [#allocation4], 0
      %s6553 = sshll.u32 [#allocation7], 4
      %s6554 = int_to_ptr.vmem [resolvable:$true] %s6553
      %s6555 = sshll.u32 %s20, 4
      %s6556 = int_to_ptr.hbm [resolvable:$true] %s6555
      %6561 = dma.vmem_to_hbm [thread:$0]  %s6554, 512, %s6556, [#allocation4], 128, 128, 8
    $region93: #{tpu_custom_call.1} parent=1 // pred_fallthru
      _
    // Predicated region
    $region94: #{tpu_custom_call.1} parent=1 // pred_check
      _
    $region95: #{tpu_custom_call.1} parent=1 // pred_check_branch
      %6563 = sbr.rel (0) target = $region97
    $region96: #{tpu_custom_call.1} parent=1 // pred_region
      %6565 = dma.done [#allocation4], 512
    $region97: #{tpu_custom_call.1} parent=1 // pred_fallthru
      _
    %6566 = vsyncpa [#allocation3], 1
    %6567 = vsyncpa [#allocation6], 1
    %6568 = vsyncpa [#allocation4], 1

</llo_original>
